<compile_context>
chip_gen: v7x
topology: tpu7x:2x2x1
jax: 0.10.0
libtpu: 0.0.40
codegen_flags: <defaults>
</compile_context>

<pallas_src>
import functools
import math

import jax
import jax.numpy as jnp
from jax.experimental import pallas as pl
from jax.experimental.pallas import tpu as pltpu

EPS = 1e-6
NEG_INF = -1e9

# Resolved on the first transformer_block call: whether this JAX build accepts
# pipeline_mode=pl.Buffered(1) on constant-index weight BlockSpecs.
_SINGLE_BUFFER_WEIGHTS_OK = None


def _layer_norm(x, gamma, beta):
    # BERT-pytorch LayerNorm: a_2 * (x - mean) / (std + eps) + b_2, std is UNBIASED.
    mean = jnp.mean(x, axis=-1, keepdims=True)
    diff = x - mean
    var = jnp.sum(diff * diff, axis=-1, keepdims=True) / (x.shape[-1] - 1)
    inv = 1.0 / (jnp.sqrt(var) + EPS)   # exact: approx reciprocal error would compound per layer
    return gamma * (diff * inv) + beta


def _gelu(x):
    # BERT-pytorch custom GELU (tanh approximation).
    return 0.5 * x * (1.0 + jnp.tanh(math.sqrt(2.0 / math.pi) * (x + 0.044715 * x * x * x)))


def _split_heads(x, n_heads):
    # [T, H] -> [n_heads, T, dh]
    t, h = x.shape
    return x.reshape(t, n_heads, h // n_heads).swapaxes(0, 1)


def transformer_block_kernel(x_ref, bias_ref,
                             wqkv_ref, bqkv_ref, wo_ref, bo_ref,
                             ln1_g_ref, ln1_b_ref, ln2_g_ref, ln2_b_ref,
                             w1_ref, b1_ref, w2_ref, b2_ref,
                             o_ref,
                             q_sc, k_sc, v_sc,
                             *, n_heads, tq, ff_chunk):
    H = x_ref.shape[-1]
    F = w1_ref.shape[-1]
    dh = H // n_heads
    scale = 1.0 / math.sqrt(dh)
    t = pl.program_id(1)

    # ---- once per batch row: LN1(x) + fused QKV projection + bf16 head split ----
    @pl.when(t == 0)
    def _():
        xf = x_ref[0]                                                 # [L, H] f32
        xn = _layer_norm(xf, ln1_g_ref[...], ln1_b_ref[...])
        qkv = jnp.dot(xn.astype(jnp.bfloat16), wqkv_ref[...],
                      preferred_element_type=jnp.float32) + bqkv_ref[...]
        q_sc[...] = _split_heads(qkv[:, 0:H], n_heads).astype(jnp.bfloat16)
        k_sc[...] = _split_heads(qkv[:, H:2 * H], n_heads).astype(jnp.bfloat16)
        v_sc[...] = _split_heads(qkv[:, 2 * H:3 * H], n_heads).astype(jnp.bfloat16)

    # ---- attention sublayer for this query tile: x + Attn(LN1(x)) ----
    row0 = pl.multiple_of(t * tq, tq)
    x_t = x_ref[0, pl.ds(row0, tq), :]                                # residual tile [TQ, H] f32
    qh = q_sc[:, pl.ds(row0, tq), :]                                  # [nh, TQ, dh] bf16 (no relayout)

    s = jnp.einsum('hqd,hkd->hqk', qh, k_sc[...],
                   preferred_element_type=jnp.float32) * scale        # [nh, TQ, L]
    s = s + bias_ref[0][None]                                         # additive key mask
    s = s - jnp.max(s, axis=-1, keepdims=True)
    p = jnp.exp(s)
    p = p * pl.reciprocal(jnp.sum(p, axis=-1, keepdims=True), approx=True)

    ctx = jnp.einsum('hqk,hkd->hqd', p.astype(jnp.bfloat16), v_sc[...],
                     preferred_element_type=jnp.float32)              # [nh, TQ, dh]
    # Output projection without a per-tile transpose: head-major context against wo viewed as
    # [nh, dh, H] (batched MXU matmul), then head-sum -> lane-dense [TQ, H].
    attn = jnp.einsum('hqd,hdo->hqo', ctx.astype(jnp.bfloat16), wo_ref[...],
                      preferred_element_type=jnp.float32).sum(axis=0) + bo_ref[...]
    x1 = x_t + attn                                                   # dropout -> identity

    # ---- feed-forward sublayer: x + FFN(LN2(x)), chunked over the 4H dimension ----
    xn2 = _layer_norm(x1, ln2_g_ref[...], ln2_b_ref[...]).astype(jnp.bfloat16)
    ff = jnp.zeros((tq, H), jnp.float32)
    for c0 in range(0, F, ff_chunk):
        hdn = _gelu(jnp.dot(xn2, w1_ref[:, c0:c0 + ff_chunk],
                            preferred_element_type=jnp.float32)
                    + b1_ref[:, c0:c0 + ff_chunk])
        ff = ff + jnp.dot(hdn.astype(jnp.bfloat16), w2_ref[c0:c0 + ff_chunk, :],
                          preferred_element_type=jnp.float32)
    o_ref[0] = (x1 + ff + b2_ref[...]).astype(o_ref.dtype)            # dropout -> identity


def _pick_tq(seq_len):
    # Query tile: full L for tiny / non-128-multiple shapes; otherwise the biggest tile
    # the generation's VMEM comfortably allows (v5e/v6e: 128 MiB -> up to 512; v7x: 64 MiB -> 256).
    if seq_len % 128 != 0:
        return seq_len
    try:
        vmem_cap = pltpu.get_tpu_info().vmem_capacity_bytes
    except Exception:
        vmem_cap = 64 << 20
    cap = 512 if vmem_cap >= (96 << 20) else 256
    for cand in (512, 256, 128):
        if cand <= cap and seq_len % cand == 0:
            return cand
    return 128


def _pick_ff_chunk(ff_dim):
    if ff_dim <= 1024:
        return ff_dim
    for c in (1024, 768, 512, 384, 256, 128):
        if ff_dim % c == 0:
            return c
    return ff_dim


def _vmem_limit_bytes(B, L, H, F, n_heads, tq, ff_chunk):
    # Re-derive the VMEM budget from the actual footprint instead of a hard-coded 48 MiB.
    dh = H // n_heads
    bf16, f32 = 2, 4
    weights = bf16 * (3 * H * H + H * H + 2 * H * F)          # single-buffered bf16 weights
    smalls = 2 * f32 * (3 * H + H + F + H + 4 * H)            # biases + LN params
    io = 2 * f32 * (L * H + tq * H + L)                       # x_full + out tile + key-mask bias
    scratch = bf16 * 3 * n_heads * L * dh                     # resident q/k/v (bf16)
    live = f32 * (n_heads * tq * L + n_heads * tq * H         # scores + per-head out-proj
                  + tq * ff_chunk + 4 * tq * H + 3 * L * H)   # ffn chunk, tiles, t==0 qkv
    total = weights + smalls + io + scratch + live
    # Clamp to [32 MiB, 56 MiB] so the limit stays below v7x's 64 MiB physical VMEM.
    return int(min(max(total * 5 // 4 + (4 << 20), 32 << 20), 56 << 20))


def transformer_block(x, bias, lp, n_heads):
    global _SINGLE_BUFFER_WEIGHTS_OK
    B, L, H = x.shape
    F = lp["w1"].shape[1]
    dh = H // n_heads
    TQ = _pick_tq(L)
    n_tiles = L // TQ
    FC = _pick_ff_chunk(F)

    wo3 = lp["wo"].reshape(n_heads, dh, H)   # head-major view of the output projection (free reshape)

    # Advisory cost estimate for XLA scheduling around the custom call.
    flops = int(B * (8 * L * H * H + 4 * L * L * H + 4 * L * H * F))
    transcendentals = int(B * (n_heads * L * L + L * F + 4 * L))
    bytes_accessed = int(2 * (4 * H * H + 2 * H * F)          # bf16 weights
                         + 4 * (3 * H + 6 * H + F)            # f32 biases / LN params
                         + 4 * B * L * (2 * H + 1))           # x in + out + key-mask bias

    def run(single_buffer_weights):
        def wspec(shape):
            # Constant index map -> double buffering never overlaps anything; single-buffer
            # the weights to reclaim VMEM (critical on v7x, funds bigger TQ on v5e/v6e).
            idx = (lambda b, t: (0, 0)) if len(shape) == 2 else (lambda b, t: (0, 0, 0))
            if single_buffer_weights:
                return pl.BlockSpec(shape, idx, pipeline_mode=pl.Buffered(1))
            return pl.BlockSpec(shape, idx)

        in_specs = [
            pl.BlockSpec((1, L, H), lambda b, t: (b, 0, 0)),  # x, full seq (residual tile sliced in-kernel)
            pl.BlockSpec((1, 1, L), lambda b, t: (b, 0, 0)),  # additive key-mask bias
            wspec((H, 3 * H)), wspec((1, 3 * H)),             # wqkv (bf16), bqkv
            wspec((n_heads, dh, H)), wspec((1, H)),           # wo head-major (bf16), bo
            wspec((1, H)), wspec((1, H)),                     # ln1 gamma, beta
            wspec((1, H)), wspec((1, H)),                     # ln2 gamma, beta
            wspec((H, F)), wspec((1, F)),                     # w1 (bf16), b1
            wspec((F, H)), wspec((1, H)),                     # w2 (bf16), b2
        ]

        return pl.pallas_call(
            functools.partial(transformer_block_kernel,
                              n_heads=n_heads, tq=TQ, ff_chunk=FC),
            out_shape=jax.ShapeDtypeStruct((B, L, H), jnp.float32),
            grid_spec=pltpu.PrefetchScalarGridSpec(
                num_scalar_prefetch=0,
                grid=(B, n_tiles),
                in_specs=in_specs,
                out_specs=pl.BlockSpec((1, TQ, H), lambda b, t: (b, t, 0)),
                scratch_shapes=[
                    pltpu.VMEM((n_heads, L, dh), jnp.bfloat16),   # q, head-major
                    pltpu.VMEM((n_heads, L, dh), jnp.bfloat16),   # k
                    pltpu.VMEM((n_heads, L, dh), jnp.bfloat16),   # v
                ],
            ),
            compiler_params=pltpu.CompilerParams(
                # TODO(synk): on v7x with B == 1 the batch-parallel split leaves one TensorCore
                # idle; a query-tile core split needs per-core K/V (or VMEM_SHARED) — not done here.
                dimension_semantics=("parallel", "arbitrary"),
                vmem_limit_bytes=_vmem_limit_bytes(B, L, H, F, n_heads, TQ, FC),
            ),
            cost_estimate=pl.CostEstimate(flops=flops,
                                          transcendentals=transcendentals,
                                          bytes_accessed=bytes_accessed),
        )(x, bias,
          lp["wqkv"], lp["bqkv"], wo3, lp["bo"],
          lp["ln1_g"], lp["ln1_b"], lp["ln2_g"], lp["ln2_b"],
          lp["w1"], lp["b1"], lp["w2"], lp["b2"])

    if _SINGLE_BUFFER_WEIGHTS_OK is None:
        try:
            out = run(True)
            jax.block_until_ready(out)
            _SINGLE_BUFFER_WEIGHTS_OK = True
            return out
        except Exception:
            # This JAX build rejects pipeline_mode=pl.Buffered(1); fall back to defaults.
            _SINGLE_BUFFER_WEIGHTS_OK = False
    return run(_SINGLE_BUFFER_WEIGHTS_OK)


# ---------------------------- plain-JAX glue ----------------------------
# TODO(synk): embedding gathers (token/segment/positional) stay as plain-JAX ops outside
# the Pallas kernels.

def sinusoidal_pe(max_len, d_model):
    pos = jnp.arange(max_len, dtype=jnp.float32)[:, None]
    div = jnp.exp(jnp.arange(0, d_model, 2, dtype=jnp.float32)
                  * -(math.log(10000.0) / d_model))
    pe = jnp.zeros((max_len, d_model), jnp.float32)
    pe = pe.at[:, 0::2].set(jnp.sin(pos * div))
    pe = pe.at[:, 1::2].set(jnp.cos(pos * div))
    return pe


def init_params(key, vocab_size, hidden, n_layers, max_len):
    ff = hidden * 4
    keys = jax.random.split(key, 2 + n_layers)

    token_emb = 0.02 * jax.random.normal(keys[0], (vocab_size, hidden), jnp.float32)
    token_emb = token_emb.at[0].set(0.0)          # padding_idx=0
    seg_emb = 0.02 * jax.random.normal(keys[1], (3, hidden), jnp.float32)
    seg_emb = seg_emb.at[0].set(0.0)              # padding_idx=0

    def linear(k, fan_in, fan_out):
        bound = 1.0 / math.sqrt(fan_in)
        kw, kb = jax.random.split(k)
        w = jax.random.uniform(kw, (fan_in, fan_out), jnp.float32, -bound, bound)
        b = jax.random.uniform(kb, (1, fan_out), jnp.float32, -bound, bound)
        return w, b

    layers = []
    for i in range(n_layers):
        ks = jax.random.split(keys[2 + i], 6)
        wq, bq = linear(ks[0], hidden, hidden)
        wk, bk = linear(ks[1], hidden, hidden)
        wv, bv = linear(ks[2], hidden, hidden)
        wo, bo = linear(ks[3], hidden, hidden)
        w1, b1 = linear(ks[4], hidden, ff)
        w2, b2 = linear(ks[5], ff, hidden)
        layers.append(dict(
            # fused QKV weight [H, 3H] in bf16 (MXU inputs); biases stay f32.
            wqkv=jnp.concatenate([wq, wk, wv], axis=1).astype(jnp.bfloat16),
            bqkv=jnp.concatenate([bq, bk, bv], axis=1),
            wo=wo.astype(jnp.bfloat16), bo=bo,
            ln1_g=jnp.ones((1, hidden), jnp.float32), ln1_b=jnp.zeros((1, hidden), jnp.float32),
            ln2_g=jnp.ones((1, hidden), jnp.float32), ln2_b=jnp.zeros((1, hidden), jnp.float32),
            w1=w1.astype(jnp.bfloat16), b1=b1,
            w2=w2.astype(jnp.bfloat16), b2=b2))

    return dict(token_emb=token_emb, seg_emb=seg_emb,
                pe=sinusoidal_pe(max_len, hidden), layers=layers)


def bert_forward(tokens, segments, params, n_heads):
    B, L = tokens.shape
    # mask = (x > 0) broadcast over query rows -> additive key-mask bias [B, 1, L]
    # (0.0 for real tokens, -1e9 for padding), added to attention scores in-kernel.
    bias = jnp.where(tokens > 0, 0.0, NEG_INF).astype(jnp.float32)[:, None, :]

    # BERTEmbedding: token + positional(sinusoidal) + segment  (dropout = identity)
    x = (params["token_emb"][tokens]
         + params["pe"][None, :L, :]
         + params["seg_emb"][segments]).astype(jnp.float32)

    for lp in params["layers"]:
        x = transformer_block(x, bias, lp, n_heads)
    return x


if __name__ == "__main__":
    # small shapes consistent with the module
    VOCAB, HIDDEN, N_LAYERS, N_HEADS = 50, 32, 2, 4
    B, L = 2, 16

    key = jax.random.PRNGKey(0)
    kp, kt, ks = jax.random.split(key, 3)

    params = init_params(kp, VOCAB, HIDDEN, N_LAYERS, max_len=64)

    tokens = jax.random.randint(kt, (B, L), 1, VOCAB, dtype=jnp.int32)
    tokens = tokens.at[0, -4:].set(0)                 # some padding (mask exercised)
    tokens = tokens.at[1, -2:].set(0)
    segments = jnp.where(tokens > 0,
                         1 + (jnp.arange(L)[None, :] >= L // 2).astype(jnp.int32),
                         0).astype(jnp.int32)         # segment ids in {0,1,2}

    out = bert_forward(tokens, segments, params, N_HEADS)
    jax.block_until_ready(out)
    assert out.shape == (B, L, HIDDEN)
    print("KERNEL_OK")
</pallas_src>

<mosaic_0001>
module attributes {stable_mosaic.version = 11 : i64} {
  func.func @transformer_block_kernel(%arg0: i32, %arg1: i32, %arg2: memref<1x16x32xf32, #tpu.memory_space<vmem>>, %arg3: memref<1x1x16xf32, #tpu.memory_space<vmem>>, %arg4: memref<32x96xbf16, #tpu.memory_space<vmem>>, %arg5: memref<1x96xf32, #tpu.memory_space<vmem>>, %arg6: memref<4x8x32xbf16, #tpu.memory_space<vmem>>, %arg7: memref<1x32xf32, #tpu.memory_space<vmem>>, %arg8: memref<1x32xf32, #tpu.memory_space<vmem>>, %arg9: memref<1x32xf32, #tpu.memory_space<vmem>>, %arg10: memref<1x32xf32, #tpu.memory_space<vmem>>, %arg11: memref<1x32xf32, #tpu.memory_space<vmem>>, %arg12: memref<32x128xbf16, #tpu.memory_space<vmem>>, %arg13: memref<1x128xf32, #tpu.memory_space<vmem>>, %arg14: memref<128x32xbf16, #tpu.memory_space<vmem>>, %arg15: memref<1x32xf32, #tpu.memory_space<vmem>>, %arg16: memref<1x16x32xf32, #tpu.memory_space<vmem>>, %arg17: memref<4x16x8xbf16, #tpu.memory_space<vmem>>, %arg18: memref<4x16x8xbf16, #tpu.memory_space<vmem>>, %arg19: memref<4x16x8xbf16, #tpu.memory_space<vmem>>) attributes {dimension_semantics = [#tpu.dimension_semantics<parallel>, #tpu.dimension_semantics<arbitrary>], iteration_bounds = array<i64: 2, 1>, scalar_prefetch = 0 : i64, scratch_operands = 3 : i64, tpu.core_type = #tpu.core_type<tc>, window_params = [{transform_indices = @transform_0, window_bounds = array<i64: 1, 16, 32>}, {transform_indices = @transform_1, window_bounds = array<i64: 1, 1, 16>}, {pipeline_mode = #tpu.pipeline_mode<synchronous>, transform_indices = @transform_2, window_bounds = array<i64: 32, 96>}, {pipeline_mode = #tpu.pipeline_mode<synchronous>, transform_indices = @transform_3, window_bounds = array<i64: 1, 96>}, {pipeline_mode = #tpu.pipeline_mode<synchronous>, transform_indices = @transform_4, window_bounds = array<i64: 4, 8, 32>}, {pipeline_mode = #tpu.pipeline_mode<synchronous>, transform_indices = @transform_5, window_bounds = array<i64: 1, 32>}, {pipeline_mode = #tpu.pipeline_mode<synchronous>, transform_indices = @transform_6, window_bounds = array<i64: 1, 32>}, {pipeline_mode = #tpu.pipeline_mode<synchronous>, transform_indices = @transform_7, window_bounds = array<i64: 1, 32>}, {pipeline_mode = #tpu.pipeline_mode<synchronous>, transform_indices = @transform_8, window_bounds = array<i64: 1, 32>}, {pipeline_mode = #tpu.pipeline_mode<synchronous>, transform_indices = @transform_9, window_bounds = array<i64: 1, 32>}, {pipeline_mode = #tpu.pipeline_mode<synchronous>, transform_indices = @transform_10, window_bounds = array<i64: 32, 128>}, {pipeline_mode = #tpu.pipeline_mode<synchronous>, transform_indices = @transform_11, window_bounds = array<i64: 1, 128>}, {pipeline_mode = #tpu.pipeline_mode<synchronous>, transform_indices = @transform_12, window_bounds = array<i64: 128, 32>}, {pipeline_mode = #tpu.pipeline_mode<synchronous>, transform_indices = @transform_13, window_bounds = array<i64: 1, 32>}, {transform_indices = @transform_14, window_bounds = array<i64: 1, 16, 32>}]} {
    %c0_i32 = arith.constant 0 : i32
    %0 = arith.cmpi eq, %arg1, %c0_i32 : i32
    %1 = arith.extui %0 : i1 to i32
    %c0_i32_0 = arith.constant 0 : i32
    %2 = arith.cmpi ne, %1, %c0_i32_0 : i32
    scf.if %2 {
      %c0_52 = arith.constant 0 : index
      %c0_53 = arith.constant 0 : index
      %c0_54 = arith.constant 0 : index
      %95 = vector.load %arg2[%c0_52, %c0_53, %c0_54] : memref<1x16x32xf32, #tpu.memory_space<vmem>>, vector<1x16x32xf32>
      %96 = vector.shape_cast %95 : vector<1x16x32xf32> to vector<16x32xf32>
      %c0_55 = arith.constant 0 : index
      %c0_56 = arith.constant 0 : index
      %97 = vector.load %arg8[%c0_55, %c0_56] : memref<1x32xf32, #tpu.memory_space<vmem>>, vector<1x32xf32>
      %c0_57 = arith.constant 0 : index
      %c0_58 = arith.constant 0 : index
      %98 = vector.load %arg9[%c0_57, %c0_58] : memref<1x32xf32, #tpu.memory_space<vmem>>, vector<1x32xf32>
      %cst_59 = arith.constant dense<0.000000e+00> : vector<16xf32>
      %99 = vector.multi_reduction <add>, %96, %cst_59 [1] : vector<16x32xf32> to vector<16xf32>
      %100 = vector.shape_cast %99 : vector<16xf32> to vector<16x1xf32>
      %cst_60 = arith.constant 3.200000e+01 : f32
      %101 = vector.broadcast %cst_60 : f32 to vector<16x1xf32>
      %102 = arith.divf %100, %101 : vector<16x1xf32>
      %103 = vector.broadcast %102 : vector<16x1xf32> to vector<16x32xf32>
      %104 = arith.subf %96, %103 : vector<16x32xf32>
      %105 = arith.mulf %104, %104 : vector<16x32xf32>
      %cst_61 = arith.constant dense<0.000000e+00> : vector<16xf32>
      %106 = vector.multi_reduction <add>, %105, %cst_61 [1] : vector<16x32xf32> to vector<16xf32>
      %107 = vector.shape_cast %106 : vector<16xf32> to vector<16x1xf32>
      %cst_62 = arith.constant 3.100000e+01 : f32
      %108 = vector.broadcast %cst_62 : f32 to vector<16x1xf32>
      %109 = arith.divf %107, %108 : vector<16x1xf32>
      %110 = math.sqrt %109 : vector<16x1xf32>
      %cst_63 = arith.constant 9.99999997E-7 : f32
      %111 = vector.broadcast %cst_63 : f32 to vector<16x1xf32>
      %112 = arith.addf %110, %111 : vector<16x1xf32>
      %cst_64 = arith.constant 1.000000e+00 : f32
      %113 = vector.broadcast %cst_64 : f32 to vector<16x1xf32>
      %114 = arith.divf %113, %112 : vector<16x1xf32>
      %115 = vector.broadcast %114 : vector<16x1xf32> to vector<16x32xf32>
      %116 = arith.mulf %104, %115 : vector<16x32xf32>
      %117 = vector.broadcast %97 : vector<1x32xf32> to vector<16x32xf32>
      %118 = arith.mulf %117, %116 : vector<16x32xf32>
      %119 = vector.broadcast %98 : vector<1x32xf32> to vector<16x32xf32>
      %120 = arith.addf %118, %119 : vector<16x32xf32>
      %121 = arith.truncf %120 : vector<16x32xf32> to vector<16x32xbf16>
      %c0_65 = arith.constant 0 : index
      %c0_66 = arith.constant 0 : index
      %122 = vector.load %arg4[%c0_65, %c0_66] : memref<32x96xbf16, #tpu.memory_space<vmem>>, vector<32x96xbf16>
      %cst_67 = arith.constant dense<0.000000e+00> : vector<16x96xf32>
      %123 = tpu.matmul %121, %122, %cst_67 {dimension_numbers = #tpu.dot_dimension_numbers<[1], [0], [0], [1], [0, 0, 1, 1], [], []>} : vector<16x32xbf16>, vector<32x96xbf16>, vector<16x96xf32> -> vector<16x96xf32>
      %c0_68 = arith.constant 0 : index
      %c0_69 = arith.constant 0 : index
      %124 = vector.load %arg5[%c0_68, %c0_69] : memref<1x96xf32, #tpu.memory_space<vmem>>, vector<1x96xf32>
      %125 = vector.broadcast %124 : vector<1x96xf32> to vector<16x96xf32>
      %126 = arith.addf %123, %125 : vector<16x96xf32>
      %127 = vector.extract_strided_slice %126 {offsets = [0, 0], sizes = [16, 32], strides = [1, 1]} : vector<16x96xf32> to vector<16x32xf32>
      %128 = vector.shape_cast %127 : vector<16x32xf32> to vector<16x4x8xf32>
      %129 = tpu.transpose %128, [1, 0, 2] : vector<16x4x8xf32> -> vector<4x16x8xf32>
      %130 = arith.truncf %129 : vector<4x16x8xf32> to vector<4x16x8xbf16>
      %c0_70 = arith.constant 0 : index
      %c0_71 = arith.constant 0 : index
      %c0_72 = arith.constant 0 : index
      %131 = vector.load %arg17[%c0_70, %c0_71, %c0_72] : memref<4x16x8xbf16, #tpu.memory_space<vmem>>, vector<4x16x8xbf16>
      tpu.vector_store %arg17[%c0_70, %c0_71, %c0_72], %130 {strides = array<i32>} : memref<4x16x8xbf16, #tpu.memory_space<vmem>>, vector<4x16x8xbf16>,
      %132 = vector.extract_strided_slice %126 {offsets = [0, 32], sizes = [16, 32], strides = [1, 1]} : vector<16x96xf32> to vector<16x32xf32>
      %133 = vector.shape_cast %132 : vector<16x32xf32> to vector<16x4x8xf32>
      %134 = tpu.transpose %133, [1, 0, 2] : vector<16x4x8xf32> -> vector<4x16x8xf32>
      %135 = arith.truncf %134 : vector<4x16x8xf32> to vector<4x16x8xbf16>
      %c0_73 = arith.constant 0 : index
      %c0_74 = arith.constant 0 : index
      %c0_75 = arith.constant 0 : index
      %136 = vector.load %arg18[%c0_73, %c0_74, %c0_75] : memref<4x16x8xbf16, #tpu.memory_space<vmem>>, vector<4x16x8xbf16>
      tpu.vector_store %arg18[%c0_73, %c0_74, %c0_75], %135 {strides = array<i32>} : memref<4x16x8xbf16, #tpu.memory_space<vmem>>, vector<4x16x8xbf16>,
      %137 = vector.extract_strided_slice %126 {offsets = [0, 64], sizes = [16, 32], strides = [1, 1]} : vector<16x96xf32> to vector<16x32xf32>
      %138 = vector.shape_cast %137 : vector<16x32xf32> to vector<16x4x8xf32>
      %139 = tpu.transpose %138, [1, 0, 2] : vector<16x4x8xf32> -> vector<4x16x8xf32>
      %140 = arith.truncf %139 : vector<4x16x8xf32> to vector<4x16x8xbf16>
      %c0_76 = arith.constant 0 : index
      %c0_77 = arith.constant 0 : index
      %c0_78 = arith.constant 0 : index
      %141 = vector.load %arg19[%c0_76, %c0_77, %c0_78] : memref<4x16x8xbf16, #tpu.memory_space<vmem>>, vector<4x16x8xbf16>
      tpu.vector_store %arg19[%c0_76, %c0_77, %c0_78], %140 {strides = array<i32>} : memref<4x16x8xbf16, #tpu.memory_space<vmem>>, vector<4x16x8xbf16>,
    } else {
    }
    %c16_i32 = arith.constant 16 : i32
    %3 = arith.muli %arg1, %c16_i32 : i32
    %4 = tpu.assume_multiple %3, 16 : i32
    %c0 = arith.constant 0 : index
    %5 = arith.index_cast %4 : i32 to index
    %c0_1 = arith.constant 0 : index
    %6 = vector.load %arg2[%c0, %5, %c0_1] : memref<1x16x32xf32, #tpu.memory_space<vmem>>, vector<1x16x32xf32>
    %7 = vector.shape_cast %6 : vector<1x16x32xf32> to vector<16x32xf32>
    %c0_2 = arith.constant 0 : index
    %8 = arith.index_cast %4 : i32 to index
    %c0_3 = arith.constant 0 : index
    %9 = vector.load %arg17[%c0_2, %8, %c0_3] : memref<4x16x8xbf16, #tpu.memory_space<vmem>>, vector<4x16x8xbf16>
    %c0_4 = arith.constant 0 : index
    %c0_5 = arith.constant 0 : index
    %c0_6 = arith.constant 0 : index
    %10 = vector.load %arg18[%c0_4, %c0_5, %c0_6] : memref<4x16x8xbf16, #tpu.memory_space<vmem>>, vector<4x16x8xbf16>
    "tpu.trace_start"() <{level = 10 : i32, message = "hqd,hkd->hqk"}> : () -> ()
    %cst = arith.constant dense<0.000000e+00> : vector<4x16x16xf32>
    %11 = tpu.matmul %9, %10, %cst {dimension_numbers = #tpu.dot_dimension_numbers<[2], [2], [1], [1], [0, 0, 0, 1, 1, 1], [0], [0]>} : vector<4x16x8xbf16>, vector<4x16x8xbf16>, vector<4x16x16xf32> -> vector<4x16x16xf32>
    "tpu.trace_stop"() : () -> ()
    %cst_7 = arith.constant 0.353553385 : f32
    %12 = vector.broadcast %cst_7 : f32 to vector<4x16x16xf32>
    %13 = arith.mulf %11, %12 : vector<4x16x16xf32>
    %c0_8 = arith.constant 0 : index
    %c0_9 = arith.constant 0 : index
    %c0_10 = arith.constant 0 : index
    %14 = vector.load %arg3[%c0_8, %c0_9, %c0_10] : memref<1x1x16xf32, #tpu.memory_space<vmem>>, vector<1x1x16xf32>
    %15 = vector.shape_cast %14 : vector<1x1x16xf32> to vector<1x16xf32>
    %16 = vector.shape_cast %15 : vector<1x16xf32> to vector<1x1x16xf32>
    %17 = vector.broadcast %16 : vector<1x1x16xf32> to vector<4x16x16xf32>
    %18 = arith.addf %13, %17 : vector<4x16x16xf32>
    %cst_11 = arith.constant dense<0xFF800000> : vector<4x16xf32>
    %19 = vector.multi_reduction <maximumf>, %18, %cst_11 [2] : vector<4x16x16xf32> to vector<4x16xf32>
    %20 = vector.shape_cast %19 : vector<4x16xf32> to vector<4x16x1xf32>
    %21 = vector.broadcast %20 : vector<4x16x1xf32> to vector<4x16x16xf32>
    %22 = arith.subf %18, %21 : vector<4x16x16xf32>
    %23 = math.exp %22 : vector<4x16x16xf32>
    %cst_12 = arith.constant dense<0.000000e+00> : vector<4x16xf32>
    %24 = vector.multi_reduction <add>, %23, %cst_12 [2] : vector<4x16x16xf32> to vector<4x16xf32>
    %25 = vector.shape_cast %24 : vector<4x16xf32> to vector<4x16x1xf32>
    %26 = tpu.reciprocal %25 {approx = true} : vector<4x16x1xf32> -> vector<4x16x1xf32>
    %27 = vector.broadcast %26 : vector<4x16x1xf32> to vector<4x16x16xf32>
    %28 = arith.mulf %23, %27 : vector<4x16x16xf32>
    %29 = arith.truncf %28 : vector<4x16x16xf32> to vector<4x16x16xbf16>
    %c0_13 = arith.constant 0 : index
    %c0_14 = arith.constant 0 : index
    %c0_15 = arith.constant 0 : index
    %30 = vector.load %arg19[%c0_13, %c0_14, %c0_15] : memref<4x16x8xbf16, #tpu.memory_space<vmem>>, vector<4x16x8xbf16>
    "tpu.trace_start"() <{level = 10 : i32, message = "hqk,hkd->hqd"}> : () -> ()
    %cst_16 = arith.constant dense<0.000000e+00> : vector<4x16x8xf32>
    %31 = tpu.matmul %29, %30, %cst_16 {dimension_numbers = #tpu.dot_dimension_numbers<[2], [1], [1], [2], [0, 0, 0, 1, 1, 2], [0], [0]>} : vector<4x16x16xbf16>, vector<4x16x8xbf16>, vector<4x16x8xf32> -> vector<4x16x8xf32>
    "tpu.trace_stop"() : () -> ()
    %32 = arith.truncf %31 : vector<4x16x8xf32> to vector<4x16x8xbf16>
    %c0_17 = arith.constant 0 : index
    %c0_18 = arith.constant 0 : index
    %c0_19 = arith.constant 0 : index
    %33 = vector.load %arg6[%c0_17, %c0_18, %c0_19] : memref<4x8x32xbf16, #tpu.memory_space<vmem>>, vector<4x8x32xbf16>
    "tpu.trace_start"() <{level = 10 : i32, message = "hqd,hdo->hqo"}> : () -> ()
    %cst_20 = arith.constant dense<0.000000e+00> : vector<4x16x32xf32>
    %34 = tpu.matmul %32, %33, %cst_20 {dimension_numbers = #tpu.dot_dimension_numbers<[2], [1], [1], [2], [0, 0, 0, 1, 1, 2], [0], [0]>} : vector<4x16x8xbf16>, vector<4x8x32xbf16>, vector<4x16x32xf32> -> vector<4x16x32xf32>
    "tpu.trace_stop"() : () -> ()
    %cst_21 = arith.constant dense<0.000000e+00> : vector<16x32xf32>
    %35 = vector.multi_reduction <add>, %34, %cst_21 [0] : vector<4x16x32xf32> to vector<16x32xf32>
    %c0_22 = arith.constant 0 : index
    %c0_23 = arith.constant 0 : index
    %36 = vector.load %arg7[%c0_22, %c0_23] : memref<1x32xf32, #tpu.memory_space<vmem>>, vector<1x32xf32>
    %37 = vector.broadcast %36 : vector<1x32xf32> to vector<16x32xf32>
    %38 = arith.addf %35, %37 : vector<16x32xf32>
    %39 = arith.addf %7, %38 : vector<16x32xf32>
    %c0_24 = arith.constant 0 : index
    %c0_25 = arith.constant 0 : index
    %40 = vector.load %arg10[%c0_24, %c0_25] : memref<1x32xf32, #tpu.memory_space<vmem>>, vector<1x32xf32>
    %c0_26 = arith.constant 0 : index
    %c0_27 = arith.constant 0 : index
    %41 = vector.load %arg11[%c0_26, %c0_27] : memref<1x32xf32, #tpu.memory_space<vmem>>, vector<1x32xf32>
    %cst_28 = arith.constant dense<0.000000e+00> : vector<16xf32>
    %42 = vector.multi_reduction <add>, %39, %cst_28 [1] : vector<16x32xf32> to vector<16xf32>
    %43 = vector.shape_cast %42 : vector<16xf32> to vector<16x1xf32>
    %cst_29 = arith.constant 3.200000e+01 : f32
    %44 = vector.broadcast %cst_29 : f32 to vector<16x1xf32>
    %45 = arith.divf %43, %44 : vector<16x1xf32>
    %46 = vector.broadcast %45 : vector<16x1xf32> to vector<16x32xf32>
    %47 = arith.subf %39, %46 : vector<16x32xf32>
    %48 = arith.mulf %47, %47 : vector<16x32xf32>
    %cst_30 = arith.constant dense<0.000000e+00> : vector<16xf32>
    %49 = vector.multi_reduction <add>, %48, %cst_30 [1] : vector<16x32xf32> to vector<16xf32>
    %50 = vector.shape_cast %49 : vector<16xf32> to vector<16x1xf32>
    %cst_31 = arith.constant 3.100000e+01 : f32
    %51 = vector.broadcast %cst_31 : f32 to vector<16x1xf32>
    %52 = arith.divf %50, %51 : vector<16x1xf32>
    %53 = math.sqrt %52 : vector<16x1xf32>
    %cst_32 = arith.constant 9.99999997E-7 : f32
    %54 = vector.broadcast %cst_32 : f32 to vector<16x1xf32>
    %55 = arith.addf %53, %54 : vector<16x1xf32>
    %cst_33 = arith.constant 1.000000e+00 : f32
    %56 = vector.broadcast %cst_33 : f32 to vector<16x1xf32>
    %57 = arith.divf %56, %55 : vector<16x1xf32>
    %58 = vector.broadcast %57 : vector<16x1xf32> to vector<16x32xf32>
    %59 = arith.mulf %47, %58 : vector<16x32xf32>
    %60 = vector.broadcast %40 : vector<1x32xf32> to vector<16x32xf32>
    %61 = arith.mulf %60, %59 : vector<16x32xf32>
    %62 = vector.broadcast %41 : vector<1x32xf32> to vector<16x32xf32>
    %63 = arith.addf %61, %62 : vector<16x32xf32>
    %64 = arith.truncf %63 : vector<16x32xf32> to vector<16x32xbf16>
    %cst_34 = arith.constant 0.000000e+00 : f32
    %65 = vector.broadcast %cst_34 : f32 to vector<16x32xf32>
    %c0_35 = arith.constant 0 : index
    %c0_36 = arith.constant 0 : index
    %66 = vector.load %arg12[%c0_35, %c0_36] : memref<32x128xbf16, #tpu.memory_space<vmem>>, vector<32x128xbf16>
    %cst_37 = arith.constant dense<0.000000e+00> : vector<16x128xf32>
    %67 = tpu.matmul %64, %66, %cst_37 {dimension_numbers = #tpu.dot_dimension_numbers<[1], [0], [0], [1], [0, 0, 1, 1], [], []>} : vector<16x32xbf16>, vector<32x128xbf16>, vector<16x128xf32> -> vector<16x128xf32>
    %c0_38 = arith.constant 0 : index
    %c0_39 = arith.constant 0 : index
    %68 = vector.load %arg13[%c0_38, %c0_39] : memref<1x128xf32, #tpu.memory_space<vmem>>, vector<1x128xf32>
    %69 = vector.broadcast %68 : vector<1x128xf32> to vector<16x128xf32>
    %70 = arith.addf %67, %69 : vector<16x128xf32>
    %cst_40 = arith.constant 5.000000e-01 : f32
    %71 = vector.broadcast %cst_40 : f32 to vector<16x128xf32>
    %72 = arith.mulf %71, %70 : vector<16x128xf32>
    %cst_41 = arith.constant 4.471500e-02 : f32
    %73 = vector.broadcast %cst_41 : f32 to vector<16x128xf32>
    %74 = arith.mulf %73, %70 : vector<16x128xf32>
    %75 = arith.mulf %74, %70 : vector<16x128xf32>
    %76 = arith.mulf %75, %70 : vector<16x128xf32>
    %77 = arith.addf %70, %76 : vector<16x128xf32>
    %cst_42 = arith.constant 0.797884583 : f32
    %78 = vector.broadcast %cst_42 : f32 to vector<16x128xf32>
    %79 = arith.mulf %78, %77 : vector<16x128xf32>
    %80 = math.tanh %79 : vector<16x128xf32>
    %cst_43 = arith.constant 1.000000e+00 : f32
    %81 = vector.broadcast %cst_43 : f32 to vector<16x128xf32>
    %82 = arith.addf %81, %80 : vector<16x128xf32>
    %83 = arith.mulf %72, %82 : vector<16x128xf32>
    %84 = arith.truncf %83 : vector<16x128xf32> to vector<16x128xbf16>
    %c0_44 = arith.constant 0 : index
    %c0_45 = arith.constant 0 : index
    %85 = vector.load %arg14[%c0_44, %c0_45] : memref<128x32xbf16, #tpu.memory_space<vmem>>, vector<128x32xbf16>
    %cst_46 = arith.constant dense<0.000000e+00> : vector<16x32xf32>
    %86 = tpu.matmul %84, %85, %cst_46 {dimension_numbers = #tpu.dot_dimension_numbers<[1], [0], [0], [1], [0, 0, 1, 1], [], []>} : vector<16x128xbf16>, vector<128x32xbf16>, vector<16x32xf32> -> vector<16x32xf32>
    %87 = arith.addf %65, %86 : vector<16x32xf32>
    %88 = arith.addf %39, %87 : vector<16x32xf32>
    %c0_47 = arith.constant 0 : index
    %c0_48 = arith.constant 0 : index
    %89 = vector.load %arg15[%c0_47, %c0_48] : memref<1x32xf32, #tpu.memory_space<vmem>>, vector<1x32xf32>
    %90 = vector.broadcast %89 : vector<1x32xf32> to vector<16x32xf32>
    %91 = arith.addf %88, %90 : vector<16x32xf32>
    %c0_49 = arith.constant 0 : index
    %c0_50 = arith.constant 0 : index
    %c0_51 = arith.constant 0 : index
    %92 = vector.load %arg16[%c0_49, %c0_50, %c0_51] : memref<1x16x32xf32, #tpu.memory_space<vmem>>, vector<1x16x32xf32>
    %93 = vector.shape_cast %92 : vector<1x16x32xf32> to vector<16x32xf32>
    %94 = vector.shape_cast %91 : vector<16x32xf32> to vector<1x16x32xf32>
    tpu.vector_store %arg16[%c0_49, %c0_50, %c0_51], %94 {strides = array<i32>} : memref<1x16x32xf32, #tpu.memory_space<vmem>>, vector<1x16x32xf32>,
    return
  }
  func.func @transform_0(%arg0: i32, %arg1: i32) -> (i32, i32, i32) {
    %c0_i32 = arith.constant 0 : i32
    %c0_i32_0 = arith.constant 0 : i32
    %c0_i32_1 = arith.constant 0 : i32
    return %arg0, %c0_i32, %c0_i32_0 : i32, i32, i32
  }
  func.func @transform_1(%arg0: i32, %arg1: i32) -> (i32, i32, i32) {
    %c0_i32 = arith.constant 0 : i32
    %c0_i32_0 = arith.constant 0 : i32
    %c0_i32_1 = arith.constant 0 : i32
    return %arg0, %c0_i32, %c0_i32_0 : i32, i32, i32
  }
  func.func @transform_2(%arg0: i32, %arg1: i32) -> (i32, i32) {
    %c0_i32 = arith.constant 0 : i32
    %c0_i32_0 = arith.constant 0 : i32
    %c0_i32_1 = arith.constant 0 : i32
    return %c0_i32, %c0_i32_0 : i32, i32
  }
  func.func @transform_3(%arg0: i32, %arg1: i32) -> (i32, i32) {
    %c0_i32 = arith.constant 0 : i32
    %c0_i32_0 = arith.constant 0 : i32
    %c0_i32_1 = arith.constant 0 : i32
    return %c0_i32, %c0_i32_0 : i32, i32
  }
  func.func @transform_4(%arg0: i32, %arg1: i32) -> (i32, i32, i32) {
    %c0_i32 = arith.constant 0 : i32
    %c0_i32_0 = arith.constant 0 : i32
    %c0_i32_1 = arith.constant 0 : i32
    %c0_i32_2 = arith.constant 0 : i32
    return %c0_i32, %c0_i32_0, %c0_i32_1 : i32, i32, i32
  }
  func.func @transform_5(%arg0: i32, %arg1: i32) -> (i32, i32) {
    %c0_i32 = arith.constant 0 : i32
    %c0_i32_0 = arith.constant 0 : i32
    %c0_i32_1 = arith.constant 0 : i32
    return %c0_i32, %c0_i32_0 : i32, i32
  }
  func.func @transform_6(%arg0: i32, %arg1: i32) -> (i32, i32) {
    %c0_i32 = arith.constant 0 : i32
    %c0_i32_0 = arith.constant 0 : i32
    %c0_i32_1 = arith.constant 0 : i32
    return %c0_i32, %c0_i32_0 : i32, i32
  }
  func.func @transform_7(%arg0: i32, %arg1: i32) -> (i32, i32) {
    %c0_i32 = arith.constant 0 : i32
    %c0_i32_0 = arith.constant 0 : i32
    %c0_i32_1 = arith.constant 0 : i32
    return %c0_i32, %c0_i32_0 : i32, i32
  }
  func.func @transform_8(%arg0: i32, %arg1: i32) -> (i32, i32) {
    %c0_i32 = arith.constant 0 : i32
    %c0_i32_0 = arith.constant 0 : i32
    %c0_i32_1 = arith.constant 0 : i32
    return %c0_i32, %c0_i32_0 : i32, i32
  }
  func.func @transform_9(%arg0: i32, %arg1: i32) -> (i32, i32) {
    %c0_i32 = arith.constant 0 : i32
    %c0_i32_0 = arith.constant 0 : i32
    %c0_i32_1 = arith.constant 0 : i32
    return %c0_i32, %c0_i32_0 : i32, i32
  }
  func.func @transform_10(%arg0: i32, %arg1: i32) -> (i32, i32) {
    %c0_i32 = arith.constant 0 : i32
    %c0_i32_0 = arith.constant 0 : i32
    %c0_i32_1 = arith.constant 0 : i32
    return %c0_i32, %c0_i32_0 : i32, i32
  }
  func.func @transform_11(%arg0: i32, %arg1: i32) -> (i32, i32) {
    %c0_i32 = arith.constant 0 : i32
    %c0_i32_0 = arith.constant 0 : i32
    %c0_i32_1 = arith.constant 0 : i32
    return %c0_i32, %c0_i32_0 : i32, i32
  }
  func.func @transform_12(%arg0: i32, %arg1: i32) -> (i32, i32) {
    %c0_i32 = arith.constant 0 : i32
    %c0_i32_0 = arith.constant 0 : i32
    %c0_i32_1 = arith.constant 0 : i32
    return %c0_i32, %c0_i32_0 : i32, i32
  }
  func.func @transform_13(%arg0: i32, %arg1: i32) -> (i32, i32) {
    %c0_i32 = arith.constant 0 : i32
    %c0_i32_0 = arith.constant 0 : i32
    %c0_i32_1 = arith.constant 0 : i32
    return %c0_i32, %c0_i32_0 : i32, i32
  }
  func.func @transform_14(%arg0: i32, %arg1: i32) -> (i32, i32, i32) {
    %c0_i32 = arith.constant 0 : i32
    %c0_i32_0 = arith.constant 0 : i32
    return %arg0, %arg1, %c0_i32 : i32, i32, i32
  }
}

module attributes {stable_mosaic.version = 11 : i64} {
  func.func @transformer_block_kernel(%arg0: i32, %arg1: i32, %arg2: memref<1x16x32xf32, #tpu.memory_space<vmem>>, %arg3: memref<1x1x16xf32, #tpu.memory_space<vmem>>, %arg4: memref<32x96xbf16, #tpu.memory_space<vmem>>, %arg5: memref<1x96xf32, #tpu.memory_space<vmem>>, %arg6: memref<4x8x32xbf16, #tpu.memory_space<vmem>>, %arg7: memref<1x32xf32, #tpu.memory_space<vmem>>, %arg8: memref<1x32xf32, #tpu.memory_space<vmem>>, %arg9: memref<1x32xf32, #tpu.memory_space<vmem>>, %arg10: memref<1x32xf32, #tpu.memory_space<vmem>>, %arg11: memref<1x32xf32, #tpu.memory_space<vmem>>, %arg12: memref<32x128xbf16, #tpu.memory_space<vmem>>, %arg13: memref<1x128xf32, #tpu.memory_space<vmem>>, %arg14: memref<128x32xbf16, #tpu.memory_space<vmem>>, %arg15: memref<1x32xf32, #tpu.memory_space<vmem>>, %arg16: memref<1x16x32xf32, #tpu.memory_space<vmem>>, %arg17: memref<4x16x8xbf16, #tpu.memory_space<vmem>>, %arg18: memref<4x16x8xbf16, #tpu.memory_space<vmem>>, %arg19: memref<4x16x8xbf16, #tpu.memory_space<vmem>>) attributes {dimension_semantics = [#tpu.dimension_semantics<parallel>, #tpu.dimension_semantics<arbitrary>], iteration_bounds = array<i64: 2, 1>, scalar_prefetch = 0 : i64, scratch_operands = 3 : i64, tpu.core_type = #tpu.core_type<tc>, window_params = [{transform_indices = @transform_0, window_bounds = array<i64: 1, 16, 32>}, {transform_indices = @transform_1, window_bounds = array<i64: 1, 1, 16>}, {pipeline_mode = #tpu.pipeline_mode<synchronous>, transform_indices = @transform_2, window_bounds = array<i64: 32, 96>}, {pipeline_mode = #tpu.pipeline_mode<synchronous>, transform_indices = @transform_3, window_bounds = array<i64: 1, 96>}, {pipeline_mode = #tpu.pipeline_mode<synchronous>, transform_indices = @transform_4, window_bounds = array<i64: 4, 8, 32>}, {pipeline_mode = #tpu.pipeline_mode<synchronous>, transform_indices = @transform_5, window_bounds = array<i64: 1, 32>}, {pipeline_mode = #tpu.pipeline_mode<synchronous>, transform_indices = @transform_6, window_bounds = array<i64: 1, 32>}, {pipeline_mode = #tpu.pipeline_mode<synchronous>, transform_indices = @transform_7, window_bounds = array<i64: 1, 32>}, {pipeline_mode = #tpu.pipeline_mode<synchronous>, transform_indices = @transform_8, window_bounds = array<i64: 1, 32>}, {pipeline_mode = #tpu.pipeline_mode<synchronous>, transform_indices = @transform_9, window_bounds = array<i64: 1, 32>}, {pipeline_mode = #tpu.pipeline_mode<synchronous>, transform_indices = @transform_10, window_bounds = array<i64: 32, 128>}, {pipeline_mode = #tpu.pipeline_mode<synchronous>, transform_indices = @transform_11, window_bounds = array<i64: 1, 128>}, {pipeline_mode = #tpu.pipeline_mode<synchronous>, transform_indices = @transform_12, window_bounds = array<i64: 128, 32>}, {pipeline_mode = #tpu.pipeline_mode<synchronous>, transform_indices = @transform_13, window_bounds = array<i64: 1, 32>}, {transform_indices = @transform_14, window_bounds = array<i64: 1, 16, 32>}]} {
    %c0_i32 = arith.constant 0 : i32
    %0 = arith.cmpi eq, %arg1, %c0_i32 : i32
    %1 = arith.extui %0 : i1 to i32
    %c0_i32_0 = arith.constant 0 : i32
    %2 = arith.cmpi ne, %1, %c0_i32_0 : i32
    scf.if %2 {
      %c0_52 = arith.constant 0 : index
      %c0_53 = arith.constant 0 : index
      %c0_54 = arith.constant 0 : index
      %95 = vector.load %arg2[%c0_52, %c0_53, %c0_54] : memref<1x16x32xf32, #tpu.memory_space<vmem>>, vector<1x16x32xf32>
      %96 = vector.shape_cast %95 : vector<1x16x32xf32> to vector<16x32xf32>
      %c0_55 = arith.constant 0 : index
      %c0_56 = arith.constant 0 : index
      %97 = vector.load %arg8[%c0_55, %c0_56] : memref<1x32xf32, #tpu.memory_space<vmem>>, vector<1x32xf32>
      %c0_57 = arith.constant 0 : index
      %c0_58 = arith.constant 0 : index
      %98 = vector.load %arg9[%c0_57, %c0_58] : memref<1x32xf32, #tpu.memory_space<vmem>>, vector<1x32xf32>
      %cst_59 = arith.constant dense<0.000000e+00> : vector<16xf32>
      %99 = vector.multi_reduction <add>, %96, %cst_59 [1] : vector<16x32xf32> to vector<16xf32>
      %100 = vector.shape_cast %99 : vector<16xf32> to vector<16x1xf32>
      %cst_60 = arith.constant 3.200000e+01 : f32
      %101 = vector.broadcast %cst_60 : f32 to vector<16x1xf32>
      %102 = arith.divf %100, %101 : vector<16x1xf32>
      %103 = vector.broadcast %102 : vector<16x1xf32> to vector<16x32xf32>
      %104 = arith.subf %96, %103 : vector<16x32xf32>
      %105 = arith.mulf %104, %104 : vector<16x32xf32>
      %cst_61 = arith.constant dense<0.000000e+00> : vector<16xf32>
      %106 = vector.multi_reduction <add>, %105, %cst_61 [1] : vector<16x32xf32> to vector<16xf32>
      %107 = vector.shape_cast %106 : vector<16xf32> to vector<16x1xf32>
      %cst_62 = arith.constant 3.100000e+01 : f32
      %108 = vector.broadcast %cst_62 : f32 to vector<16x1xf32>
      %109 = arith.divf %107, %108 : vector<16x1xf32>
      %110 = math.sqrt %109 : vector<16x1xf32>
      %cst_63 = arith.constant 9.99999997E-7 : f32
      %111 = vector.broadcast %cst_63 : f32 to vector<16x1xf32>
      %112 = arith.addf %110, %111 : vector<16x1xf32>
      %cst_64 = arith.constant 1.000000e+00 : f32
      %113 = vector.broadcast %cst_64 : f32 to vector<16x1xf32>
      %114 = arith.divf %113, %112 : vector<16x1xf32>
      %115 = vector.broadcast %114 : vector<16x1xf32> to vector<16x32xf32>
      %116 = arith.mulf %104, %115 : vector<16x32xf32>
      %117 = vector.broadcast %97 : vector<1x32xf32> to vector<16x32xf32>
      %118 = arith.mulf %117, %116 : vector<16x32xf32>
      %119 = vector.broadcast %98 : vector<1x32xf32> to vector<16x32xf32>
      %120 = arith.addf %118, %119 : vector<16x32xf32>
      %121 = arith.truncf %120 : vector<16x32xf32> to vector<16x32xbf16>
      %c0_65 = arith.constant 0 : index
      %c0_66 = arith.constant 0 : index
      %122 = vector.load %arg4[%c0_65, %c0_66] : memref<32x96xbf16, #tpu.memory_space<vmem>>, vector<32x96xbf16>
      %cst_67 = arith.constant dense<0.000000e+00> : vector<16x96xf32>
      %123 = tpu.matmul %121, %122, %cst_67 {dimension_numbers = #tpu.dot_dimension_numbers<[1], [0], [0], [1], [0, 0, 1, 1], [], []>} : vector<16x32xbf16>, vector<32x96xbf16>, vector<16x96xf32> -> vector<16x96xf32>
      %c0_68 = arith.constant 0 : index
      %c0_69 = arith.constant 0 : index
      %124 = vector.load %arg5[%c0_68, %c0_69] : memref<1x96xf32, #tpu.memory_space<vmem>>, vector<1x96xf32>
      %125 = vector.broadcast %124 : vector<1x96xf32> to vector<16x96xf32>
      %126 = arith.addf %123, %125 : vector<16x96xf32>
      %127 = vector.extract_strided_slice %126 {offsets = [0, 0], sizes = [16, 32], strides = [1, 1]} : vector<16x96xf32> to vector<16x32xf32>
      %128 = vector.shape_cast %127 : vector<16x32xf32> to vector<16x4x8xf32>
      %129 = tpu.transpose %128, [1, 0, 2] : vector<16x4x8xf32> -> vector<4x16x8xf32>
      %130 = arith.truncf %129 : vector<4x16x8xf32> to vector<4x16x8xbf16>
      %c0_70 = arith.constant 0 : index
      %c0_71 = arith.constant 0 : index
      %c0_72 = arith.constant 0 : index
      %131 = vector.load %arg17[%c0_70, %c0_71, %c0_72] : memref<4x16x8xbf16, #tpu.memory_space<vmem>>, vector<4x16x8xbf16>
      tpu.vector_store %arg17[%c0_70, %c0_71, %c0_72], %130 {strides = array<i32>} : memref<4x16x8xbf16, #tpu.memory_space<vmem>>, vector<4x16x8xbf16>,
      %132 = vector.extract_strided_slice %126 {offsets = [0, 32], sizes = [16, 32], strides = [1, 1]} : vector<16x96xf32> to vector<16x32xf32>
      %133 = vector.shape_cast %132 : vector<16x32xf32> to vector<16x4x8xf32>
      %134 = tpu.transpose %133, [1, 0, 2] : vector<16x4x8xf32> -> vector<4x16x8xf32>
      %135 = arith.truncf %134 : vector<4x16x8xf32> to vector<4x16x8xbf16>
      %c0_73 = arith.constant 0 : index
      %c0_74 = arith.constant 0 : index
      %c0_75 = arith.constant 0 : index
      %136 = vector.load %arg18[%c0_73, %c0_74, %c0_75] : memref<4x16x8xbf16, #tpu.memory_space<vmem>>, vector<4x16x8xbf16>
      tpu.vector_store %arg18[%c0_73, %c0_74, %c0_75], %135 {strides = array<i32>} : memref<4x16x8xbf16, #tpu.memory_space<vmem>>, vector<4x16x8xbf16>,
      %137 = vector.extract_strided_slice %126 {offsets = [0, 64], sizes = [16, 32], strides = [1, 1]} : vector<16x96xf32> to vector<16x32xf32>
      %138 = vector.shape_cast %137 : vector<16x32xf32> to vector<16x4x8xf32>
      %139 = tpu.transpose %138, [1, 0, 2] : vector<16x4x8xf32> -> vector<4x16x8xf32>
      %140 = arith.truncf %139 : vector<4x16x8xf32> to vector<4x16x8xbf16>
      %c0_76 = arith.constant 0 : index
      %c0_77 = arith.constant 0 : index
      %c0_78 = arith.constant 0 : index
      %141 = vector.load %arg19[%c0_76, %c0_77, %c0_78] : memref<4x16x8xbf16, #tpu.memory_space<vmem>>, vector<4x16x8xbf16>
      tpu.vector_store %arg19[%c0_76, %c0_77, %c0_78], %140 {strides = array<i32>} : memref<4x16x8xbf16, #tpu.memory_space<vmem>>, vector<4x16x8xbf16>,
    } else {
    }
    %c16_i32 = arith.constant 16 : i32
    %3 = arith.muli %arg1, %c16_i32 : i32
    %4 = tpu.assume_multiple %3, 16 : i32
    %c0 = arith.constant 0 : index
    %5 = arith.index_cast %4 : i32 to index
    %c0_1 = arith.constant 0 : index
    %6 = vector.load %arg2[%c0, %5, %c0_1] : memref<1x16x32xf32, #tpu.memory_space<vmem>>, vector<1x16x32xf32>
    %7 = vector.shape_cast %6 : vector<1x16x32xf32> to vector<16x32xf32>
    %c0_2 = arith.constant 0 : index
    %8 = arith.index_cast %4 : i32 to index
    %c0_3 = arith.constant 0 : index
    %9 = vector.load %arg17[%c0_2, %8, %c0_3] : memref<4x16x8xbf16, #tpu.memory_space<vmem>>, vector<4x16x8xbf16>
    %c0_4 = arith.constant 0 : index
    %c0_5 = arith.constant 0 : index
    %c0_6 = arith.constant 0 : index
    %10 = vector.load %arg18[%c0_4, %c0_5, %c0_6] : memref<4x16x8xbf16, #tpu.memory_space<vmem>>, vector<4x16x8xbf16>
    "tpu.trace_start"() <{level = 10 : i32, message = "hqd,hkd->hqk"}> : () -> ()
    %cst = arith.constant dense<0.000000e+00> : vector<4x16x16xf32>
    %11 = tpu.matmul %9, %10, %cst {dimension_numbers = #tpu.dot_dimension_numbers<[2], [2], [1], [1], [0, 0, 0, 1, 1, 1], [0], [0]>} : vector<4x16x8xbf16>, vector<4x16x8xbf16>, vector<4x16x16xf32> -> vector<4x16x16xf32>
    "tpu.trace_stop"() : () -> ()
    %cst_7 = arith.constant 0.353553385 : f32
    %12 = vector.broadcast %cst_7 : f32 to vector<4x16x16xf32>
    %13 = arith.mulf %11, %12 : vector<4x16x16xf32>
    %c0_8 = arith.constant 0 : index
    %c0_9 = arith.constant 0 : index
    %c0_10 = arith.constant 0 : index
    %14 = vector.load %arg3[%c0_8, %c0_9, %c0_10] : memref<1x1x16xf32, #tpu.memory_space<vmem>>, vector<1x1x16xf32>
    %15 = vector.shape_cast %14 : vector<1x1x16xf32> to vector<1x16xf32>
    %16 = vector.shape_cast %15 : vector<1x16xf32> to vector<1x1x16xf32>
    %17 = vector.broadcast %16 : vector<1x1x16xf32> to vector<4x16x16xf32>
    %18 = arith.addf %13, %17 : vector<4x16x16xf32>
    %cst_11 = arith.constant dense<0xFF800000> : vector<4x16xf32>
    %19 = vector.multi_reduction <maximumf>, %18, %cst_11 [2] : vector<4x16x16xf32> to vector<4x16xf32>
    %20 = vector.shape_cast %19 : vector<4x16xf32> to vector<4x16x1xf32>
    %21 = vector.broadcast %20 : vector<4x16x1xf32> to vector<4x16x16xf32>
    %22 = arith.subf %18, %21 : vector<4x16x16xf32>
    %23 = math.exp %22 : vector<4x16x16xf32>
    %cst_12 = arith.constant dense<0.000000e+00> : vector<4x16xf32>
    %24 = vector.multi_reduction <add>, %23, %cst_12 [2] : vector<4x16x16xf32> to vector<4x16xf32>
    %25 = vector.shape_cast %24 : vector<4x16xf32> to vector<4x16x1xf32>
    %26 = tpu.reciprocal %25 {approx = true} : vector<4x16x1xf32> -> vector<4x16x1xf32>
    %27 = vector.broadcast %26 : vector<4x16x1xf32> to vector<4x16x16xf32>
    %28 = arith.mulf %23, %27 : vector<4x16x16xf32>
    %29 = arith.truncf %28 : vector<4x16x16xf32> to vector<4x16x16xbf16>
    %c0_13 = arith.constant 0 : index
    %c0_14 = arith.constant 0 : index
    %c0_15 = arith.constant 0 : index
    %30 = vector.load %arg19[%c0_13, %c0_14, %c0_15] : memref<4x16x8xbf16, #tpu.memory_space<vmem>>, vector<4x16x8xbf16>
    "tpu.trace_start"() <{level = 10 : i32, message = "hqk,hkd->hqd"}> : () -> ()
    %cst_16 = arith.constant dense<0.000000e+00> : vector<4x16x8xf32>
    %31 = tpu.matmul %29, %30, %cst_16 {dimension_numbers = #tpu.dot_dimension_numbers<[2], [1], [1], [2], [0, 0, 0, 1, 1, 2], [0], [0]>} : vector<4x16x16xbf16>, vector<4x16x8xbf16>, vector<4x16x8xf32> -> vector<4x16x8xf32>
    "tpu.trace_stop"() : () -> ()
    %32 = arith.truncf %31 : vector<4x16x8xf32> to vector<4x16x8xbf16>
    %c0_17 = arith.constant 0 : index
    %c0_18 = arith.constant 0 : index
    %c0_19 = arith.constant 0 : index
    %33 = vector.load %arg6[%c0_17, %c0_18, %c0_19] : memref<4x8x32xbf16, #tpu.memory_space<vmem>>, vector<4x8x32xbf16>
    "tpu.trace_start"() <{level = 10 : i32, message = "hqd,hdo->hqo"}> : () -> ()
    %cst_20 = arith.constant dense<0.000000e+00> : vector<4x16x32xf32>
    %34 = tpu.matmul %32, %33, %cst_20 {dimension_numbers = #tpu.dot_dimension_numbers<[2], [1], [1], [2], [0, 0, 0, 1, 1, 2], [0], [0]>} : vector<4x16x8xbf16>, vector<4x8x32xbf16>, vector<4x16x32xf32> -> vector<4x16x32xf32>
    "tpu.trace_stop"() : () -> ()
    %cst_21 = arith.constant dense<0.000000e+00> : vector<16x32xf32>
    %35 = vector.multi_reduction <add>, %34, %cst_21 [0] : vector<4x16x32xf32> to vector<16x32xf32>
    %c0_22 = arith.constant 0 : index
    %c0_23 = arith.constant 0 : index
    %36 = vector.load %arg7[%c0_22, %c0_23] : memref<1x32xf32, #tpu.memory_space<vmem>>, vector<1x32xf32>
    %37 = vector.broadcast %36 : vector<1x32xf32> to vector<16x32xf32>
    %38 = arith.addf %35, %37 : vector<16x32xf32>
    %39 = arith.addf %7, %38 : vector<16x32xf32>
    %c0_24 = arith.constant 0 : index
    %c0_25 = arith.constant 0 : index
    %40 = vector.load %arg10[%c0_24, %c0_25] : memref<1x32xf32, #tpu.memory_space<vmem>>, vector<1x32xf32>
    %c0_26 = arith.constant 0 : index
    %c0_27 = arith.constant 0 : index
    %41 = vector.load %arg11[%c0_26, %c0_27] : memref<1x32xf32, #tpu.memory_space<vmem>>, vector<1x32xf32>
    %cst_28 = arith.constant dense<0.000000e+00> : vector<16xf32>
    %42 = vector.multi_reduction <add>, %39, %cst_28 [1] : vector<16x32xf32> to vector<16xf32>
    %43 = vector.shape_cast %42 : vector<16xf32> to vector<16x1xf32>
    %cst_29 = arith.constant 3.200000e+01 : f32
    %44 = vector.broadcast %cst_29 : f32 to vector<16x1xf32>
    %45 = arith.divf %43, %44 : vector<16x1xf32>
    %46 = vector.broadcast %45 : vector<16x1xf32> to vector<16x32xf32>
    %47 = arith.subf %39, %46 : vector<16x32xf32>
    %48 = arith.mulf %47, %47 : vector<16x32xf32>
    %cst_30 = arith.constant dense<0.000000e+00> : vector<16xf32>
    %49 = vector.multi_reduction <add>, %48, %cst_30 [1] : vector<16x32xf32> to vector<16xf32>
    %50 = vector.shape_cast %49 : vector<16xf32> to vector<16x1xf32>
    %cst_31 = arith.constant 3.100000e+01 : f32
    %51 = vector.broadcast %cst_31 : f32 to vector<16x1xf32>
    %52 = arith.divf %50, %51 : vector<16x1xf32>
    %53 = math.sqrt %52 : vector<16x1xf32>
    %cst_32 = arith.constant 9.99999997E-7 : f32
    %54 = vector.broadcast %cst_32 : f32 to vector<16x1xf32>
    %55 = arith.addf %53, %54 : vector<16x1xf32>
    %cst_33 = arith.constant 1.000000e+00 : f32
    %56 = vector.broadcast %cst_33 : f32 to vector<16x1xf32>
    %57 = arith.divf %56, %55 : vector<16x1xf32>
    %58 = vector.broadcast %57 : vector<16x1xf32> to vector<16x32xf32>
    %59 = arith.mulf %47, %58 : vector<16x32xf32>
    %60 = vector.broadcast %40 : vector<1x32xf32> to vector<16x32xf32>
    %61 = arith.mulf %60, %59 : vector<16x32xf32>
    %62 = vector.broadcast %41 : vector<1x32xf32> to vector<16x32xf32>
    %63 = arith.addf %61, %62 : vector<16x32xf32>
    %64 = arith.truncf %63 : vector<16x32xf32> to vector<16x32xbf16>
    %cst_34 = arith.constant 0.000000e+00 : f32
    %65 = vector.broadcast %cst_34 : f32 to vector<16x32xf32>
    %c0_35 = arith.constant 0 : index
    %c0_36 = arith.constant 0 : index
    %66 = vector.load %arg12[%c0_35, %c0_36] : memref<32x128xbf16, #tpu.memory_space<vmem>>, vector<32x128xbf16>
    %cst_37 = arith.constant dense<0.000000e+00> : vector<16x128xf32>
    %67 = tpu.matmul %64, %66, %cst_37 {dimension_numbers = #tpu.dot_dimension_numbers<[1], [0], [0], [1], [0, 0, 1, 1], [], []>} : vector<16x32xbf16>, vector<32x128xbf16>, vector<16x128xf32> -> vector<16x128xf32>
    %c0_38 = arith.constant 0 : index
    %c0_39 = arith.constant 0 : index
    %68 = vector.load %arg13[%c0_38, %c0_39] : memref<1x128xf32, #tpu.memory_space<vmem>>, vector<1x128xf32>
    %69 = vector.broadcast %68 : vector<1x128xf32> to vector<16x128xf32>
    %70 = arith.addf %67, %69 : vector<16x128xf32>
    %cst_40 = arith.constant 5.000000e-01 : f32
    %71 = vector.broadcast %cst_40 : f32 to vector<16x128xf32>
    %72 = arith.mulf %71, %70 : vector<16x128xf32>
    %cst_41 = arith.constant 4.471500e-02 : f32
    %73 = vector.broadcast %cst_41 : f32 to vector<16x128xf32>
    %74 = arith.mulf %73, %70 : vector<16x128xf32>
    %75 = arith.mulf %74, %70 : vector<16x128xf32>
    %76 = arith.mulf %75, %70 : vector<16x128xf32>
    %77 = arith.addf %70, %76 : vector<16x128xf32>
    %cst_42 = arith.constant 0.797884583 : f32
    %78 = vector.broadcast %cst_42 : f32 to vector<16x128xf32>
    %79 = arith.mulf %78, %77 : vector<16x128xf32>
    %80 = math.tanh %79 : vector<16x128xf32>
    %cst_43 = arith.constant 1.000000e+00 : f32
    %81 = vector.broadcast %cst_43 : f32 to vector<16x128xf32>
    %82 = arith.addf %81, %80 : vector<16x128xf32>
    %83 = arith.mulf %72, %82 : vector<16x128xf32>
    %84 = arith.truncf %83 : vector<16x128xf32> to vector<16x128xbf16>
    %c0_44 = arith.constant 0 : index
    %c0_45 = arith.constant 0 : index
    %85 = vector.load %arg14[%c0_44, %c0_45] : memref<128x32xbf16, #tpu.memory_space<vmem>>, vector<128x32xbf16>
    %cst_46 = arith.constant dense<0.000000e+00> : vector<16x32xf32>
    %86 = tpu.matmul %84, %85, %cst_46 {dimension_numbers = #tpu.dot_dimension_numbers<[1], [0], [0], [1], [0, 0, 1, 1], [], []>} : vector<16x128xbf16>, vector<128x32xbf16>, vector<16x32xf32> -> vector<16x32xf32>
    %87 = arith.addf %65, %86 : vector<16x32xf32>
    %88 = arith.addf %39, %87 : vector<16x32xf32>
    %c0_47 = arith.constant 0 : index
    %c0_48 = arith.constant 0 : index
    %89 = vector.load %arg15[%c0_47, %c0_48] : memref<1x32xf32, #tpu.memory_space<vmem>>, vector<1x32xf32>
    %90 = vector.broadcast %89 : vector<1x32xf32> to vector<16x32xf32>
    %91 = arith.addf %88, %90 : vector<16x32xf32>
    %c0_49 = arith.constant 0 : index
    %c0_50 = arith.constant 0 : index
    %c0_51 = arith.constant 0 : index
    %92 = vector.load %arg16[%c0_49, %c0_50, %c0_51] : memref<1x16x32xf32, #tpu.memory_space<vmem>>, vector<1x16x32xf32>
    %93 = vector.shape_cast %92 : vector<1x16x32xf32> to vector<16x32xf32>
    %94 = vector.shape_cast %91 : vector<16x32xf32> to vector<1x16x32xf32>
    tpu.vector_store %arg16[%c0_49, %c0_50, %c0_51], %94 {strides = array<i32>} : memref<1x16x32xf32, #tpu.memory_space<vmem>>, vector<1x16x32xf32>,
    return
  }
  func.func @transform_0(%arg0: i32, %arg1: i32) -> (i32, i32, i32) {
    %c0_i32 = arith.constant 0 : i32
    %c0_i32_0 = arith.constant 0 : i32
    %c0_i32_1 = arith.constant 0 : i32
    return %arg0, %c0_i32, %c0_i32_0 : i32, i32, i32
  }
  func.func @transform_1(%arg0: i32, %arg1: i32) -> (i32, i32, i32) {
    %c0_i32 = arith.constant 0 : i32
    %c0_i32_0 = arith.constant 0 : i32
    %c0_i32_1 = arith.constant 0 : i32
    return %arg0, %c0_i32, %c0_i32_0 : i32, i32, i32
  }
  func.func @transform_2(%arg0: i32, %arg1: i32) -> (i32, i32) {
    %c0_i32 = arith.constant 0 : i32
    %c0_i32_0 = arith.constant 0 : i32
    %c0_i32_1 = arith.constant 0 : i32
    return %c0_i32, %c0_i32_0 : i32, i32
  }
  func.func @transform_3(%arg0: i32, %arg1: i32) -> (i32, i32) {
    %c0_i32 = arith.constant 0 : i32
    %c0_i32_0 = arith.constant 0 : i32
    %c0_i32_1 = arith.constant 0 : i32
    return %c0_i32, %c0_i32_0 : i32, i32
  }
  func.func @transform_4(%arg0: i32, %arg1: i32) -> (i32, i32, i32) {
    %c0_i32 = arith.constant 0 : i32
    %c0_i32_0 = arith.constant 0 : i32
    %c0_i32_1 = arith.constant 0 : i32
    %c0_i32_2 = arith.constant 0 : i32
    return %c0_i32, %c0_i32_0, %c0_i32_1 : i32, i32, i32
  }
  func.func @transform_5(%arg0: i32, %arg1: i32) -> (i32, i32) {
    %c0_i32 = arith.constant 0 : i32
    %c0_i32_0 = arith.constant 0 : i32
    %c0_i32_1 = arith.constant 0 : i32
    return %c0_i32, %c0_i32_0 : i32, i32
  }
  func.func @transform_6(%arg0: i32, %arg1: i32) -> (i32, i32) {
    %c0_i32 = arith.constant 0 : i32
    %c0_i32_0 = arith.constant 0 : i32
    %c0_i32_1 = arith.constant 0 : i32
    return %c0_i32, %c0_i32_0 : i32, i32
  }
  func.func @transform_7(%arg0: i32, %arg1: i32) -> (i32, i32) {
    %c0_i32 = arith.constant 0 : i32
    %c0_i32_0 = arith.constant 0 : i32
    %c0_i32_1 = arith.constant 0 : i32
    return %c0_i32, %c0_i32_0 : i32, i32
  }
  func.func @transform_8(%arg0: i32, %arg1: i32) -> (i32, i32) {
    %c0_i32 = arith.constant 0 : i32
    %c0_i32_0 = arith.constant 0 : i32
    %c0_i32_1 = arith.constant 0 : i32
    return %c0_i32, %c0_i32_0 : i32, i32
  }
  func.func @transform_9(%arg0: i32, %arg1: i32) -> (i32, i32) {
    %c0_i32 = arith.constant 0 : i32
    %c0_i32_0 = arith.constant 0 : i32
    %c0_i32_1 = arith.constant 0 : i32
    return %c0_i32, %c0_i32_0 : i32, i32
  }
  func.func @transform_10(%arg0: i32, %arg1: i32) -> (i32, i32) {
    %c0_i32 = arith.constant 0 : i32
    %c0_i32_0 = arith.constant 0 : i32
    %c0_i32_1 = arith.constant 0 : i32
    return %c0_i32, %c0_i32_0 : i32, i32
  }
  func.func @transform_11(%arg0: i32, %arg1: i32) -> (i32, i32) {
    %c0_i32 = arith.constant 0 : i32
    %c0_i32_0 = arith.constant 0 : i32
    %c0_i32_1 = arith.constant 0 : i32
    return %c0_i32, %c0_i32_0 : i32, i32
  }
  func.func @transform_12(%arg0: i32, %arg1: i32) -> (i32, i32) {
    %c0_i32 = arith.constant 0 : i32
    %c0_i32_0 = arith.constant 0 : i32
    %c0_i32_1 = arith.constant 0 : i32
    return %c0_i32, %c0_i32_0 : i32, i32
  }
  func.func @transform_13(%arg0: i32, %arg1: i32) -> (i32, i32) {
    %c0_i32 = arith.constant 0 : i32
    %c0_i32_0 = arith.constant 0 : i32
    %c0_i32_1 = arith.constant 0 : i32
    return %c0_i32, %c0_i32_0 : i32, i32
  }
  func.func @transform_14(%arg0: i32, %arg1: i32) -> (i32, i32, i32) {
    %c0_i32 = arith.constant 0 : i32
    %c0_i32_0 = arith.constant 0 : i32
    return %arg0, %arg1, %c0_i32 : i32, i32, i32
  }
}

</mosaic_0001>

<llo_original>
// kernel: tpu_custom_call.1
$region0: #{tpu_custom_call.1}
  #allocation0 [shape = 'u32[]', space=smem, size = 0x4, offset = 0x4, fixed_abs, tag = 'smem constant byte address 0x4 - core index']
  #allocation1 [shape = 'u32[144,128]{1,0:T(1,128)}', space=vmem, size = 0x12000, scoped, tag = 'internal scratch']
  #allocation2 [shape = 'bf16[4,16,8]{2,1,0:T(16,128)(2,1)}', space=vmem, size = 0x4000, scoped, tag = 'scratch operand']
  #allocation3 [shape = 'bf16[4,16,8]{2,1,0:T(16,128)(2,1)}', space=vmem, size = 0x4000, scoped, tag = 'scratch operand']
  #allocation4 [shape = 'bf16[4,16,8]{2,1,0:T(16,128)(2,1)}', space=vmem, size = 0x4000, scoped, tag = 'scratch operand']
  %s0 = inlined_call_operand.vmem [shape: f32[2,16,32], index: 0, kind: input, shape index: {}]
  %s1 = inlined_call_operand.vmem [shape: f32[2,1,16], index: 1, kind: input, shape index: {}]
  %s2 = inlined_call_operand.vmem [shape: bf16[32,96], index: 2, kind: input, shape index: {}]
  %s3 = inlined_call_operand.vmem [shape: f32[1,96], index: 3, kind: input, shape index: {}]
  %s4 = inlined_call_operand.vmem [shape: bf16[4,8,32], index: 4, kind: input, shape index: {}]
  %s5 = inlined_call_operand.vmem [shape: f32[1,32], index: 5, kind: input, shape index: {}]
  %s6 = inlined_call_operand.vmem [shape: f32[1,32], index: 6, kind: input, shape index: {}]
  %s7 = inlined_call_operand.vmem [shape: f32[1,32], index: 7, kind: input, shape index: {}]
  %s8 = inlined_call_operand.vmem [shape: f32[1,32], index: 8, kind: input, shape index: {}]
  %s9 = inlined_call_operand.vmem [shape: f32[1,32], index: 9, kind: input, shape index: {}]
  %s10 = inlined_call_operand.vmem [shape: bf16[32,128], index: 10, kind: input, shape index: {}]
  %s11 = inlined_call_operand.vmem [shape: f32[1,128], index: 11, kind: input, shape index: {}]
  %s12 = inlined_call_operand.vmem [shape: bf16[128,32], index: 12, kind: input, shape index: {}]
  %s13 = inlined_call_operand.vmem [shape: f32[1,32], index: 13, kind: input, shape index: {}]
  %s14 = inlined_call_operand.hbm [shape: f32[2,16,32], index: 14, kind: output, shape index: {}]
  %s15 = sld [smem:[#allocation0]]
  $region93: #{tpu_custom_call.1} parent=0
    _
  %s17 = ssub.s32 1, %s15
  %s18 = scalar_select 0, %s17, %s15
  $region1: #{tpu_custom_call.1} parent=0
    #allocation5 [shape = 'u8[16384]{0}', space=vmem, size = 0x4000, scoped, tag = 'output window, operand 0']
    #allocation6 [shape = 's32[2]{0}', space=sflag, size = 0x8, scoped, tag = 'scoped memory for tpu_custom_call.1']
    %19 = vsyncpa [#allocation6], 0
    %s20 = scalar_lea.sflag [#allocation6], 1
    %21 = vsyncpa %s20, 0
    loop: start=0, step=1, limit=4
    $region2: #{tpu_custom_call.1} parent=1 // loop_pre_header
      _
    $region3: #{tpu_custom_call.1} parent=1 // loop_header
      %s23 = sphi 0, %s27
      %p24 = scmp.ge.s32.totalorder %s23, 4
      %s30 = sphi 0, %s42
      %s31 = sphi 0, %s38
      %s32 = sphi 0, %s30
      %s33 = sphi 0, %s31
      %s34 = sphi 0, %s32
      %s35 = sphi 0, %s33
      %s45 = sphi 0, %s47
      %s48 = sphi 0, %s45
      %s49 = sphi 0, %s48
      %s65 = sphi 0, %s49
      %s71 = sphi 0, %s73
      %s74 = sphi 0, %s71
      %s75 = sphi 0, %s74
      %s91 = sphi 0, %s75
      %s95 = sphi 0, %s95
      %s97 = sphi 0, %s95
      %s98 = sphi 0, %s97
      %s112 = sphi 0, %s98
      %s116 = sphi 0, %s116
      %s118 = sphi 0, %s116
      %s119 = sphi 0, %s118
      %s133 = sphi 0, %s119
      %s137 = sphi 0, %s137
      %s139 = sphi 0, %s137
      %s140 = sphi 0, %s139
      %s154 = sphi 0, %s140
      %s158 = sphi 0, %s158
      %s160 = sphi 0, %s158
      %s161 = sphi 0, %s160
      %s175 = sphi 0, %s161
      %s179 = sphi 0, %s179
      %s181 = sphi 0, %s179
      %s182 = sphi 0, %s181
      %s196 = sphi 0, %s182
      %s200 = sphi 0, %s200
      %s202 = sphi 0, %s200
      %s203 = sphi 0, %s202
      %s217 = sphi 0, %s203
      %s221 = sphi 0, %s221
      %s223 = sphi 0, %s221
      %s224 = sphi 0, %s223
      %s238 = sphi 0, %s224
      %s242 = sphi 0, %s242
      %s244 = sphi 0, %s242
      %s245 = sphi 0, %s244
      %s259 = sphi 0, %s245
      %s263 = sphi 0, %s263
      %s265 = sphi 0, %s263
      %s266 = sphi 0, %s265
      %s280 = sphi 0, %s266
      %s284 = sphi 0, %s284
      %s286 = sphi 0, %s284
      %s287 = sphi 0, %s286
      %s301 = sphi 0, %s287
      %s305 = sphi 0, %s305
      %s307 = sphi 0, %s305
      %s308 = sphi 0, %s307
      %s322 = sphi 0, %s308
      %s326 = sphi 0, %s326
      %s328 = sphi 0, %s326
      %s329 = sphi 0, %s328
      %s343 = sphi 0, %s329
      %s351 = sphi 0, %s353
      %s354 = sphi 0, %s351
      %s355 = sphi 0, %s354
      %s371 = sphi 0, %s355
    $region4: #{tpu_custom_call.1} parent=1 // loop_header_branch
      %26 = sbr.rel (%p24) target = $region8
    $region5: #{tpu_custom_call.1} parent=1 // loop_body
      %s28 = ssub.s32 %s23, 1
      %s29 = ssub.s32 %s23, 2
      %s36 = sadd.s32 1, %s31
      %p37 = scmp.ge.s32.totalorder %s36, 1
      %s38 = scalar_select %p37, 0, %s36
      %s39 = sadd.s32 1, %s30
      %s40 = scalar_select %p37, %s39, %s30
      %p41 = scmp.ge.s32.totalorder %s40, 2
      %s42 = scalar_select %p41, 0, %s40
      %s43 = ssub.s32 %s30, %s42
      %p44 = scmp.eq.s32.totalorder %s43, 0
      %s46 = sadd.s32 %s45, 1
      %s47 = scalar_select %p44, %s45, %s46
      %p50 = pneg %p44
      %p51 = scmp.eq.s32.totalorder %s23, 1
      %p52 = por %p50, %p51
      %p53 = scmp.ne.s32.totalorder %s45, %s48
      %p54 = scmp.eq.s32.totalorder %s23, 0
      %p55 = por %p53, %p54
      %p56 = scmp.ne.s32.totalorder %s45, %s48
      %p57 = scmp.eq.s32.totalorder %s28, 1
      %p58 = por %p56, %p57
      %p59 = scmp.ne.s32.totalorder %s48, %s49
      %p60 = scmp.eq.s32.totalorder %s28, 0
      %p61 = por %p59, %p60
      %p62 = scmp.ne.s32.totalorder %s48, %s49
      %p63 = scmp.eq.s32.totalorder %s29, 1
      %p64 = por %p62, %p63
      %p66 = scmp.ne.s32.totalorder %s49, %s65
      %p67 = scmp.eq.s32.totalorder %s29, 0
      %p68 = por %p66, %p67
      %s69 = ssub.s32 %s30, %s42
      %p70 = scmp.eq.s32.totalorder %s69, 0
      %s72 = sadd.s32 %s71, 1
      %s73 = scalar_select %p70, %s71, %s72
      %p76 = pneg %p70
      %p77 = scmp.eq.s32.totalorder %s23, 1
      %p78 = por %p76, %p77
      %p79 = scmp.ne.s32.totalorder %s71, %s74
      %p80 = scmp.eq.s32.totalorder %s23, 0
      %p81 = por %p79, %p80
      %p82 = scmp.ne.s32.totalorder %s71, %s74
      %p83 = scmp.eq.s32.totalorder %s28, 1
      %p84 = por %p82, %p83
      %p85 = scmp.ne.s32.totalorder %s74, %s75
      %p86 = scmp.eq.s32.totalorder %s28, 0
      %p87 = por %p85, %p86
      %p88 = scmp.ne.s32.totalorder %s74, %s75
      %p89 = scmp.eq.s32.totalorder %s29, 1
      %p90 = por %p88, %p89
      %p92 = scmp.ne.s32.totalorder %s75, %s91
      %p93 = scmp.eq.s32.totalorder %s29, 0
      %p94 = por %p92, %p93
      %s96 = sadd.s32 %s95, 1
      %p99 = scmp.eq.s32.totalorder %s23, 1
      %p100 = scmp.ne.s32.totalorder %s95, %s97
      %p101 = scmp.eq.s32.totalorder %s23, 0
      %p102 = por %p100, %p101
      %p103 = scmp.ne.s32.totalorder %s95, %s97
      %p104 = scmp.eq.s32.totalorder %s28, 1
      %p105 = por %p103, %p104
      %p106 = scmp.ne.s32.totalorder %s97, %s98
      %p107 = scmp.eq.s32.totalorder %s28, 0
      %p108 = por %p106, %p107
      %p109 = scmp.ne.s32.totalorder %s97, %s98
      %p110 = scmp.eq.s32.totalorder %s29, 1
      %p111 = por %p109, %p110
      %p113 = scmp.ne.s32.totalorder %s98, %s112
      %p114 = scmp.eq.s32.totalorder %s29, 0
      %p115 = por %p113, %p114
      %s117 = sadd.s32 %s116, 1
      %p120 = scmp.eq.s32.totalorder %s23, 1
      %p121 = scmp.ne.s32.totalorder %s116, %s118
      %p122 = scmp.eq.s32.totalorder %s23, 0
      %p123 = por %p121, %p122
      %p124 = scmp.ne.s32.totalorder %s116, %s118
      %p125 = scmp.eq.s32.totalorder %s28, 1
      %p126 = por %p124, %p125
      %p127 = scmp.ne.s32.totalorder %s118, %s119
      %p128 = scmp.eq.s32.totalorder %s28, 0
      %p129 = por %p127, %p128
      %p130 = scmp.ne.s32.totalorder %s118, %s119
      %p131 = scmp.eq.s32.totalorder %s29, 1
      %p132 = por %p130, %p131
      %p134 = scmp.ne.s32.totalorder %s119, %s133
      %p135 = scmp.eq.s32.totalorder %s29, 0
      %p136 = por %p134, %p135
      %s138 = sadd.s32 %s137, 1
      %p141 = scmp.eq.s32.totalorder %s23, 1
      %p142 = scmp.ne.s32.totalorder %s137, %s139
      %p143 = scmp.eq.s32.totalorder %s23, 0
      %p144 = por %p142, %p143
      %p145 = scmp.ne.s32.totalorder %s137, %s139
      %p146 = scmp.eq.s32.totalorder %s28, 1
      %p147 = por %p145, %p146
      %p148 = scmp.ne.s32.totalorder %s139, %s140
      %p149 = scmp.eq.s32.totalorder %s28, 0
      %p150 = por %p148, %p149
      %p151 = scmp.ne.s32.totalorder %s139, %s140
      %p152 = scmp.eq.s32.totalorder %s29, 1
      %p153 = por %p151, %p152
      %p155 = scmp.ne.s32.totalorder %s140, %s154
      %p156 = scmp.eq.s32.totalorder %s29, 0
      %p157 = por %p155, %p156
      %s159 = sadd.s32 %s158, 1
      %p162 = scmp.eq.s32.totalorder %s23, 1
      %p163 = scmp.ne.s32.totalorder %s158, %s160
      %p164 = scmp.eq.s32.totalorder %s23, 0
      %p165 = por %p163, %p164
      %p166 = scmp.ne.s32.totalorder %s158, %s160
      %p167 = scmp.eq.s32.totalorder %s28, 1
      %p168 = por %p166, %p167
      %p169 = scmp.ne.s32.totalorder %s160, %s161
      %p170 = scmp.eq.s32.totalorder %s28, 0
      %p171 = por %p169, %p170
      %p172 = scmp.ne.s32.totalorder %s160, %s161
      %p173 = scmp.eq.s32.totalorder %s29, 1
      %p174 = por %p172, %p173
      %p176 = scmp.ne.s32.totalorder %s161, %s175
      %p177 = scmp.eq.s32.totalorder %s29, 0
      %p178 = por %p176, %p177
      %s180 = sadd.s32 %s179, 1
      %p183 = scmp.eq.s32.totalorder %s23, 1
      %p184 = scmp.ne.s32.totalorder %s179, %s181
      %p185 = scmp.eq.s32.totalorder %s23, 0
      %p186 = por %p184, %p185
      %p187 = scmp.ne.s32.totalorder %s179, %s181
      %p188 = scmp.eq.s32.totalorder %s28, 1
      %p189 = por %p187, %p188
      %p190 = scmp.ne.s32.totalorder %s181, %s182
      %p191 = scmp.eq.s32.totalorder %s28, 0
      %p192 = por %p190, %p191
      %p193 = scmp.ne.s32.totalorder %s181, %s182
      %p194 = scmp.eq.s32.totalorder %s29, 1
      %p195 = por %p193, %p194
      %p197 = scmp.ne.s32.totalorder %s182, %s196
      %p198 = scmp.eq.s32.totalorder %s29, 0
      %p199 = por %p197, %p198
      %s201 = sadd.s32 %s200, 1
      %p204 = scmp.eq.s32.totalorder %s23, 1
      %p205 = scmp.ne.s32.totalorder %s200, %s202
      %p206 = scmp.eq.s32.totalorder %s23, 0
      %p207 = por %p205, %p206
      %p208 = scmp.ne.s32.totalorder %s200, %s202
      %p209 = scmp.eq.s32.totalorder %s28, 1
      %p210 = por %p208, %p209
      %p211 = scmp.ne.s32.totalorder %s202, %s203
      %p212 = scmp.eq.s32.totalorder %s28, 0
      %p213 = por %p211, %p212
      %p214 = scmp.ne.s32.totalorder %s202, %s203
      %p215 = scmp.eq.s32.totalorder %s29, 1
      %p216 = por %p214, %p215
      %p218 = scmp.ne.s32.totalorder %s203, %s217
      %p219 = scmp.eq.s32.totalorder %s29, 0
      %p220 = por %p218, %p219
      %s222 = sadd.s32 %s221, 1
      %p225 = scmp.eq.s32.totalorder %s23, 1
      %p226 = scmp.ne.s32.totalorder %s221, %s223
      %p227 = scmp.eq.s32.totalorder %s23, 0
      %p228 = por %p226, %p227
      %p229 = scmp.ne.s32.totalorder %s221, %s223
      %p230 = scmp.eq.s32.totalorder %s28, 1
      %p231 = por %p229, %p230
      %p232 = scmp.ne.s32.totalorder %s223, %s224
      %p233 = scmp.eq.s32.totalorder %s28, 0
      %p234 = por %p232, %p233
      %p235 = scmp.ne.s32.totalorder %s223, %s224
      %p236 = scmp.eq.s32.totalorder %s29, 1
      %p237 = por %p235, %p236
      %p239 = scmp.ne.s32.totalorder %s224, %s238
      %p240 = scmp.eq.s32.totalorder %s29, 0
      %p241 = por %p239, %p240
      %s243 = sadd.s32 %s242, 1
      %p246 = scmp.eq.s32.totalorder %s23, 1
      %p247 = scmp.ne.s32.totalorder %s242, %s244
      %p248 = scmp.eq.s32.totalorder %s23, 0
      %p249 = por %p247, %p248
      %p250 = scmp.ne.s32.totalorder %s242, %s244
      %p251 = scmp.eq.s32.totalorder %s28, 1
      %p252 = por %p250, %p251
      %p253 = scmp.ne.s32.totalorder %s244, %s245
      %p254 = scmp.eq.s32.totalorder %s28, 0
      %p255 = por %p253, %p254
      %p256 = scmp.ne.s32.totalorder %s244, %s245
      %p257 = scmp.eq.s32.totalorder %s29, 1
      %p258 = por %p256, %p257
      %p260 = scmp.ne.s32.totalorder %s245, %s259
      %p261 = scmp.eq.s32.totalorder %s29, 0
      %p262 = por %p260, %p261
      %s264 = sadd.s32 %s263, 1
      %p267 = scmp.eq.s32.totalorder %s23, 1
      %p268 = scmp.ne.s32.totalorder %s263, %s265
      %p269 = scmp.eq.s32.totalorder %s23, 0
      %p270 = por %p268, %p269
      %p271 = scmp.ne.s32.totalorder %s263, %s265
      %p272 = scmp.eq.s32.totalorder %s28, 1
      %p273 = por %p271, %p272
      %p274 = scmp.ne.s32.totalorder %s265, %s266
      %p275 = scmp.eq.s32.totalorder %s28, 0
      %p276 = por %p274, %p275
      %p277 = scmp.ne.s32.totalorder %s265, %s266
      %p278 = scmp.eq.s32.totalorder %s29, 1
      %p279 = por %p277, %p278
      %p281 = scmp.ne.s32.totalorder %s266, %s280
      %p282 = scmp.eq.s32.totalorder %s29, 0
      %p283 = por %p281, %p282
      %s285 = sadd.s32 %s284, 1
      %p288 = scmp.eq.s32.totalorder %s23, 1
      %p289 = scmp.ne.s32.totalorder %s284, %s286
      %p290 = scmp.eq.s32.totalorder %s23, 0
      %p291 = por %p289, %p290
      %p292 = scmp.ne.s32.totalorder %s284, %s286
      %p293 = scmp.eq.s32.totalorder %s28, 1
      %p294 = por %p292, %p293
      %p295 = scmp.ne.s32.totalorder %s286, %s287
      %p296 = scmp.eq.s32.totalorder %s28, 0
      %p297 = por %p295, %p296
      %p298 = scmp.ne.s32.totalorder %s286, %s287
      %p299 = scmp.eq.s32.totalorder %s29, 1
      %p300 = por %p298, %p299
      %p302 = scmp.ne.s32.totalorder %s287, %s301
      %p303 = scmp.eq.s32.totalorder %s29, 0
      %p304 = por %p302, %p303
      %s306 = sadd.s32 %s305, 1
      %p309 = scmp.eq.s32.totalorder %s23, 1
      %p310 = scmp.ne.s32.totalorder %s305, %s307
      %p311 = scmp.eq.s32.totalorder %s23, 0
      %p312 = por %p310, %p311
      %p313 = scmp.ne.s32.totalorder %s305, %s307
      %p314 = scmp.eq.s32.totalorder %s28, 1
      %p315 = por %p313, %p314
      %p316 = scmp.ne.s32.totalorder %s307, %s308
      %p317 = scmp.eq.s32.totalorder %s28, 0
      %p318 = por %p316, %p317
      %p319 = scmp.ne.s32.totalorder %s307, %s308
      %p320 = scmp.eq.s32.totalorder %s29, 1
      %p321 = por %p319, %p320
      %p323 = scmp.ne.s32.totalorder %s308, %s322
      %p324 = scmp.eq.s32.totalorder %s29, 0
      %p325 = por %p323, %p324
      %s327 = sadd.s32 %s326, 1
      %p330 = scmp.eq.s32.totalorder %s23, 1
      %p331 = scmp.ne.s32.totalorder %s326, %s328
      %p332 = scmp.eq.s32.totalorder %s23, 0
      %p333 = por %p331, %p332
      %p334 = scmp.ne.s32.totalorder %s326, %s328
      %p335 = scmp.eq.s32.totalorder %s28, 1
      %p336 = por %p334, %p335
      %p337 = scmp.ne.s32.totalorder %s328, %s329
      %p338 = scmp.eq.s32.totalorder %s28, 0
      %p339 = por %p337, %p338
      %p340 = scmp.ne.s32.totalorder %s328, %s329
      %p341 = scmp.eq.s32.totalorder %s29, 1
      %p342 = por %p340, %p341
      %p344 = scmp.ne.s32.totalorder %s329, %s343
      %p345 = scmp.eq.s32.totalorder %s29, 0
      %p346 = por %p344, %p345
      %s347 = ssub.s32 %s30, %s42
      %s348 = ssub.s32 %s31, %s38
      %s349 = sor.u32 %s347, %s348
      %p350 = scmp.eq.s32.totalorder %s349, 0
      %s352 = sadd.s32 %s351, 1
      %s353 = scalar_select %p350, %s351, %s352
      %p356 = pneg %p350
      %p357 = scmp.eq.s32.totalorder %s23, 1
      %p358 = por %p356, %p357
      %p359 = scmp.ne.s32.totalorder %s351, %s354
      %p360 = scmp.eq.s32.totalorder %s23, 0
      %p361 = por %p359, %p360
      %p362 = scmp.ne.s32.totalorder %s351, %s354
      %p363 = scmp.eq.s32.totalorder %s28, 1
      %p364 = por %p362, %p363
      %p365 = scmp.ne.s32.totalorder %s354, %s355
      %p366 = scmp.eq.s32.totalorder %s28, 0
      %p367 = por %p365, %p366
      %p368 = scmp.ne.s32.totalorder %s354, %s355
      %p369 = scmp.eq.s32.totalorder %s29, 1
      %p370 = por %p368, %p369
      %p372 = scmp.ne.s32.totalorder %s355, %s371
      %p373 = scmp.eq.s32.totalorder %s29, 0
      %p374 = por %p372, %p373
      %p375 = scmp.le.s32.totalorder 1, %s23
      %p376 = scmp.lt.s32.totalorder %s23, 3
      %p377 = pnand %p375, %p376
      %p378 = pneg %p377
      // Predicated region
      $region9: #{tpu_custom_call.1} parent=5 // pred_check
        _
      $region10: #{tpu_custom_call.1} parent=5 // pred_check_branch
        %380 = sbr.rel (%p377) target = $region12
      $region11: #{tpu_custom_call.1} parent=5 // pred_region
        %s381 = ssub.s32 %s23, 1
        // Predicated region
        $region13: #{tpu_custom_call.1} parent=11 // pred_check
          %p382 = pneg %p108
        $region14: #{tpu_custom_call.1} parent=11 // pred_check_branch
          %384 = sbr.rel (%p382) target = $region16
        $region15: #{tpu_custom_call.1} parent=11 // pred_region
          _
        $region16: #{tpu_custom_call.1} parent=11 // pred_fallthru
          _
        // Predicated region
        $region17: #{tpu_custom_call.1} parent=11 // pred_check
          %p385 = pneg %p129
        $region18: #{tpu_custom_call.1} parent=11 // pred_check_branch
          %387 = sbr.rel (%p385) target = $region20
        $region19: #{tpu_custom_call.1} parent=11 // pred_region
          _
        $region20: #{tpu_custom_call.1} parent=11 // pred_fallthru
          _
        // Predicated region
        $region21: #{tpu_custom_call.1} parent=11 // pred_check
          %p388 = pneg %p150
        $region22: #{tpu_custom_call.1} parent=11 // pred_check_branch
          %390 = sbr.rel (%p388) target = $region24
        $region23: #{tpu_custom_call.1} parent=11 // pred_region
          _
        $region24: #{tpu_custom_call.1} parent=11 // pred_fallthru
          _
        // Predicated region
        $region25: #{tpu_custom_call.1} parent=11 // pred_check
          %p391 = pneg %p171
        $region26: #{tpu_custom_call.1} parent=11 // pred_check_branch
          %393 = sbr.rel (%p391) target = $region28
        $region27: #{tpu_custom_call.1} parent=11 // pred_region
          _
        $region28: #{tpu_custom_call.1} parent=11 // pred_fallthru
          _
        // Predicated region
        $region29: #{tpu_custom_call.1} parent=11 // pred_check
          %p394 = pneg %p192
        $region30: #{tpu_custom_call.1} parent=11 // pred_check_branch
          %396 = sbr.rel (%p394) target = $region32
        $region31: #{tpu_custom_call.1} parent=11 // pred_region
          _
        $region32: #{tpu_custom_call.1} parent=11 // pred_fallthru
          _
        // Predicated region
        $region33: #{tpu_custom_call.1} parent=11 // pred_check
          %p397 = pneg %p213
        $region34: #{tpu_custom_call.1} parent=11 // pred_check_branch
          %399 = sbr.rel (%p397) target = $region36
        $region35: #{tpu_custom_call.1} parent=11 // pred_region
          _
        $region36: #{tpu_custom_call.1} parent=11 // pred_fallthru
          _
        // Predicated region
        $region37: #{tpu_custom_call.1} parent=11 // pred_check
          %p400 = pneg %p234
        $region38: #{tpu_custom_call.1} parent=11 // pred_check_branch
          %402 = sbr.rel (%p400) target = $region40
        $region39: #{tpu_custom_call.1} parent=11 // pred_region
          _
        $region40: #{tpu_custom_call.1} parent=11 // pred_fallthru
          _
        // Predicated region
        $region41: #{tpu_custom_call.1} parent=11 // pred_check
          %p403 = pneg %p255
        $region42: #{tpu_custom_call.1} parent=11 // pred_check_branch
          %405 = sbr.rel (%p403) target = $region44
        $region43: #{tpu_custom_call.1} parent=11 // pred_region
          _
        $region44: #{tpu_custom_call.1} parent=11 // pred_fallthru
          _
        // Predicated region
        $region45: #{tpu_custom_call.1} parent=11 // pred_check
          %p406 = pneg %p276
        $region46: #{tpu_custom_call.1} parent=11 // pred_check_branch
          %408 = sbr.rel (%p406) target = $region48
        $region47: #{tpu_custom_call.1} parent=11 // pred_region
          _
        $region48: #{tpu_custom_call.1} parent=11 // pred_fallthru
          _
        // Predicated region
        $region49: #{tpu_custom_call.1} parent=11 // pred_check
          %p409 = pneg %p297
        $region50: #{tpu_custom_call.1} parent=11 // pred_check_branch
          %411 = sbr.rel (%p409) target = $region52
        $region51: #{tpu_custom_call.1} parent=11 // pred_region
          _
        $region52: #{tpu_custom_call.1} parent=11 // pred_fallthru
          _
        // Predicated region
        $region53: #{tpu_custom_call.1} parent=11 // pred_check
          %p412 = pneg %p318
        $region54: #{tpu_custom_call.1} parent=11 // pred_check_branch
          %414 = sbr.rel (%p412) target = $region56
        $region55: #{tpu_custom_call.1} parent=11 // pred_region
          _
        $region56: #{tpu_custom_call.1} parent=11 // pred_fallthru
          _
        // Predicated region
        $region57: #{tpu_custom_call.1} parent=11 // pred_check
          %p415 = pneg %p339
        $region58: #{tpu_custom_call.1} parent=11 // pred_check_branch
          %417 = sbr.rel (%p415) target = $region60
        $region59: #{tpu_custom_call.1} parent=11 // pred_region
          _
        $region60: #{tpu_custom_call.1} parent=11 // pred_fallthru
          _
      $region12: #{tpu_custom_call.1} parent=5 // pred_fallthru
        _
      %p418 = scmp.lt.s32.totalorder %s23, 2
      // Predicated region
      $region61: #{tpu_custom_call.1} parent=5 // pred_check
        %p419 = pneg %p418
      $region62: #{tpu_custom_call.1} parent=5 // pred_check_branch
        %421 = sbr.rel (%p419) target = $region64
      $region63: #{tpu_custom_call.1} parent=5 // pred_region
        // Predicated region
        $region65: #{tpu_custom_call.1} parent=63 // pred_check
          %p422 = pneg %p55
        $region66: #{tpu_custom_call.1} parent=63 // pred_check_branch
          %424 = sbr.rel (%p422) target = $region68
        $region67: #{tpu_custom_call.1} parent=63 // pred_region
          %p425 = scmp.lt.s32.totalorder %s30, 1
          %s426 = scalar_select %p425, %s30, 1
          %s427 = smul.addr %s426, 2
          %s428 = smul.addr %s427, 8
          %s429 = scalar_lea.vmem %s0, %s428
        $region68: #{tpu_custom_call.1} parent=63 // pred_fallthru
          _
        // Predicated region
        $region69: #{tpu_custom_call.1} parent=63 // pred_check
          %p430 = pneg %p81
        $region70: #{tpu_custom_call.1} parent=63 // pred_check_branch
          %432 = sbr.rel (%p430) target = $region72
        $region71: #{tpu_custom_call.1} parent=63 // pred_region
          %p433 = scmp.lt.s32.totalorder %s30, 1
          %s434 = scalar_select %p433, %s30, 1
          %s435 = scalar_lea.vmem %s1, %s434
        $region72: #{tpu_custom_call.1} parent=63 // pred_fallthru
          _
      $region64: #{tpu_custom_call.1} parent=5 // pred_fallthru
        _
      %p436 = scmp.le.s32.totalorder 1, %s23
      %p437 = scmp.lt.s32.totalorder %s23, 3
      %p438 = pnand %p436, %p437
      %p439 = pneg %p438
      // Predicated region
      $region73: #{tpu_custom_call.1} parent=5 // pred_check
        _
      $region74: #{tpu_custom_call.1} parent=5 // pred_check_branch
        %441 = sbr.rel (%p438) target = $region76
      $region75: #{tpu_custom_call.1} parent=5 // pred_region
        %s442 = ssub.s32 %s23, 1
        %p443 = scmp.lt.s32.totalorder %s32, 1
        %s444 = scalar_select %p443, %s32, 1
        %s445 = smul.addr %s444, 2
        %s446 = smul.addr %s445, 8
        %s447 = scalar_lea.vmem %s0, %s446
        %p448 = pneg %p61
        %p449 = pneg %p58
        %p450 = scmp.lt.s32.totalorder %s32, 1
        %s451 = scalar_select %p450, %s32, 1
        %s452 = scalar_lea.vmem %s1, %s451
        %p453 = pneg %p87
        %p454 = pneg %p84
        %p455 = pneg %p108
        %p456 = pneg %p105
        %p457 = pneg %p129
        %p458 = pneg %p126
        %p459 = pneg %p150
        %p460 = pneg %p147
        %p461 = pneg %p171
        %p462 = pneg %p168
        %p463 = pneg %p192
        %p464 = pneg %p189
        %p465 = pneg %p213
        %p466 = pneg %p210
        %p467 = pneg %p234
        %p468 = pneg %p231
        %p469 = pneg %p255
        %p470 = pneg %p252
        %p471 = pneg %p276
        %p472 = pneg %p273
        %p473 = pneg %p297
        %p474 = pneg %p294
        %p475 = pneg %p318
        %p476 = pneg %p315
        %p477 = pneg %p339
        %p478 = pneg %p336
        %p479 = pneg %p367
        %p480 = pneg %p364
        %s481 = sand.u32 %s354, 1
        %s482 = scalar_lea.sflag [#allocation6], %s481
        %s483 = sand.u32 %s354, 1
        %s484 = smul.addr %s483, 16
        %s485 = scalar_lea.vmem [#allocation5], %s484
        %p486 = scmp.lt.s32.totalorder %s32, 1
        %s487 = scalar_select %p486, %s32, 1
        %s488 = smul.addr %s487, 2
        %s489 = smul.addr %s488, 8
        %s490 = scalar_lea.vmem %s0, %s489
        %p491 = scmp.lt.s32.totalorder %s32, 1
        %s492 = scalar_select %p491, %s32, 1
        %s493 = scalar_lea.vmem %s1, %s492
        %s494 = smul.u32 2, %s33
        %p496 = scmp.eq.s32.totalorder %s33, 0
        // Predicated region
        $region77: #{tpu_custom_call.1} parent=75 // pred_check
          %p497 = pneg %p496
        $region78: #{tpu_custom_call.1} parent=75 // pred_check_branch
          %499 = sbr.rel (%p497) target = $region80
        $region79: #{tpu_custom_call.1} parent=75 // pred_region
          %v500 = vld [vmem:[%s490] sm:$0xff]
          %v501 = vld [vmem:[%s490 + $0x8] sm:$0xff]
          %v502 = vld [vmem:[%s6] sm:$0x1]
          %v503 = vld [vmem:[%s7] sm:$0x1]
          %vm504 = vcmask 261120
          %v505 = vsel %vm504, %v500, 0.0
          %506 = vadd.xlane.f32.xlu0 %v505
          %v507 = vpop.xlane.xlu0 %506
          %v508 = vsel %vm504, %v501, 0.0
          %509 = vadd.xlane.f32.xlu0 %v508
          %v510 = vpop.xlane.xlu0 %509
          %v511 = vrcp.pop 32.0
          %v512 = vmul.f32 %v507, %v511
          %v513 = vmul.f32 %v510, %v511
          %v514 = vsub.f32 %v500, %v512
          %v515 = vsub.f32 %v501, %v513
          %v516 = vmul.f32 %v514, %v514
          %v517 = vmul.f32 %v515, %v515
          %v518 = vsel %vm504, %v516, 0.0
          %519 = vadd.xlane.f32.xlu0 %v518
          %v520 = vpop.xlane.xlu0 %519
          %v521 = vsel %vm504, %v517, 0.0
          %522 = vadd.xlane.f32.xlu0 %v521
          %v523 = vpop.xlane.xlu0 %522
          %v524 = vrcp.pop 31.0
          %v525 = vmul.f32 %v520, %v524
          %v526 = vmul.f32 %v523, %v524
          %v527 = vrsqrt.pop %v525
          %v528 = vmul.f32 %v525, %v527
          %vm529 = vcmp.eq.f32.partialorder %v525, inf
          %v530 = vsel %vm529, %v525, %v528
          %vm531 = vcmp.eq.f32.partialorder %v525, 0.0
          %v532 = vand.u32 %v525, 2147483648
          %v533 = vsel %vm531, %v532, %v530
          %v534 = vrsqrt.pop %v526
          %v535 = vmul.f32 %v526, %v534
          %vm536 = vcmp.eq.f32.partialorder %v526, inf
          %v537 = vsel %vm536, %v526, %v535
          %vm538 = vcmp.eq.f32.partialorder %v526, 0.0
          %v539 = vand.u32 %v526, 2147483648
          %v540 = vsel %vm538, %v539, %v537
          %v541 = vadd.f32 %v533, 1e-06
          %v542 = vadd.f32 %v540, 1e-06
          %v543 = vrcp.pop %v541
          %v544 = vmul.f32 1.0, %v543
          %v545 = vrcp.pop %v542
          %v546 = vmul.f32 1.0, %v545
          %v547 = vmul.f32 %v514, %v544
          %v548 = vmul.f32 %v515, %v546
          %v550 = vlaneseq
          %v551 = vshrl.u32 %v550, 7
          %v552 = vsub.s32 0, %v551
          %v553 = vrot.slane %v502, %v552
          %v555 = vmul.f32 %v553, %v547
          %v556 = vmul.f32 %v553, %v548
          %v558 = vlaneseq
          %v559 = vshrl.u32 %v558, 7
          %v560 = vsub.s32 0, %v559
          %v561 = vrot.slane %v503, %v560
          %v563 = vadd.f32 %v555, %v561
          %v564 = vadd.f32 %v556, %v561
          %v565 = vpack.c.bf16 %v564, %v563
          %v566 = vld [vmem:[%s2] sm:$0xf]
          %v567 = vld [vmem:[%s2 + $0x4] sm:$0xf]
          %v568 = vld [vmem:[%s2 + $0x8] sm:$0xf]
          %v569 = vld [vmem:[%s2 + $0xc] sm:$0xf]
          %v570 = vld [vmem:[%s3] sm:$0x1]
          %v572 = vlaneseq
          %v573 = vshrl.u32 %v572, 7
          %v574 = vsub.s32 0, %v573
          %v575 = vrot.slane %v570, %v574
          %v581 = vunpack.c.l.b16 %v566
          %v582 = vunpack.c.l.b16 %v567
          %v583 = vunpack.c.l.b16 %v568
          %v584 = vunpack.c.l.b16 %v569
          %v585 = vpack.c.b16 %v582, %v581
          %v586 = vpack.c.b16 %v584, %v583
          %v590 = vsel %vm504, %v565, 0
          %592 = vmatprep.subr.bf16.mxu0 0
          %593 = vmatpush1.bf16.msra.mxu0 %v585
          %594 = vmatprep.subr.bf16.mxu0 0
          %595 = vmatpush1.bf16.msra.mxu0 %v586
          %596 = vmatprep.subr.bf16.mxu0 0
          %597 = vmatpush1.bf16.msra.mxu0 0
          %598 = vmatprep.subr.bf16.mxu0 0
          %599 = vmatpush1.bf16.msra.mxu0 0
          %600 = vmatprep.subr.bf16.mxu0 0
          %601 = vmatpush1.bf16.msra.mxu0 0
          %602 = vmatprep.subr.bf16.mxu0 0
          %603 = vmatpush1.bf16.msra.mxu0 0
          %604 = vmatprep.subr.bf16.mxu0 0
          %605 = vmatpush1.bf16.msra.mxu0 0
          %606 = vmatprep.subr.bf16.mxu0 0
          %607 = vmatpush1.bf16.msra.mxu0 0
          %608 = vmatprep.subr.bf16.mxu0 0
          %609 = vmatpush1.bf16.msra.mxu0 0
          %610 = vmatprep.subr.bf16.mxu0 0
          %611 = vmatpush1.bf16.msra.mxu0 0
          %612 = vmatprep.subr.bf16.mxu0 0
          %613 = vmatpush1.bf16.msra.mxu0 0
          %614 = vmatprep.subr.bf16.mxu0 0
          %615 = vmatpush1.bf16.msra.mxu0 0
          %616 = vmatprep.subr.bf16.mxu0 0
          %617 = vmatpush1.bf16.msra.mxu0 0
          %618 = vmatprep.subr.bf16.mxu0 0
          %619 = vmatpush1.bf16.msra.mxu0 0
          %620 = vmatprep.subr.bf16.mxu0 0
          %621 = vmatpush1.bf16.msra.mxu0 0
          %622 = vmatprep.subr.bf16.mxu0 0
          %623 = vmatpush1.bf16.msra.mxu0 0
          %624 = vmatprep.mubr.bf16.mxu0 0
          %625 = vmatmul.mubr.bf16.gmra.mrb[0].mxu0 %v590
          %v626 = vpop.f32.mrb[0].mxu0
          %v627 = vadd.f32 %v575, %v626
          %v628 = vpop.f32.mrb[0].mxu0
          %v629 = vpop.f32.mrb[0].mxu0
          %v630 = vadd.f32 %v575, %v629
          %v631 = vpop.f32.mrb[0].mxu0
          %632 = vdwg.mxu0
          %635 = vrot.lane.b32.xlu0 %v627, 120
          %v636 = vpop.permute.xlu0 %635
          %637 = vrot.lane.b32.xlu0 %v630, 120
          %v638 = vpop.permute.xlu0 %637
          %641 = vrot.lane.b32.xlu0 %v627, 112
          %v642 = vpop.permute.xlu0 %641
          %643 = vrot.lane.b32.xlu0 %v630, 112
          %v644 = vpop.permute.xlu0 %643
          %647 = vrot.lane.b32.xlu0 %v627, 104
          %v648 = vpop.permute.xlu0 %647
          %649 = vrot.lane.b32.xlu0 %v630, 104
          %v650 = vpop.permute.xlu0 %649
          %v653 = vcombine.low %v627, %v642
          %v654 = vcombine.high %v627, %v642
          %v656 = vunpack.c.l.s4 1983009808
          %v657 = vunpack.c.0.s8 %v656
          %v658 = vlaneseq
          %v659 = vshrl.u32 %v658, 7
          %v660 = vsub.s32 %v657, %v659
          %v661 = vrot.slane %v653, %v660
          %v663 = vunpack.c.l.s4 1983009808
          %v664 = vunpack.c.0.s8 %v663
          %v665 = vlaneseq
          %v666 = vshrl.u32 %v665, 7
          %v667 = vsub.s32 %v664, %v666
          %v668 = vrot.slane %v654, %v667
          %v669 = vcombine.low %v636, %v648
          %v670 = vcombine.high %v636, %v648
          %v672 = vunpack.c.l.s4 1983009808
          %v673 = vunpack.c.0.s8 %v672
          %v674 = vlaneseq
          %v675 = vshrl.u32 %v674, 7
          %v676 = vsub.s32 %v673, %v675
          %v677 = vrot.slane %v669, %v676
          %v679 = vunpack.c.l.s4 1983009808
          %v680 = vunpack.c.0.s8 %v679
          %v681 = vlaneseq
          %v682 = vshrl.u32 %v681, 7
          %v683 = vsub.s32 %v680, %v682
          %v684 = vrot.slane %v670, %v683
          %v685 = vcombine.low %v661, %v677
          %v686 = vcombine.high %v661, %v677
          %v688 = vunpack.c.l.s4 1934713408
          %v689 = vunpack.c.0.s8 %v688
          %v690 = vlaneseq
          %v691 = vshrl.u32 %v690, 7
          %v692 = vsub.s32 %v689, %v691
          %v693 = vrot.slane %v685, %v692
          %v695 = vunpack.c.l.s4 1934713408
          %v696 = vunpack.c.0.s8 %v695
          %v697 = vlaneseq
          %v698 = vshrl.u32 %v697, 7
          %v699 = vsub.s32 %v696, %v698
          %v700 = vrot.slane %v686, %v699
          %v701 = vcombine.low %v668, %v684
          %v702 = vcombine.high %v668, %v684
          %v704 = vunpack.c.l.s4 1934713408
          %v705 = vunpack.c.0.s8 %v704
          %v706 = vlaneseq
          %v707 = vshrl.u32 %v706, 7
          %v708 = vsub.s32 %v705, %v707
          %v709 = vrot.slane %v701, %v708
          %v711 = vunpack.c.l.s4 1934713408
          %v712 = vunpack.c.0.s8 %v711
          %v713 = vlaneseq
          %v714 = vshrl.u32 %v713, 7
          %v715 = vsub.s32 %v712, %v714
          %v716 = vrot.slane %v702, %v715
          %v717 = vcombine.high %v693, 0.0
          %v718 = vcombine.high %v700, 0.0
          %v719 = vcombine.high %v709, 0.0
          %v720 = vcombine.high %v716, 0.0
          %v721 = vcombine.low %v630, %v644
          %v722 = vcombine.high %v630, %v644
          %v724 = vunpack.c.l.s4 1983009808
          %v725 = vunpack.c.0.s8 %v724
          %v726 = vlaneseq
          %v727 = vshrl.u32 %v726, 7
          %v728 = vsub.s32 %v725, %v727
          %v729 = vrot.slane %v721, %v728
          %v731 = vunpack.c.l.s4 1983009808
          %v732 = vunpack.c.0.s8 %v731
          %v733 = vlaneseq
          %v734 = vshrl.u32 %v733, 7
          %v735 = vsub.s32 %v732, %v734
          %v736 = vrot.slane %v722, %v735
          %v737 = vcombine.low %v638, %v650
          %v738 = vcombine.high %v638, %v650
          %v740 = vunpack.c.l.s4 1983009808
          %v741 = vunpack.c.0.s8 %v740
          %v742 = vlaneseq
          %v743 = vshrl.u32 %v742, 7
          %v744 = vsub.s32 %v741, %v743
          %v745 = vrot.slane %v737, %v744
          %v747 = vunpack.c.l.s4 1983009808
          %v748 = vunpack.c.0.s8 %v747
          %v749 = vlaneseq
          %v750 = vshrl.u32 %v749, 7
          %v751 = vsub.s32 %v748, %v750
          %v752 = vrot.slane %v738, %v751
          %v753 = vcombine.low %v729, %v745
          %v754 = vcombine.high %v729, %v745
          %v756 = vunpack.c.l.s4 1934713408
          %v757 = vunpack.c.0.s8 %v756
          %v758 = vlaneseq
          %v759 = vshrl.u32 %v758, 7
          %v760 = vsub.s32 %v757, %v759
          %v761 = vrot.slane %v753, %v760
          %v763 = vunpack.c.l.s4 1934713408
          %v764 = vunpack.c.0.s8 %v763
          %v765 = vlaneseq
          %v766 = vshrl.u32 %v765, 7
          %v767 = vsub.s32 %v764, %v766
          %v768 = vrot.slane %v754, %v767
          %v769 = vcombine.low %v736, %v752
          %v770 = vcombine.high %v736, %v752
          %v772 = vunpack.c.l.s4 1934713408
          %v773 = vunpack.c.0.s8 %v772
          %v774 = vlaneseq
          %v775 = vshrl.u32 %v774, 7
          %v776 = vsub.s32 %v773, %v775
          %v777 = vrot.slane %v769, %v776
          %v779 = vunpack.c.l.s4 1934713408
          %v780 = vunpack.c.0.s8 %v779
          %v781 = vlaneseq
          %v782 = vshrl.u32 %v781, 7
          %v783 = vsub.s32 %v780, %v782
          %v784 = vrot.slane %v770, %v783
          %v785 = vcombine.high %v761, 0.0
          %v786 = vcombine.high %v768, 0.0
          %v787 = vcombine.high %v777, 0.0
          %v788 = vcombine.high %v784, 0.0
          %v789 = vcombine.low %v693, %v700
          %v791 = vunpack.c.l.s4 1983009808
          %v792 = vunpack.c.0.s8 %v791
          %v793 = vlaneseq
          %v794 = vshrl.u32 %v793, 7
          %v795 = vsub.s32 %v792, %v794
          %v796 = vrot.slane %v789, %v795
          %v797 = vcombine.low %v717, %v718
          %v799 = vunpack.c.l.s4 1983009808
          %v800 = vunpack.c.0.s8 %v799
          %v801 = vlaneseq
          %v802 = vshrl.u32 %v801, 7
          %v803 = vsub.s32 %v800, %v802
          %v804 = vrot.slane %v797, %v803
          %v805 = vcombine.low %v709, %v716
          %v807 = vunpack.c.l.s4 1983009808
          %v808 = vunpack.c.0.s8 %v807
          %v809 = vlaneseq
          %v810 = vshrl.u32 %v809, 7
          %v811 = vsub.s32 %v808, %v810
          %v812 = vrot.slane %v805, %v811
          %v813 = vcombine.low %v719, %v720
          %v815 = vunpack.c.l.s4 1983009808
          %v816 = vunpack.c.0.s8 %v815
          %v817 = vlaneseq
          %v818 = vshrl.u32 %v817, 7
          %v819 = vsub.s32 %v816, %v818
          %v820 = vrot.slane %v813, %v819
          %v821 = vcombine.low %v796, %v804
          %v822 = vcombine.high %v796, %v804
          %v824 = vunpack.c.l.s4 1934713408
          %v825 = vunpack.c.0.s8 %v824
          %v826 = vlaneseq
          %v827 = vshrl.u32 %v826, 7
          %v828 = vsub.s32 %v825, %v827
          %v829 = vrot.slane %v821, %v828
          %v831 = vunpack.c.l.s4 1934713408
          %v832 = vunpack.c.0.s8 %v831
          %v833 = vlaneseq
          %v834 = vshrl.u32 %v833, 7
          %v835 = vsub.s32 %v832, %v834
          %v836 = vrot.slane %v822, %v835
          %v837 = vcombine.low %v812, %v820
          %v838 = vcombine.high %v812, %v820
          %v840 = vunpack.c.l.s4 1934713408
          %v841 = vunpack.c.0.s8 %v840
          %v842 = vlaneseq
          %v843 = vshrl.u32 %v842, 7
          %v844 = vsub.s32 %v841, %v843
          %v845 = vrot.slane %v837, %v844
          %v847 = vunpack.c.l.s4 1934713408
          %v848 = vunpack.c.0.s8 %v847
          %v849 = vlaneseq
          %v850 = vshrl.u32 %v849, 7
          %v851 = vsub.s32 %v848, %v850
          %v852 = vrot.slane %v838, %v851
          %v853 = vcombine.low %v829, %v845
          %v854 = vcombine.high %v829, %v845
          %v855 = vcombine.low %v836, %v852
          %v856 = vcombine.high %v836, %v852
          %v857 = vcombine.low %v761, %v768
          %v859 = vunpack.c.l.s4 1983009808
          %v860 = vunpack.c.0.s8 %v859
          %v861 = vlaneseq
          %v862 = vshrl.u32 %v861, 7
          %v863 = vsub.s32 %v860, %v862
          %v864 = vrot.slane %v857, %v863
          %v865 = vcombine.low %v785, %v786
          %v867 = vunpack.c.l.s4 1983009808
          %v868 = vunpack.c.0.s8 %v867
          %v869 = vlaneseq
          %v870 = vshrl.u32 %v869, 7
          %v871 = vsub.s32 %v868, %v870
          %v872 = vrot.slane %v865, %v871
          %v873 = vcombine.low %v777, %v784
          %v875 = vunpack.c.l.s4 1983009808
          %v876 = vunpack.c.0.s8 %v875
          %v877 = vlaneseq
          %v878 = vshrl.u32 %v877, 7
          %v879 = vsub.s32 %v876, %v878
          %v880 = vrot.slane %v873, %v879
          %v881 = vcombine.low %v787, %v788
          %v883 = vunpack.c.l.s4 1983009808
          %v884 = vunpack.c.0.s8 %v883
          %v885 = vlaneseq
          %v886 = vshrl.u32 %v885, 7
          %v887 = vsub.s32 %v884, %v886
          %v888 = vrot.slane %v881, %v887
          %v889 = vcombine.low %v864, %v872
          %v890 = vcombine.high %v864, %v872
          %v892 = vunpack.c.l.s4 1934713408
          %v893 = vunpack.c.0.s8 %v892
          %v894 = vlaneseq
          %v895 = vshrl.u32 %v894, 7
          %v896 = vsub.s32 %v893, %v895
          %v897 = vrot.slane %v889, %v896
          %v899 = vunpack.c.l.s4 1934713408
          %v900 = vunpack.c.0.s8 %v899
          %v901 = vlaneseq
          %v902 = vshrl.u32 %v901, 7
          %v903 = vsub.s32 %v900, %v902
          %v904 = vrot.slane %v890, %v903
          %v905 = vcombine.low %v880, %v888
          %v906 = vcombine.high %v880, %v888
          %v908 = vunpack.c.l.s4 1934713408
          %v909 = vunpack.c.0.s8 %v908
          %v910 = vlaneseq
          %v911 = vshrl.u32 %v910, 7
          %v912 = vsub.s32 %v909, %v911
          %v913 = vrot.slane %v905, %v912
          %v915 = vunpack.c.l.s4 1934713408
          %v916 = vunpack.c.0.s8 %v915
          %v917 = vlaneseq
          %v918 = vshrl.u32 %v917, 7
          %v919 = vsub.s32 %v916, %v918
          %v920 = vrot.slane %v906, %v919
          %v921 = vcombine.low %v897, %v913
          %v922 = vcombine.high %v897, %v913
          %v923 = vcombine.low %v904, %v920
          %v924 = vcombine.high %v904, %v920
          %v925 = vpack.c.bf16 %v921, %v853
          %v926 = vpack.c.bf16 %v922, %v854
          %v927 = vpack.c.bf16 %v923, %v855
          %v928 = vpack.c.bf16 %v924, %v856
          %vm929 = vcmask 64512
          %930 = vst.msk [vmem:[#allocation2] sm:$0xff] %vm929, %v925
          %931 = vst.msk [vmem:[#allocation2 + $0x8] sm:$0xff] %vm929, %v926
          %932 = vst.msk [vmem:[#allocation2 + $0x10] sm:$0xff] %vm929, %v927
          %933 = vst.msk [vmem:[#allocation2 + $0x18] sm:$0xff] %vm929, %v928
          %934 = vrot.lane.b32.xlu0 %v627, 96
          %v935 = vpop.permute.xlu0 %934
          %936 = vrot.lane.b32.xlu0 %v630, 96
          %v937 = vpop.permute.xlu0 %936
          %938 = vrot.lane.b32.xlu0 %v636, 96
          %v939 = vpop.permute.xlu0 %938
          %940 = vrot.lane.b32.xlu0 %v638, 96
          %v941 = vpop.permute.xlu0 %940
          %942 = vrot.lane.b32.xlu0 %v642, 96
          %v943 = vpop.permute.xlu0 %942
          %944 = vrot.lane.b32.xlu0 %v644, 96
          %v945 = vpop.permute.xlu0 %944
          %946 = vrot.lane.b32.xlu0 %v648, 96
          %v947 = vpop.permute.xlu0 %946
          %948 = vrot.lane.b32.xlu0 %v650, 96
          %v949 = vpop.permute.xlu0 %948
          %v958 = vcombine.low %v935, %v943
          %v959 = vcombine.high %v935, %v943
          %v961 = vunpack.c.l.s4 1983009808
          %v962 = vunpack.c.0.s8 %v961
          %v963 = vlaneseq
          %v964 = vshrl.u32 %v963, 7
          %v965 = vsub.s32 %v962, %v964
          %v966 = vrot.slane %v958, %v965
          %v968 = vunpack.c.l.s4 1983009808
          %v969 = vunpack.c.0.s8 %v968
          %v970 = vlaneseq
          %v971 = vshrl.u32 %v970, 7
          %v972 = vsub.s32 %v969, %v971
          %v973 = vrot.slane %v959, %v972
          %v974 = vcombine.low %v939, %v947
          %v975 = vcombine.high %v939, %v947
          %v977 = vunpack.c.l.s4 1983009808
          %v978 = vunpack.c.0.s8 %v977
          %v979 = vlaneseq
          %v980 = vshrl.u32 %v979, 7
          %v981 = vsub.s32 %v978, %v980
          %v982 = vrot.slane %v974, %v981
          %v984 = vunpack.c.l.s4 1983009808
          %v985 = vunpack.c.0.s8 %v984
          %v986 = vlaneseq
          %v987 = vshrl.u32 %v986, 7
          %v988 = vsub.s32 %v985, %v987
          %v989 = vrot.slane %v975, %v988
          %v990 = vcombine.low %v966, %v982
          %v991 = vcombine.high %v966, %v982
          %v993 = vunpack.c.l.s4 1934713408
          %v994 = vunpack.c.0.s8 %v993
          %v995 = vlaneseq
          %v996 = vshrl.u32 %v995, 7
          %v997 = vsub.s32 %v994, %v996
          %v998 = vrot.slane %v990, %v997
          %v1000 = vunpack.c.l.s4 1934713408
          %v1001 = vunpack.c.0.s8 %v1000
          %v1002 = vlaneseq
          %v1003 = vshrl.u32 %v1002, 7
          %v1004 = vsub.s32 %v1001, %v1003
          %v1005 = vrot.slane %v991, %v1004
          %v1006 = vcombine.low %v973, %v989
          %v1007 = vcombine.high %v973, %v989
          %v1009 = vunpack.c.l.s4 1934713408
          %v1010 = vunpack.c.0.s8 %v1009
          %v1011 = vlaneseq
          %v1012 = vshrl.u32 %v1011, 7
          %v1013 = vsub.s32 %v1010, %v1012
          %v1014 = vrot.slane %v1006, %v1013
          %v1016 = vunpack.c.l.s4 1934713408
          %v1017 = vunpack.c.0.s8 %v1016
          %v1018 = vlaneseq
          %v1019 = vshrl.u32 %v1018, 7
          %v1020 = vsub.s32 %v1017, %v1019
          %v1021 = vrot.slane %v1007, %v1020
          %v1022 = vcombine.high %v998, 0.0
          %v1023 = vcombine.high %v1005, 0.0
          %v1024 = vcombine.high %v1014, 0.0
          %v1025 = vcombine.high %v1021, 0.0
          %v1026 = vcombine.low %v937, %v945
          %v1027 = vcombine.high %v937, %v945
          %v1029 = vunpack.c.l.s4 1983009808
          %v1030 = vunpack.c.0.s8 %v1029
          %v1031 = vlaneseq
          %v1032 = vshrl.u32 %v1031, 7
          %v1033 = vsub.s32 %v1030, %v1032
          %v1034 = vrot.slane %v1026, %v1033
          %v1036 = vunpack.c.l.s4 1983009808
          %v1037 = vunpack.c.0.s8 %v1036
          %v1038 = vlaneseq
          %v1039 = vshrl.u32 %v1038, 7
          %v1040 = vsub.s32 %v1037, %v1039
          %v1041 = vrot.slane %v1027, %v1040
          %v1042 = vcombine.low %v941, %v949
          %v1043 = vcombine.high %v941, %v949
          %v1045 = vunpack.c.l.s4 1983009808
          %v1046 = vunpack.c.0.s8 %v1045
          %v1047 = vlaneseq
          %v1048 = vshrl.u32 %v1047, 7
          %v1049 = vsub.s32 %v1046, %v1048
          %v1050 = vrot.slane %v1042, %v1049
          %v1052 = vunpack.c.l.s4 1983009808
          %v1053 = vunpack.c.0.s8 %v1052
          %v1054 = vlaneseq
          %v1055 = vshrl.u32 %v1054, 7
          %v1056 = vsub.s32 %v1053, %v1055
          %v1057 = vrot.slane %v1043, %v1056
          %v1058 = vcombine.low %v1034, %v1050
          %v1059 = vcombine.high %v1034, %v1050
          %v1061 = vunpack.c.l.s4 1934713408
          %v1062 = vunpack.c.0.s8 %v1061
          %v1063 = vlaneseq
          %v1064 = vshrl.u32 %v1063, 7
          %v1065 = vsub.s32 %v1062, %v1064
          %v1066 = vrot.slane %v1058, %v1065
          %v1068 = vunpack.c.l.s4 1934713408
          %v1069 = vunpack.c.0.s8 %v1068
          %v1070 = vlaneseq
          %v1071 = vshrl.u32 %v1070, 7
          %v1072 = vsub.s32 %v1069, %v1071
          %v1073 = vrot.slane %v1059, %v1072
          %v1074 = vcombine.low %v1041, %v1057
          %v1075 = vcombine.high %v1041, %v1057
          %v1077 = vunpack.c.l.s4 1934713408
          %v1078 = vunpack.c.0.s8 %v1077
          %v1079 = vlaneseq
          %v1080 = vshrl.u32 %v1079, 7
          %v1081 = vsub.s32 %v1078, %v1080
          %v1082 = vrot.slane %v1074, %v1081
          %v1084 = vunpack.c.l.s4 1934713408
          %v1085 = vunpack.c.0.s8 %v1084
          %v1086 = vlaneseq
          %v1087 = vshrl.u32 %v1086, 7
          %v1088 = vsub.s32 %v1085, %v1087
          %v1089 = vrot.slane %v1075, %v1088
          %v1090 = vcombine.high %v1066, 0.0
          %v1091 = vcombine.high %v1073, 0.0
          %v1092 = vcombine.high %v1082, 0.0
          %v1093 = vcombine.high %v1089, 0.0
          %v1094 = vcombine.low %v998, %v1005
          %v1096 = vunpack.c.l.s4 1983009808
          %v1097 = vunpack.c.0.s8 %v1096
          %v1098 = vlaneseq
          %v1099 = vshrl.u32 %v1098, 7
          %v1100 = vsub.s32 %v1097, %v1099
          %v1101 = vrot.slane %v1094, %v1100
          %v1102 = vcombine.low %v1022, %v1023
          %v1104 = vunpack.c.l.s4 1983009808
          %v1105 = vunpack.c.0.s8 %v1104
          %v1106 = vlaneseq
          %v1107 = vshrl.u32 %v1106, 7
          %v1108 = vsub.s32 %v1105, %v1107
          %v1109 = vrot.slane %v1102, %v1108
          %v1110 = vcombine.low %v1014, %v1021
          %v1112 = vunpack.c.l.s4 1983009808
          %v1113 = vunpack.c.0.s8 %v1112
          %v1114 = vlaneseq
          %v1115 = vshrl.u32 %v1114, 7
          %v1116 = vsub.s32 %v1113, %v1115
          %v1117 = vrot.slane %v1110, %v1116
          %v1118 = vcombine.low %v1024, %v1025
          %v1120 = vunpack.c.l.s4 1983009808
          %v1121 = vunpack.c.0.s8 %v1120
          %v1122 = vlaneseq
          %v1123 = vshrl.u32 %v1122, 7
          %v1124 = vsub.s32 %v1121, %v1123
          %v1125 = vrot.slane %v1118, %v1124
          %v1126 = vcombine.low %v1101, %v1109
          %v1127 = vcombine.high %v1101, %v1109
          %v1129 = vunpack.c.l.s4 1934713408
          %v1130 = vunpack.c.0.s8 %v1129
          %v1131 = vlaneseq
          %v1132 = vshrl.u32 %v1131, 7
          %v1133 = vsub.s32 %v1130, %v1132
          %v1134 = vrot.slane %v1126, %v1133
          %v1136 = vunpack.c.l.s4 1934713408
          %v1137 = vunpack.c.0.s8 %v1136
          %v1138 = vlaneseq
          %v1139 = vshrl.u32 %v1138, 7
          %v1140 = vsub.s32 %v1137, %v1139
          %v1141 = vrot.slane %v1127, %v1140
          %v1142 = vcombine.low %v1117, %v1125
          %v1143 = vcombine.high %v1117, %v1125
          %v1145 = vunpack.c.l.s4 1934713408
          %v1146 = vunpack.c.0.s8 %v1145
          %v1147 = vlaneseq
          %v1148 = vshrl.u32 %v1147, 7
          %v1149 = vsub.s32 %v1146, %v1148
          %v1150 = vrot.slane %v1142, %v1149
          %v1152 = vunpack.c.l.s4 1934713408
          %v1153 = vunpack.c.0.s8 %v1152
          %v1154 = vlaneseq
          %v1155 = vshrl.u32 %v1154, 7
          %v1156 = vsub.s32 %v1153, %v1155
          %v1157 = vrot.slane %v1143, %v1156
          %v1158 = vcombine.low %v1134, %v1150
          %v1159 = vcombine.high %v1134, %v1150
          %v1160 = vcombine.low %v1141, %v1157
          %v1161 = vcombine.high %v1141, %v1157
          %v1162 = vcombine.low %v1066, %v1073
          %v1164 = vunpack.c.l.s4 1983009808
          %v1165 = vunpack.c.0.s8 %v1164
          %v1166 = vlaneseq
          %v1167 = vshrl.u32 %v1166, 7
          %v1168 = vsub.s32 %v1165, %v1167
          %v1169 = vrot.slane %v1162, %v1168
          %v1170 = vcombine.low %v1090, %v1091
          %v1172 = vunpack.c.l.s4 1983009808
          %v1173 = vunpack.c.0.s8 %v1172
          %v1174 = vlaneseq
          %v1175 = vshrl.u32 %v1174, 7
          %v1176 = vsub.s32 %v1173, %v1175
          %v1177 = vrot.slane %v1170, %v1176
          %v1178 = vcombine.low %v1082, %v1089
          %v1180 = vunpack.c.l.s4 1983009808
          %v1181 = vunpack.c.0.s8 %v1180
          %v1182 = vlaneseq
          %v1183 = vshrl.u32 %v1182, 7
          %v1184 = vsub.s32 %v1181, %v1183
          %v1185 = vrot.slane %v1178, %v1184
          %v1186 = vcombine.low %v1092, %v1093
          %v1188 = vunpack.c.l.s4 1983009808
          %v1189 = vunpack.c.0.s8 %v1188
          %v1190 = vlaneseq
          %v1191 = vshrl.u32 %v1190, 7
          %v1192 = vsub.s32 %v1189, %v1191
          %v1193 = vrot.slane %v1186, %v1192
          %v1194 = vcombine.low %v1169, %v1177
          %v1195 = vcombine.high %v1169, %v1177
          %v1197 = vunpack.c.l.s4 1934713408
          %v1198 = vunpack.c.0.s8 %v1197
          %v1199 = vlaneseq
          %v1200 = vshrl.u32 %v1199, 7
          %v1201 = vsub.s32 %v1198, %v1200
          %v1202 = vrot.slane %v1194, %v1201
          %v1204 = vunpack.c.l.s4 1934713408
          %v1205 = vunpack.c.0.s8 %v1204
          %v1206 = vlaneseq
          %v1207 = vshrl.u32 %v1206, 7
          %v1208 = vsub.s32 %v1205, %v1207
          %v1209 = vrot.slane %v1195, %v1208
          %v1210 = vcombine.low %v1185, %v1193
          %v1211 = vcombine.high %v1185, %v1193
          %v1213 = vunpack.c.l.s4 1934713408
          %v1214 = vunpack.c.0.s8 %v1213
          %v1215 = vlaneseq
          %v1216 = vshrl.u32 %v1215, 7
          %v1217 = vsub.s32 %v1214, %v1216
          %v1218 = vrot.slane %v1210, %v1217
          %v1220 = vunpack.c.l.s4 1934713408
          %v1221 = vunpack.c.0.s8 %v1220
          %v1222 = vlaneseq
          %v1223 = vshrl.u32 %v1222, 7
          %v1224 = vsub.s32 %v1221, %v1223
          %v1225 = vrot.slane %v1211, %v1224
          %v1226 = vcombine.low %v1202, %v1218
          %v1227 = vcombine.high %v1202, %v1218
          %v1228 = vcombine.low %v1209, %v1225
          %v1229 = vcombine.high %v1209, %v1225
          %v1230 = vpack.c.bf16 %v1226, %v1158
          %v1231 = vpack.c.bf16 %v1227, %v1159
          %v1232 = vpack.c.bf16 %v1228, %v1160
          %v1233 = vpack.c.bf16 %v1229, %v1161
          %1234 = vst.msk [vmem:[#allocation3] sm:$0xff] %vm929, %v1230
          %1235 = vst.msk [vmem:[#allocation3 + $0x8] sm:$0xff] %vm929, %v1231
          %1236 = vst.msk [vmem:[#allocation3 + $0x10] sm:$0xff] %vm929, %v1232
          %1237 = vst.msk [vmem:[#allocation3 + $0x18] sm:$0xff] %vm929, %v1233
          %1238 = vrot.lane.b32.xlu0 %v627, 64
          %v1239 = vpop.permute.xlu0 %1238
          %1240 = vrot.lane.b32.xlu0 %v630, 64
          %v1241 = vpop.permute.xlu0 %1240
          %1242 = vrot.lane.b32.xlu0 %v636, 64
          %v1243 = vpop.permute.xlu0 %1242
          %1244 = vrot.lane.b32.xlu0 %v638, 64
          %v1245 = vpop.permute.xlu0 %1244
          %1246 = vrot.lane.b32.xlu0 %v642, 64
          %v1247 = vpop.permute.xlu0 %1246
          %1248 = vrot.lane.b32.xlu0 %v644, 64
          %v1249 = vpop.permute.xlu0 %1248
          %1250 = vrot.lane.b32.xlu0 %v648, 64
          %v1251 = vpop.permute.xlu0 %1250
          %1252 = vrot.lane.b32.xlu0 %v650, 64
          %v1253 = vpop.permute.xlu0 %1252
          %v1262 = vcombine.low %v1239, %v1247
          %v1263 = vcombine.high %v1239, %v1247
          %v1265 = vunpack.c.l.s4 1983009808
          %v1266 = vunpack.c.0.s8 %v1265
          %v1267 = vlaneseq
          %v1268 = vshrl.u32 %v1267, 7
          %v1269 = vsub.s32 %v1266, %v1268
          %v1270 = vrot.slane %v1262, %v1269
          %v1272 = vunpack.c.l.s4 1983009808
          %v1273 = vunpack.c.0.s8 %v1272
          %v1274 = vlaneseq
          %v1275 = vshrl.u32 %v1274, 7
          %v1276 = vsub.s32 %v1273, %v1275
          %v1277 = vrot.slane %v1263, %v1276
          %v1278 = vcombine.low %v1243, %v1251
          %v1279 = vcombine.high %v1243, %v1251
          %v1281 = vunpack.c.l.s4 1983009808
          %v1282 = vunpack.c.0.s8 %v1281
          %v1283 = vlaneseq
          %v1284 = vshrl.u32 %v1283, 7
          %v1285 = vsub.s32 %v1282, %v1284
          %v1286 = vrot.slane %v1278, %v1285
          %v1288 = vunpack.c.l.s4 1983009808
          %v1289 = vunpack.c.0.s8 %v1288
          %v1290 = vlaneseq
          %v1291 = vshrl.u32 %v1290, 7
          %v1292 = vsub.s32 %v1289, %v1291
          %v1293 = vrot.slane %v1279, %v1292
          %v1294 = vcombine.low %v1270, %v1286
          %v1295 = vcombine.high %v1270, %v1286
          %v1297 = vunpack.c.l.s4 1934713408
          %v1298 = vunpack.c.0.s8 %v1297
          %v1299 = vlaneseq
          %v1300 = vshrl.u32 %v1299, 7
          %v1301 = vsub.s32 %v1298, %v1300
          %v1302 = vrot.slane %v1294, %v1301
          %v1304 = vunpack.c.l.s4 1934713408
          %v1305 = vunpack.c.0.s8 %v1304
          %v1306 = vlaneseq
          %v1307 = vshrl.u32 %v1306, 7
          %v1308 = vsub.s32 %v1305, %v1307
          %v1309 = vrot.slane %v1295, %v1308
          %v1310 = vcombine.low %v1277, %v1293
          %v1311 = vcombine.high %v1277, %v1293
          %v1313 = vunpack.c.l.s4 1934713408
          %v1314 = vunpack.c.0.s8 %v1313
          %v1315 = vlaneseq
          %v1316 = vshrl.u32 %v1315, 7
          %v1317 = vsub.s32 %v1314, %v1316
          %v1318 = vrot.slane %v1310, %v1317
          %v1320 = vunpack.c.l.s4 1934713408
          %v1321 = vunpack.c.0.s8 %v1320
          %v1322 = vlaneseq
          %v1323 = vshrl.u32 %v1322, 7
          %v1324 = vsub.s32 %v1321, %v1323
          %v1325 = vrot.slane %v1311, %v1324
          %v1326 = vcombine.high %v1302, 0.0
          %v1327 = vcombine.high %v1309, 0.0
          %v1328 = vcombine.high %v1318, 0.0
          %v1329 = vcombine.high %v1325, 0.0
          %v1330 = vcombine.low %v1241, %v1249
          %v1331 = vcombine.high %v1241, %v1249
          %v1333 = vunpack.c.l.s4 1983009808
          %v1334 = vunpack.c.0.s8 %v1333
          %v1335 = vlaneseq
          %v1336 = vshrl.u32 %v1335, 7
          %v1337 = vsub.s32 %v1334, %v1336
          %v1338 = vrot.slane %v1330, %v1337
          %v1340 = vunpack.c.l.s4 1983009808
          %v1341 = vunpack.c.0.s8 %v1340
          %v1342 = vlaneseq
          %v1343 = vshrl.u32 %v1342, 7
          %v1344 = vsub.s32 %v1341, %v1343
          %v1345 = vrot.slane %v1331, %v1344
          %v1346 = vcombine.low %v1245, %v1253
          %v1347 = vcombine.high %v1245, %v1253
          %v1349 = vunpack.c.l.s4 1983009808
          %v1350 = vunpack.c.0.s8 %v1349
          %v1351 = vlaneseq
          %v1352 = vshrl.u32 %v1351, 7
          %v1353 = vsub.s32 %v1350, %v1352
          %v1354 = vrot.slane %v1346, %v1353
          %v1356 = vunpack.c.l.s4 1983009808
          %v1357 = vunpack.c.0.s8 %v1356
          %v1358 = vlaneseq
          %v1359 = vshrl.u32 %v1358, 7
          %v1360 = vsub.s32 %v1357, %v1359
          %v1361 = vrot.slane %v1347, %v1360
          %v1362 = vcombine.low %v1338, %v1354
          %v1363 = vcombine.high %v1338, %v1354
          %v1365 = vunpack.c.l.s4 1934713408
          %v1366 = vunpack.c.0.s8 %v1365
          %v1367 = vlaneseq
          %v1368 = vshrl.u32 %v1367, 7
          %v1369 = vsub.s32 %v1366, %v1368
          %v1370 = vrot.slane %v1362, %v1369
          %v1372 = vunpack.c.l.s4 1934713408
          %v1373 = vunpack.c.0.s8 %v1372
          %v1374 = vlaneseq
          %v1375 = vshrl.u32 %v1374, 7
          %v1376 = vsub.s32 %v1373, %v1375
          %v1377 = vrot.slane %v1363, %v1376
          %v1378 = vcombine.low %v1345, %v1361
          %v1379 = vcombine.high %v1345, %v1361
          %v1381 = vunpack.c.l.s4 1934713408
          %v1382 = vunpack.c.0.s8 %v1381
          %v1383 = vlaneseq
          %v1384 = vshrl.u32 %v1383, 7
          %v1385 = vsub.s32 %v1382, %v1384
          %v1386 = vrot.slane %v1378, %v1385
          %v1388 = vunpack.c.l.s4 1934713408
          %v1389 = vunpack.c.0.s8 %v1388
          %v1390 = vlaneseq
          %v1391 = vshrl.u32 %v1390, 7
          %v1392 = vsub.s32 %v1389, %v1391
          %v1393 = vrot.slane %v1379, %v1392
          %v1394 = vcombine.high %v1370, 0.0
          %v1395 = vcombine.high %v1377, 0.0
          %v1396 = vcombine.high %v1386, 0.0
          %v1397 = vcombine.high %v1393, 0.0
          %v1398 = vcombine.low %v1302, %v1309
          %v1400 = vunpack.c.l.s4 1983009808
          %v1401 = vunpack.c.0.s8 %v1400
          %v1402 = vlaneseq
          %v1403 = vshrl.u32 %v1402, 7
          %v1404 = vsub.s32 %v1401, %v1403
          %v1405 = vrot.slane %v1398, %v1404
          %v1406 = vcombine.low %v1326, %v1327
          %v1408 = vunpack.c.l.s4 1983009808
          %v1409 = vunpack.c.0.s8 %v1408
          %v1410 = vlaneseq
          %v1411 = vshrl.u32 %v1410, 7
          %v1412 = vsub.s32 %v1409, %v1411
          %v1413 = vrot.slane %v1406, %v1412
          %v1414 = vcombine.low %v1318, %v1325
          %v1416 = vunpack.c.l.s4 1983009808
          %v1417 = vunpack.c.0.s8 %v1416
          %v1418 = vlaneseq
          %v1419 = vshrl.u32 %v1418, 7
          %v1420 = vsub.s32 %v1417, %v1419
          %v1421 = vrot.slane %v1414, %v1420
          %v1422 = vcombine.low %v1328, %v1329
          %v1424 = vunpack.c.l.s4 1983009808
          %v1425 = vunpack.c.0.s8 %v1424
          %v1426 = vlaneseq
          %v1427 = vshrl.u32 %v1426, 7
          %v1428 = vsub.s32 %v1425, %v1427
          %v1429 = vrot.slane %v1422, %v1428
          %v1430 = vcombine.low %v1405, %v1413
          %v1431 = vcombine.high %v1405, %v1413
          %v1433 = vunpack.c.l.s4 1934713408
          %v1434 = vunpack.c.0.s8 %v1433
          %v1435 = vlaneseq
          %v1436 = vshrl.u32 %v1435, 7
          %v1437 = vsub.s32 %v1434, %v1436
          %v1438 = vrot.slane %v1430, %v1437
          %v1440 = vunpack.c.l.s4 1934713408
          %v1441 = vunpack.c.0.s8 %v1440
          %v1442 = vlaneseq
          %v1443 = vshrl.u32 %v1442, 7
          %v1444 = vsub.s32 %v1441, %v1443
          %v1445 = vrot.slane %v1431, %v1444
          %v1446 = vcombine.low %v1421, %v1429
          %v1447 = vcombine.high %v1421, %v1429
          %v1449 = vunpack.c.l.s4 1934713408
          %v1450 = vunpack.c.0.s8 %v1449
          %v1451 = vlaneseq
          %v1452 = vshrl.u32 %v1451, 7
          %v1453 = vsub.s32 %v1450, %v1452
          %v1454 = vrot.slane %v1446, %v1453
          %v1456 = vunpack.c.l.s4 1934713408
          %v1457 = vunpack.c.0.s8 %v1456
          %v1458 = vlaneseq
          %v1459 = vshrl.u32 %v1458, 7
          %v1460 = vsub.s32 %v1457, %v1459
          %v1461 = vrot.slane %v1447, %v1460
          %v1462 = vcombine.low %v1438, %v1454
          %v1463 = vcombine.high %v1438, %v1454
          %v1464 = vcombine.low %v1445, %v1461
          %v1465 = vcombine.high %v1445, %v1461
          %v1466 = vcombine.low %v1370, %v1377
          %v1468 = vunpack.c.l.s4 1983009808
          %v1469 = vunpack.c.0.s8 %v1468
          %v1470 = vlaneseq
          %v1471 = vshrl.u32 %v1470, 7
          %v1472 = vsub.s32 %v1469, %v1471
          %v1473 = vrot.slane %v1466, %v1472
          %v1474 = vcombine.low %v1394, %v1395
          %v1476 = vunpack.c.l.s4 1983009808
          %v1477 = vunpack.c.0.s8 %v1476
          %v1478 = vlaneseq
          %v1479 = vshrl.u32 %v1478, 7
          %v1480 = vsub.s32 %v1477, %v1479
          %v1481 = vrot.slane %v1474, %v1480
          %v1482 = vcombine.low %v1386, %v1393
          %v1484 = vunpack.c.l.s4 1983009808
          %v1485 = vunpack.c.0.s8 %v1484
          %v1486 = vlaneseq
          %v1487 = vshrl.u32 %v1486, 7
          %v1488 = vsub.s32 %v1485, %v1487
          %v1489 = vrot.slane %v1482, %v1488
          %v1490 = vcombine.low %v1396, %v1397
          %v1492 = vunpack.c.l.s4 1983009808
          %v1493 = vunpack.c.0.s8 %v1492
          %v1494 = vlaneseq
          %v1495 = vshrl.u32 %v1494, 7
          %v1496 = vsub.s32 %v1493, %v1495
          %v1497 = vrot.slane %v1490, %v1496
          %v1498 = vcombine.low %v1473, %v1481
          %v1499 = vcombine.high %v1473, %v1481
          %v1501 = vunpack.c.l.s4 1934713408
          %v1502 = vunpack.c.0.s8 %v1501
          %v1503 = vlaneseq
          %v1504 = vshrl.u32 %v1503, 7
          %v1505 = vsub.s32 %v1502, %v1504
          %v1506 = vrot.slane %v1498, %v1505
          %v1508 = vunpack.c.l.s4 1934713408
          %v1509 = vunpack.c.0.s8 %v1508
          %v1510 = vlaneseq
          %v1511 = vshrl.u32 %v1510, 7
          %v1512 = vsub.s32 %v1509, %v1511
          %v1513 = vrot.slane %v1499, %v1512
          %v1514 = vcombine.low %v1489, %v1497
          %v1515 = vcombine.high %v1489, %v1497
          %v1517 = vunpack.c.l.s4 1934713408
          %v1518 = vunpack.c.0.s8 %v1517
          %v1519 = vlaneseq
          %v1520 = vshrl.u32 %v1519, 7
          %v1521 = vsub.s32 %v1518, %v1520
          %v1522 = vrot.slane %v1514, %v1521
          %v1524 = vunpack.c.l.s4 1934713408
          %v1525 = vunpack.c.0.s8 %v1524
          %v1526 = vlaneseq
          %v1527 = vshrl.u32 %v1526, 7
          %v1528 = vsub.s32 %v1525, %v1527
          %v1529 = vrot.slane %v1515, %v1528
          %v1530 = vcombine.low %v1506, %v1522
          %v1531 = vcombine.high %v1506, %v1522
          %v1532 = vcombine.low %v1513, %v1529
          %v1533 = vcombine.high %v1513, %v1529
          %v1534 = vpack.c.bf16 %v1530, %v1462
          %v1535 = vpack.c.bf16 %v1531, %v1463
          %v1536 = vpack.c.bf16 %v1532, %v1464
          %v1537 = vpack.c.bf16 %v1533, %v1465
          %1538 = vst.msk [vmem:[#allocation4] sm:$0xff] %vm929, %v1534
          %1539 = vst.msk [vmem:[#allocation4 + $0x8] sm:$0xff] %vm929, %v1535
          %1540 = vst.msk [vmem:[#allocation4 + $0x10] sm:$0xff] %vm929, %v1536
          %1541 = vst.msk [vmem:[#allocation4 + $0x18] sm:$0xff] %vm929, %v1537
        $region80: #{tpu_custom_call.1} parent=75 // pred_fallthru
          _
        %s1542 = smul.u32 %s33, 16
        %s1543 = scalar_lea.vmem %s490, %s1542
        %v1544 = vld [vmem:[%s1543] sm:$0xff]
        %v1545 = vld [vmem:[%s1543 + $0x8] sm:$0xff]
        %s1546 = sshra.s32 %s1542, 4
        %s1547 = sand.u32 %s1542, 15
        %s1548 = smul.addr %s1546, 8
        %s1549 = scalar_lea.vmem [#allocation2], %s1548
        %v1550 = vld [vmem:[%s1549] sm:$0xff]
        %v1551 = vld [vmem:[%s1549 + $0x8] sm:$0xff]
        %v1552 = vld [vmem:[%s1549 + $0x10] sm:$0xff]
        %v1553 = vld [vmem:[%s1549 + $0x18] sm:$0xff]
        %v1554 = vld [vmem:[#allocation3] sm:$0xff]
        %v1555 = vld [vmem:[#allocation3 + $0x8] sm:$0xff]
        %v1556 = vld [vmem:[#allocation3 + $0x10] sm:$0xff]
        %v1557 = vld [vmem:[#allocation3 + $0x18] sm:$0xff]
        %vm1558 = vcmask 64512
        %v1560 = vsel %vm1558, %v1550, 0
        %v1563 = vsel %vm1558, %v1554, 0
        %1565 = vmatprep.subr.bf16.mxu0 0
        %1566 = vmatpush1.bf16.xpose.msra.mxu0 %v1563
        %1567 = vmatprep.subr.bf16.mxu0 0
        %1568 = vmatpush1.bf16.xpose.msra.mxu0 0
        %1569 = vmatprep.subr.bf16.mxu0 0
        %1570 = vmatpush1.bf16.xpose.msra.mxu0 0
        %1571 = vmatprep.subr.bf16.mxu0 0
        %1572 = vmatpush1.bf16.xpose.msra.mxu0 0
        %1573 = vmatprep.subr.bf16.mxu0 0
        %1574 = vmatpush1.bf16.xpose.msra.mxu0 0
        %1575 = vmatprep.subr.bf16.mxu0 0
        %1576 = vmatpush1.bf16.xpose.msra.mxu0 0
        %1577 = vmatprep.subr.bf16.mxu0 0
        %1578 = vmatpush1.bf16.xpose.msra.mxu0 0
        %1579 = vmatprep.subr.bf16.mxu0 0
        %1580 = vmatpush1.bf16.xpose.msra.mxu0 0
        %1581 = vmatprep.subr.bf16.mxu0 0
        %1582 = vmatpush1.bf16.xpose.msra.mxu0 0
        %1583 = vmatprep.subr.bf16.mxu0 0
        %1584 = vmatpush1.bf16.xpose.msra.mxu0 0
        %1585 = vmatprep.subr.bf16.mxu0 0
        %1586 = vmatpush1.bf16.xpose.msra.mxu0 0
        %1587 = vmatprep.subr.bf16.mxu0 0
        %1588 = vmatpush1.bf16.xpose.msra.mxu0 0
        %1589 = vmatprep.subr.bf16.mxu0 0
        %1590 = vmatpush1.bf16.xpose.msra.mxu0 0
        %1591 = vmatprep.subr.bf16.mxu0 0
        %1592 = vmatpush1.bf16.xpose.msra.mxu0 0
        %1593 = vmatprep.subr.bf16.mxu0 0
        %1594 = vmatpush1.bf16.xpose.msra.mxu0 0
        %1595 = vmatprep.subr.bf16.mxu0 0
        %1596 = vmatpush1.bf16.xpose.msra.mxu0 0
        %1597 = vmatprep.mubr.bf16.mxu0 0
        %1598 = vmatmul.mubr.bf16.gmra.mrb[0].mxu0 %v1560
        %v1599 = vpop.f32.mrb[0].mxu0
        %v1600 = vadd.f32 0.0, %v1599
        %v1601 = vpop.f32.mrb[0].mxu0
        %v1602 = vpop.f32.mrb[0].mxu0
        %v1603 = vadd.f32 0.0, %v1602
        %v1604 = vpop.f32.mrb[0].mxu0
        %1605 = vdwg.mxu0
        %v1607 = vsel %vm1558, %v1551, 0
        %v1610 = vsel %vm1558, %v1555, 0
        %1612 = vmatprep.subr.bf16.mxu0 0
        %1613 = vmatpush1.bf16.xpose.msra.mxu0 %v1610
        %1614 = vmatprep.subr.bf16.mxu0 0
        %1615 = vmatpush1.bf16.xpose.msra.mxu0 0
        %1616 = vmatprep.subr.bf16.mxu0 0
        %1617 = vmatpush1.bf16.xpose.msra.mxu0 0
        %1618 = vmatprep.subr.bf16.mxu0 0
        %1619 = vmatpush1.bf16.xpose.msra.mxu0 0
        %1620 = vmatprep.subr.bf16.mxu0 0
        %1621 = vmatpush1.bf16.xpose.msra.mxu0 0
        %1622 = vmatprep.subr.bf16.mxu0 0
        %1623 = vmatpush1.bf16.xpose.msra.mxu0 0
        %1624 = vmatprep.subr.bf16.mxu0 0
        %1625 = vmatpush1.bf16.xpose.msra.mxu0 0
        %1626 = vmatprep.subr.bf16.mxu0 0
        %1627 = vmatpush1.bf16.xpose.msra.mxu0 0
        %1628 = vmatprep.subr.bf16.mxu0 0
        %1629 = vmatpush1.bf16.xpose.msra.mxu0 0
        %1630 = vmatprep.subr.bf16.mxu0 0
        %1631 = vmatpush1.bf16.xpose.msra.mxu0 0
        %1632 = vmatprep.subr.bf16.mxu0 0
        %1633 = vmatpush1.bf16.xpose.msra.mxu0 0
        %1634 = vmatprep.subr.bf16.mxu0 0
        %1635 = vmatpush1.bf16.xpose.msra.mxu0 0
        %1636 = vmatprep.subr.bf16.mxu0 0
        %1637 = vmatpush1.bf16.xpose.msra.mxu0 0
        %1638 = vmatprep.subr.bf16.mxu0 0
        %1639 = vmatpush1.bf16.xpose.msra.mxu0 0
        %1640 = vmatprep.subr.bf16.mxu0 0
        %1641 = vmatpush1.bf16.xpose.msra.mxu0 0
        %1642 = vmatprep.subr.bf16.mxu0 0
        %1643 = vmatpush1.bf16.xpose.msra.mxu0 0
        %1644 = vmatprep.mubr.bf16.mxu0 0
        %1645 = vmatmul.mubr.bf16.gmra.mrb[0].mxu0 %v1607
        %v1646 = vpop.f32.mrb[0].mxu0
        %v1647 = vadd.f32 0.0, %v1646
        %v1648 = vpop.f32.mrb[0].mxu0
        %v1649 = vpop.f32.mrb[0].mxu0
        %v1650 = vadd.f32 0.0, %v1649
        %v1651 = vpop.f32.mrb[0].mxu0
        %1652 = vdwg.mxu0
        %v1654 = vsel %vm1558, %v1552, 0
        %v1657 = vsel %vm1558, %v1556, 0
        %1659 = vmatprep.subr.bf16.mxu0 0
        %1660 = vmatpush1.bf16.xpose.msra.mxu0 %v1657
        %1661 = vmatprep.subr.bf16.mxu0 0
        %1662 = vmatpush1.bf16.xpose.msra.mxu0 0
        %1663 = vmatprep.subr.bf16.mxu0 0
        %1664 = vmatpush1.bf16.xpose.msra.mxu0 0
        %1665 = vmatprep.subr.bf16.mxu0 0
        %1666 = vmatpush1.bf16.xpose.msra.mxu0 0
        %1667 = vmatprep.subr.bf16.mxu0 0
        %1668 = vmatpush1.bf16.xpose.msra.mxu0 0
        %1669 = vmatprep.subr.bf16.mxu0 0
        %1670 = vmatpush1.bf16.xpose.msra.mxu0 0
        %1671 = vmatprep.subr.bf16.mxu0 0
        %1672 = vmatpush1.bf16.xpose.msra.mxu0 0
        %1673 = vmatprep.subr.bf16.mxu0 0
        %1674 = vmatpush1.bf16.xpose.msra.mxu0 0
        %1675 = vmatprep.subr.bf16.mxu0 0
        %1676 = vmatpush1.bf16.xpose.msra.mxu0 0
        %1677 = vmatprep.subr.bf16.mxu0 0
        %1678 = vmatpush1.bf16.xpose.msra.mxu0 0
        %1679 = vmatprep.subr.bf16.mxu0 0
        %1680 = vmatpush1.bf16.xpose.msra.mxu0 0
        %1681 = vmatprep.subr.bf16.mxu0 0
        %1682 = vmatpush1.bf16.xpose.msra.mxu0 0
        %1683 = vmatprep.subr.bf16.mxu0 0
        %1684 = vmatpush1.bf16.xpose.msra.mxu0 0
        %1685 = vmatprep.subr.bf16.mxu0 0
        %1686 = vmatpush1.bf16.xpose.msra.mxu0 0
        %1687 = vmatprep.subr.bf16.mxu0 0
        %1688 = vmatpush1.bf16.xpose.msra.mxu0 0
        %1689 = vmatprep.subr.bf16.mxu0 0
        %1690 = vmatpush1.bf16.xpose.msra.mxu0 0
        %1691 = vmatprep.mubr.bf16.mxu0 0
        %1692 = vmatmul.mubr.bf16.gmra.mrb[0].mxu0 %v1654
        %v1693 = vpop.f32.mrb[0].mxu0
        %v1694 = vadd.f32 0.0, %v1693
        %v1695 = vpop.f32.mrb[0].mxu0
        %v1696 = vpop.f32.mrb[0].mxu0
        %v1697 = vadd.f32 0.0, %v1696
        %v1698 = vpop.f32.mrb[0].mxu0
        %1699 = vdwg.mxu0
        %v1701 = vsel %vm1558, %v1553, 0
        %v1704 = vsel %vm1558, %v1557, 0
        %1706 = vmatprep.subr.bf16.mxu0 0
        %1707 = vmatpush1.bf16.xpose.msra.mxu0 %v1704
        %1708 = vmatprep.subr.bf16.mxu0 0
        %1709 = vmatpush1.bf16.xpose.msra.mxu0 0
        %1710 = vmatprep.subr.bf16.mxu0 0
        %1711 = vmatpush1.bf16.xpose.msra.mxu0 0
        %1712 = vmatprep.subr.bf16.mxu0 0
        %1713 = vmatpush1.bf16.xpose.msra.mxu0 0
        %1714 = vmatprep.subr.bf16.mxu0 0
        %1715 = vmatpush1.bf16.xpose.msra.mxu0 0
        %1716 = vmatprep.subr.bf16.mxu0 0
        %1717 = vmatpush1.bf16.xpose.msra.mxu0 0
        %1718 = vmatprep.subr.bf16.mxu0 0
        %1719 = vmatpush1.bf16.xpose.msra.mxu0 0
        %1720 = vmatprep.subr.bf16.mxu0 0
        %1721 = vmatpush1.bf16.xpose.msra.mxu0 0
        %1722 = vmatprep.subr.bf16.mxu0 0
        %1723 = vmatpush1.bf16.xpose.msra.mxu0 0
        %1724 = vmatprep.subr.bf16.mxu0 0
        %1725 = vmatpush1.bf16.xpose.msra.mxu0 0
        %1726 = vmatprep.subr.bf16.mxu0 0
        %1727 = vmatpush1.bf16.xpose.msra.mxu0 0
        %1728 = vmatprep.subr.bf16.mxu0 0
        %1729 = vmatpush1.bf16.xpose.msra.mxu0 0
        %1730 = vmatprep.subr.bf16.mxu0 0
        %1731 = vmatpush1.bf16.xpose.msra.mxu0 0
        %1732 = vmatprep.subr.bf16.mxu0 0
        %1733 = vmatpush1.bf16.xpose.msra.mxu0 0
        %1734 = vmatprep.subr.bf16.mxu0 0
        %1735 = vmatpush1.bf16.xpose.msra.mxu0 0
        %1736 = vmatprep.subr.bf16.mxu0 0
        %1737 = vmatpush1.bf16.xpose.msra.mxu0 0
        %1738 = vmatprep.mubr.bf16.mxu0 0
        %1739 = vmatmul.mubr.bf16.gmra.mrb[0].mxu0 %v1701
        %v1740 = vpop.f32.mrb[0].mxu0
        %v1741 = vadd.f32 0.0, %v1740
        %v1742 = vpop.f32.mrb[0].mxu0
        %v1743 = vpop.f32.mrb[0].mxu0
        %v1744 = vadd.f32 0.0, %v1743
        %v1745 = vpop.f32.mrb[0].mxu0
        %1746 = vdwg.mxu0
        %v1747 = vmul.f32 %v1600, 0.35355338
        %v1748 = vmul.f32 %v1603, 0.35355338
        %v1749 = vmul.f32 %v1647, 0.35355338
        %v1750 = vmul.f32 %v1650, 0.35355338
        %v1751 = vmul.f32 %v1694, 0.35355338
        %v1752 = vmul.f32 %v1697, 0.35355338
        %v1753 = vmul.f32 %v1741, 0.35355338
        %v1754 = vmul.f32 %v1744, 0.35355338
        %v1755 = vld [vmem:[%s493] sm:$0x1]
        %v1757 = vlaneseq
        %v1758 = vshrl.u32 %v1757, 7
        %v1759 = vsub.s32 0, %v1758
        %v1760 = vrot.slane %v1755, %v1759
        %v1762 = vadd.f32 %v1747, %v1760
        %v1763 = vadd.f32 %v1748, %v1760
        %v1764 = vadd.f32 %v1749, %v1760
        %v1765 = vadd.f32 %v1750, %v1760
        %v1766 = vadd.f32 %v1751, %v1760
        %v1767 = vadd.f32 %v1752, %v1760
        %v1768 = vadd.f32 %v1753, %v1760
        %v1769 = vadd.f32 %v1754, %v1760
        %vm1770 = vcmask 130048
        %v1771 = vsel %vm1770, %v1762, -inf
        %1772 = vmax.xlane.f32.xlu0 %v1771
        %v1773 = vpop.xlane.xlu0 %1772
        %v1774 = vsel %vm1770, %v1763, -inf
        %1775 = vmax.xlane.f32.xlu0 %v1774
        %v1776 = vpop.xlane.xlu0 %1775
        %v1777 = vsel %vm1770, %v1764, -inf
        %1778 = vmax.xlane.f32.xlu0 %v1777
        %v1779 = vpop.xlane.xlu0 %1778
        %v1780 = vsel %vm1770, %v1765, -inf
        %1781 = vmax.xlane.f32.xlu0 %v1780
        %v1782 = vpop.xlane.xlu0 %1781
        %v1783 = vsel %vm1770, %v1766, -inf
        %1784 = vmax.xlane.f32.xlu0 %v1783
        %v1785 = vpop.xlane.xlu0 %1784
        %v1786 = vsel %vm1770, %v1767, -inf
        %1787 = vmax.xlane.f32.xlu0 %v1786
        %v1788 = vpop.xlane.xlu0 %1787
        %v1789 = vsel %vm1770, %v1768, -inf
        %1790 = vmax.xlane.f32.xlu0 %v1789
        %v1791 = vpop.xlane.xlu0 %1790
        %v1792 = vsel %vm1770, %v1769, -inf
        %1793 = vmax.xlane.f32.xlu0 %v1792
        %v1794 = vpop.xlane.xlu0 %1793
        %v1795 = vsub.f32 %v1762, %v1773
        %v1796 = vsub.f32 %v1763, %v1776
        %v1797 = vsub.f32 %v1764, %v1779
        %v1798 = vsub.f32 %v1765, %v1782
        %v1799 = vsub.f32 %v1766, %v1785
        %v1800 = vsub.f32 %v1767, %v1788
        %v1801 = vsub.f32 %v1768, %v1791
        %v1802 = vsub.f32 %v1769, %v1794
        %v1803 = vmul.f32 %v1795, 1.442695
        %v1804 = vpow.pop %v1803
        %v1805 = vmul.f32 %v1796, 1.442695
        %v1806 = vpow.pop %v1805
        %v1807 = vmul.f32 %v1797, 1.442695
        %v1808 = vpow.pop %v1807
        %v1809 = vmul.f32 %v1798, 1.442695
        %v1810 = vpow.pop %v1809
        %v1811 = vmul.f32 %v1799, 1.442695
        %v1812 = vpow.pop %v1811
        %v1813 = vmul.f32 %v1800, 1.442695
        %v1814 = vpow.pop %v1813
        %v1815 = vmul.f32 %v1801, 1.442695
        %v1816 = vpow.pop %v1815
        %v1817 = vmul.f32 %v1802, 1.442695
        %v1818 = vpow.pop %v1817
        %v1819 = vsel %vm1770, %v1804, 0.0
        %1820 = vadd.xlane.f32.xlu0 %v1819
        %v1821 = vpop.xlane.xlu0 %1820
        %v1822 = vsel %vm1770, %v1806, 0.0
        %1823 = vadd.xlane.f32.xlu0 %v1822
        %v1824 = vpop.xlane.xlu0 %1823
        %v1825 = vsel %vm1770, %v1808, 0.0
        %1826 = vadd.xlane.f32.xlu0 %v1825
        %v1827 = vpop.xlane.xlu0 %1826
        %v1828 = vsel %vm1770, %v1810, 0.0
        %1829 = vadd.xlane.f32.xlu0 %v1828
        %v1830 = vpop.xlane.xlu0 %1829
        %v1831 = vsel %vm1770, %v1812, 0.0
        %1832 = vadd.xlane.f32.xlu0 %v1831
        %v1833 = vpop.xlane.xlu0 %1832
        %v1834 = vsel %vm1770, %v1814, 0.0
        %1835 = vadd.xlane.f32.xlu0 %v1834
        %v1836 = vpop.xlane.xlu0 %1835
        %v1837 = vsel %vm1770, %v1816, 0.0
        %1838 = vadd.xlane.f32.xlu0 %v1837
        %v1839 = vpop.xlane.xlu0 %1838
        %v1840 = vsel %vm1770, %v1818, 0.0
        %1841 = vadd.xlane.f32.xlu0 %v1840
        %v1842 = vpop.xlane.xlu0 %1841
        %v1843 = vrcp.pop %v1821
        %v1844 = vrcp.pop %v1824
        %v1845 = vrcp.pop %v1827
        %v1846 = vrcp.pop %v1830
        %v1847 = vrcp.pop %v1833
        %v1848 = vrcp.pop %v1836
        %v1849 = vrcp.pop %v1839
        %v1850 = vrcp.pop %v1842
        %v1851 = vmul.f32 %v1804, %v1843
        %v1852 = vmul.f32 %v1806, %v1844
        %v1853 = vmul.f32 %v1808, %v1845
        %v1854 = vmul.f32 %v1810, %v1846
        %v1855 = vmul.f32 %v1812, %v1847
        %v1856 = vmul.f32 %v1814, %v1848
        %v1857 = vmul.f32 %v1816, %v1849
        %v1858 = vmul.f32 %v1818, %v1850
        %v1859 = vpack.c.bf16 %v1852, %v1851
        %v1860 = vpack.c.bf16 %v1854, %v1853
        %v1861 = vpack.c.bf16 %v1856, %v1855
        %v1862 = vpack.c.bf16 %v1858, %v1857
        %v1863 = vld [vmem:[#allocation4] sm:$0xff]
        %v1864 = vld [vmem:[#allocation4 + $0x8] sm:$0xff]
        %v1865 = vld [vmem:[#allocation4 + $0x10] sm:$0xff]
        %v1866 = vld [vmem:[#allocation4 + $0x18] sm:$0xff]
        %v1868 = vsel %vm1770, %v1859, 0
        %1870 = vmatprep.subr.bf16.mxu0 0
        %1871 = vmatpush1.bf16.msra.mxu0 %v1863
        %1872 = vmatprep.subr.bf16.mxu0 0
        %1873 = vmatpush1.bf16.msra.mxu0 0
        %1874 = vmatprep.subr.bf16.mxu0 0
        %1875 = vmatpush1.bf16.msra.mxu0 0
        %1876 = vmatprep.subr.bf16.mxu0 0
        %1877 = vmatpush1.bf16.msra.mxu0 0
        %1878 = vmatprep.subr.bf16.mxu0 0
        %1879 = vmatpush1.bf16.msra.mxu0 0
        %1880 = vmatprep.subr.bf16.mxu0 0
        %1881 = vmatpush1.bf16.msra.mxu0 0
        %1882 = vmatprep.subr.bf16.mxu0 0
        %1883 = vmatpush1.bf16.msra.mxu0 0
        %1884 = vmatprep.subr.bf16.mxu0 0
        %1885 = vmatpush1.bf16.msra.mxu0 0
        %1886 = vmatprep.subr.bf16.mxu0 0
        %1887 = vmatpush1.bf16.msra.mxu0 0
        %1888 = vmatprep.subr.bf16.mxu0 0
        %1889 = vmatpush1.bf16.msra.mxu0 0
        %1890 = vmatprep.subr.bf16.mxu0 0
        %1891 = vmatpush1.bf16.msra.mxu0 0
        %1892 = vmatprep.subr.bf16.mxu0 0
        %1893 = vmatpush1.bf16.msra.mxu0 0
        %1894 = vmatprep.subr.bf16.mxu0 0
        %1895 = vmatpush1.bf16.msra.mxu0 0
        %1896 = vmatprep.subr.bf16.mxu0 0
        %1897 = vmatpush1.bf16.msra.mxu0 0
        %1898 = vmatprep.subr.bf16.mxu0 0
        %1899 = vmatpush1.bf16.msra.mxu0 0
        %1900 = vmatprep.subr.bf16.mxu0 0
        %1901 = vmatpush1.bf16.msra.mxu0 0
        %1902 = vmatprep.mubr.bf16.mxu0 0
        %1903 = vmatmul.mubr.bf16.gmra.mrb[0].mxu0 %v1868
        %v1904 = vpop.f32.mrb[0].mxu0
        %v1905 = vadd.f32 0.0, %v1904
        %v1906 = vpop.f32.mrb[0].mxu0
        %v1907 = vpop.f32.mrb[0].mxu0
        %v1908 = vadd.f32 0.0, %v1907
        %v1909 = vpop.f32.mrb[0].mxu0
        %1910 = vdwg.mxu0
        %v1912 = vsel %vm1770, %v1860, 0
        %1914 = vmatprep.subr.bf16.mxu0 0
        %1915 = vmatpush1.bf16.msra.mxu0 %v1864
        %1916 = vmatprep.subr.bf16.mxu0 0
        %1917 = vmatpush1.bf16.msra.mxu0 0
        %1918 = vmatprep.subr.bf16.mxu0 0
        %1919 = vmatpush1.bf16.msra.mxu0 0
        %1920 = vmatprep.subr.bf16.mxu0 0
        %1921 = vmatpush1.bf16.msra.mxu0 0
        %1922 = vmatprep.subr.bf16.mxu0 0
        %1923 = vmatpush1.bf16.msra.mxu0 0
        %1924 = vmatprep.subr.bf16.mxu0 0
        %1925 = vmatpush1.bf16.msra.mxu0 0
        %1926 = vmatprep.subr.bf16.mxu0 0
        %1927 = vmatpush1.bf16.msra.mxu0 0
        %1928 = vmatprep.subr.bf16.mxu0 0
        %1929 = vmatpush1.bf16.msra.mxu0 0
        %1930 = vmatprep.subr.bf16.mxu0 0
        %1931 = vmatpush1.bf16.msra.mxu0 0
        %1932 = vmatprep.subr.bf16.mxu0 0
        %1933 = vmatpush1.bf16.msra.mxu0 0
        %1934 = vmatprep.subr.bf16.mxu0 0
        %1935 = vmatpush1.bf16.msra.mxu0 0
        %1936 = vmatprep.subr.bf16.mxu0 0
        %1937 = vmatpush1.bf16.msra.mxu0 0
        %1938 = vmatprep.subr.bf16.mxu0 0
        %1939 = vmatpush1.bf16.msra.mxu0 0
        %1940 = vmatprep.subr.bf16.mxu0 0
        %1941 = vmatpush1.bf16.msra.mxu0 0
        %1942 = vmatprep.subr.bf16.mxu0 0
        %1943 = vmatpush1.bf16.msra.mxu0 0
        %1944 = vmatprep.subr.bf16.mxu0 0
        %1945 = vmatpush1.bf16.msra.mxu0 0
        %1946 = vmatprep.mubr.bf16.mxu0 0
        %1947 = vmatmul.mubr.bf16.gmra.mrb[0].mxu0 %v1912
        %v1948 = vpop.f32.mrb[0].mxu0
        %v1949 = vadd.f32 0.0, %v1948
        %v1950 = vpop.f32.mrb[0].mxu0
        %v1951 = vpop.f32.mrb[0].mxu0
        %v1952 = vadd.f32 0.0, %v1951
        %v1953 = vpop.f32.mrb[0].mxu0
        %1954 = vdwg.mxu0
        %v1956 = vsel %vm1770, %v1861, 0
        %1958 = vmatprep.subr.bf16.mxu0 0
        %1959 = vmatpush1.bf16.msra.mxu0 %v1865
        %1960 = vmatprep.subr.bf16.mxu0 0
        %1961 = vmatpush1.bf16.msra.mxu0 0
        %1962 = vmatprep.subr.bf16.mxu0 0
        %1963 = vmatpush1.bf16.msra.mxu0 0
        %1964 = vmatprep.subr.bf16.mxu0 0
        %1965 = vmatpush1.bf16.msra.mxu0 0
        %1966 = vmatprep.subr.bf16.mxu0 0
        %1967 = vmatpush1.bf16.msra.mxu0 0
        %1968 = vmatprep.subr.bf16.mxu0 0
        %1969 = vmatpush1.bf16.msra.mxu0 0
        %1970 = vmatprep.subr.bf16.mxu0 0
        %1971 = vmatpush1.bf16.msra.mxu0 0
        %1972 = vmatprep.subr.bf16.mxu0 0
        %1973 = vmatpush1.bf16.msra.mxu0 0
        %1974 = vmatprep.subr.bf16.mxu0 0
        %1975 = vmatpush1.bf16.msra.mxu0 0
        %1976 = vmatprep.subr.bf16.mxu0 0
        %1977 = vmatpush1.bf16.msra.mxu0 0
        %1978 = vmatprep.subr.bf16.mxu0 0
        %1979 = vmatpush1.bf16.msra.mxu0 0
        %1980 = vmatprep.subr.bf16.mxu0 0
        %1981 = vmatpush1.bf16.msra.mxu0 0
        %1982 = vmatprep.subr.bf16.mxu0 0
        %1983 = vmatpush1.bf16.msra.mxu0 0
        %1984 = vmatprep.subr.bf16.mxu0 0
        %1985 = vmatpush1.bf16.msra.mxu0 0
        %1986 = vmatprep.subr.bf16.mxu0 0
        %1987 = vmatpush1.bf16.msra.mxu0 0
        %1988 = vmatprep.subr.bf16.mxu0 0
        %1989 = vmatpush1.bf16.msra.mxu0 0
        %1990 = vmatprep.mubr.bf16.mxu0 0
        %1991 = vmatmul.mubr.bf16.gmra.mrb[0].mxu0 %v1956
        %v1992 = vpop.f32.mrb[0].mxu0
        %v1993 = vadd.f32 0.0, %v1992
        %v1994 = vpop.f32.mrb[0].mxu0
        %v1995 = vpop.f32.mrb[0].mxu0
        %v1996 = vadd.f32 0.0, %v1995
        %v1997 = vpop.f32.mrb[0].mxu0
        %1998 = vdwg.mxu0
        %v2000 = vsel %vm1770, %v1862, 0
        %2002 = vmatprep.subr.bf16.mxu0 0
        %2003 = vmatpush1.bf16.msra.mxu0 %v1866
        %2004 = vmatprep.subr.bf16.mxu0 0
        %2005 = vmatpush1.bf16.msra.mxu0 0
        %2006 = vmatprep.subr.bf16.mxu0 0
        %2007 = vmatpush1.bf16.msra.mxu0 0
        %2008 = vmatprep.subr.bf16.mxu0 0
        %2009 = vmatpush1.bf16.msra.mxu0 0
        %2010 = vmatprep.subr.bf16.mxu0 0
        %2011 = vmatpush1.bf16.msra.mxu0 0
        %2012 = vmatprep.subr.bf16.mxu0 0
        %2013 = vmatpush1.bf16.msra.mxu0 0
        %2014 = vmatprep.subr.bf16.mxu0 0
        %2015 = vmatpush1.bf16.msra.mxu0 0
        %2016 = vmatprep.subr.bf16.mxu0 0
        %2017 = vmatpush1.bf16.msra.mxu0 0
        %2018 = vmatprep.subr.bf16.mxu0 0
        %2019 = vmatpush1.bf16.msra.mxu0 0
        %2020 = vmatprep.subr.bf16.mxu0 0
        %2021 = vmatpush1.bf16.msra.mxu0 0
        %2022 = vmatprep.subr.bf16.mxu0 0
        %2023 = vmatpush1.bf16.msra.mxu0 0
        %2024 = vmatprep.subr.bf16.mxu0 0
        %2025 = vmatpush1.bf16.msra.mxu0 0
        %2026 = vmatprep.subr.bf16.mxu0 0
        %2027 = vmatpush1.bf16.msra.mxu0 0
        %2028 = vmatprep.subr.bf16.mxu0 0
        %2029 = vmatpush1.bf16.msra.mxu0 0
        %2030 = vmatprep.subr.bf16.mxu0 0
        %2031 = vmatpush1.bf16.msra.mxu0 0
        %2032 = vmatprep.subr.bf16.mxu0 0
        %2033 = vmatpush1.bf16.msra.mxu0 0
        %2034 = vmatprep.mubr.bf16.mxu0 0
        %2035 = vmatmul.mubr.bf16.gmra.mrb[0].mxu0 %v2000
        %v2036 = vpop.f32.mrb[0].mxu0
        %v2037 = vadd.f32 0.0, %v2036
        %v2038 = vpop.f32.mrb[0].mxu0
        %v2039 = vpop.f32.mrb[0].mxu0
        %v2040 = vadd.f32 0.0, %v2039
        %v2041 = vpop.f32.mrb[0].mxu0
        %2042 = vdwg.mxu0
        %v2043 = vpack.c.bf16 %v1908, %v1905
        %v2044 = vpack.c.bf16 %v1952, %v1949
        %v2045 = vpack.c.bf16 %v1996, %v1993
        %v2046 = vpack.c.bf16 %v2040, %v2037
        %v2047 = vld [vmem:[%s4] sm:$0xf]
        %v2048 = vld [vmem:[%s4 + $0x4] sm:$0xf]
        %v2049 = vld [vmem:[%s4 + $0x8] sm:$0xf]
        %v2050 = vld [vmem:[%s4 + $0xc] sm:$0xf]
        %v2052 = vsel %vm1558, %v2043, 0
        %vm2054 = vcmask 1043456
        %v2056 = vsel %vm2054, %v2047, 0
        %2058 = vmatprep.subr.bf16.mxu0 0
        %2059 = vmatpush1.bf16.msra.mxu0 %v2056
        %2060 = vmatprep.subr.bf16.mxu0 0
        %2061 = vmatpush1.bf16.msra.mxu0 0
        %2062 = vmatprep.subr.bf16.mxu0 0
        %2063 = vmatpush1.bf16.msra.mxu0 0
        %2064 = vmatprep.subr.bf16.mxu0 0
        %2065 = vmatpush1.bf16.msra.mxu0 0
        %2066 = vmatprep.subr.bf16.mxu0 0
        %2067 = vmatpush1.bf16.msra.mxu0 0
        %2068 = vmatprep.subr.bf16.mxu0 0
        %2069 = vmatpush1.bf16.msra.mxu0 0
        %2070 = vmatprep.subr.bf16.mxu0 0
        %2071 = vmatpush1.bf16.msra.mxu0 0
        %2072 = vmatprep.subr.bf16.mxu0 0
        %2073 = vmatpush1.bf16.msra.mxu0 0
        %2074 = vmatprep.subr.bf16.mxu0 0
        %2075 = vmatpush1.bf16.msra.mxu0 0
        %2076 = vmatprep.subr.bf16.mxu0 0
        %2077 = vmatpush1.bf16.msra.mxu0 0
        %2078 = vmatprep.subr.bf16.mxu0 0
        %2079 = vmatpush1.bf16.msra.mxu0 0
        %2080 = vmatprep.subr.bf16.mxu0 0
        %2081 = vmatpush1.bf16.msra.mxu0 0
        %2082 = vmatprep.subr.bf16.mxu0 0
        %2083 = vmatpush1.bf16.msra.mxu0 0
        %2084 = vmatprep.subr.bf16.mxu0 0
        %2085 = vmatpush1.bf16.msra.mxu0 0
        %2086 = vmatprep.subr.bf16.mxu0 0
        %2087 = vmatpush1.bf16.msra.mxu0 0
        %2088 = vmatprep.subr.bf16.mxu0 0
        %2089 = vmatpush1.bf16.msra.mxu0 0
        %2090 = vmatprep.mubr.bf16.mxu0 0
        %2091 = vmatmul.mubr.bf16.gmra.mrb[0].mxu0 %v2052
        %v2092 = vpop.f32.mrb[0].mxu0
        %v2093 = vadd.f32 0.0, %v2092
        %v2094 = vpop.f32.mrb[0].mxu0
        %v2095 = vpop.f32.mrb[0].mxu0
        %v2096 = vadd.f32 0.0, %v2095
        %v2097 = vpop.f32.mrb[0].mxu0
        %2098 = vdwg.mxu0
        %v2100 = vsel %vm1558, %v2044, 0
        %v2103 = vsel %vm2054, %v2048, 0
        %2105 = vmatprep.subr.bf16.mxu0 0
        %2106 = vmatpush1.bf16.msra.mxu0 %v2103
        %2107 = vmatprep.subr.bf16.mxu0 0
        %2108 = vmatpush1.bf16.msra.mxu0 0
        %2109 = vmatprep.subr.bf16.mxu0 0
        %2110 = vmatpush1.bf16.msra.mxu0 0
        %2111 = vmatprep.subr.bf16.mxu0 0
        %2112 = vmatpush1.bf16.msra.mxu0 0
        %2113 = vmatprep.subr.bf16.mxu0 0
        %2114 = vmatpush1.bf16.msra.mxu0 0
        %2115 = vmatprep.subr.bf16.mxu0 0
        %2116 = vmatpush1.bf16.msra.mxu0 0
        %2117 = vmatprep.subr.bf16.mxu0 0
        %2118 = vmatpush1.bf16.msra.mxu0 0
        %2119 = vmatprep.subr.bf16.mxu0 0
        %2120 = vmatpush1.bf16.msra.mxu0 0
        %2121 = vmatprep.subr.bf16.mxu0 0
        %2122 = vmatpush1.bf16.msra.mxu0 0
        %2123 = vmatprep.subr.bf16.mxu0 0
        %2124 = vmatpush1.bf16.msra.mxu0 0
        %2125 = vmatprep.subr.bf16.mxu0 0
        %2126 = vmatpush1.bf16.msra.mxu0 0
        %2127 = vmatprep.subr.bf16.mxu0 0
        %2128 = vmatpush1.bf16.msra.mxu0 0
        %2129 = vmatprep.subr.bf16.mxu0 0
        %2130 = vmatpush1.bf16.msra.mxu0 0
        %2131 = vmatprep.subr.bf16.mxu0 0
        %2132 = vmatpush1.bf16.msra.mxu0 0
        %2133 = vmatprep.subr.bf16.mxu0 0
        %2134 = vmatpush1.bf16.msra.mxu0 0
        %2135 = vmatprep.subr.bf16.mxu0 0
        %2136 = vmatpush1.bf16.msra.mxu0 0
        %2137 = vmatprep.mubr.bf16.mxu0 0
        %2138 = vmatmul.mubr.bf16.gmra.mrb[0].mxu0 %v2100
        %v2139 = vpop.f32.mrb[0].mxu0
        %v2140 = vadd.f32 0.0, %v2139
        %v2141 = vpop.f32.mrb[0].mxu0
        %v2142 = vpop.f32.mrb[0].mxu0
        %v2143 = vadd.f32 0.0, %v2142
        %v2144 = vpop.f32.mrb[0].mxu0
        %2145 = vdwg.mxu0
        %v2147 = vsel %vm1558, %v2045, 0
        %v2150 = vsel %vm2054, %v2049, 0
        %2152 = vmatprep.subr.bf16.mxu0 0
        %2153 = vmatpush1.bf16.msra.mxu0 %v2150
        %2154 = vmatprep.subr.bf16.mxu0 0
        %2155 = vmatpush1.bf16.msra.mxu0 0
        %2156 = vmatprep.subr.bf16.mxu0 0
        %2157 = vmatpush1.bf16.msra.mxu0 0
        %2158 = vmatprep.subr.bf16.mxu0 0
        %2159 = vmatpush1.bf16.msra.mxu0 0
        %2160 = vmatprep.subr.bf16.mxu0 0
        %2161 = vmatpush1.bf16.msra.mxu0 0
        %2162 = vmatprep.subr.bf16.mxu0 0
        %2163 = vmatpush1.bf16.msra.mxu0 0
        %2164 = vmatprep.subr.bf16.mxu0 0
        %2165 = vmatpush1.bf16.msra.mxu0 0
        %2166 = vmatprep.subr.bf16.mxu0 0
        %2167 = vmatpush1.bf16.msra.mxu0 0
        %2168 = vmatprep.subr.bf16.mxu0 0
        %2169 = vmatpush1.bf16.msra.mxu0 0
        %2170 = vmatprep.subr.bf16.mxu0 0
        %2171 = vmatpush1.bf16.msra.mxu0 0
        %2172 = vmatprep.subr.bf16.mxu0 0
        %2173 = vmatpush1.bf16.msra.mxu0 0
        %2174 = vmatprep.subr.bf16.mxu0 0
        %2175 = vmatpush1.bf16.msra.mxu0 0
        %2176 = vmatprep.subr.bf16.mxu0 0
        %2177 = vmatpush1.bf16.msra.mxu0 0
        %2178 = vmatprep.subr.bf16.mxu0 0
        %2179 = vmatpush1.bf16.msra.mxu0 0
        %2180 = vmatprep.subr.bf16.mxu0 0
        %2181 = vmatpush1.bf16.msra.mxu0 0
        %2182 = vmatprep.subr.bf16.mxu0 0
        %2183 = vmatpush1.bf16.msra.mxu0 0
        %2184 = vmatprep.mubr.bf16.mxu0 0
        %2185 = vmatmul.mubr.bf16.gmra.mrb[0].mxu0 %v2147
        %v2186 = vpop.f32.mrb[0].mxu0
        %v2187 = vadd.f32 0.0, %v2186
        %v2188 = vpop.f32.mrb[0].mxu0
        %v2189 = vpop.f32.mrb[0].mxu0
        %v2190 = vadd.f32 0.0, %v2189
        %v2191 = vpop.f32.mrb[0].mxu0
        %2192 = vdwg.mxu0
        %v2194 = vsel %vm1558, %v2046, 0
        %v2197 = vsel %vm2054, %v2050, 0
        %2199 = vmatprep.subr.bf16.mxu0 0
        %2200 = vmatpush1.bf16.msra.mxu0 %v2197
        %2201 = vmatprep.subr.bf16.mxu0 0
        %2202 = vmatpush1.bf16.msra.mxu0 0
        %2203 = vmatprep.subr.bf16.mxu0 0
        %2204 = vmatpush1.bf16.msra.mxu0 0
        %2205 = vmatprep.subr.bf16.mxu0 0
        %2206 = vmatpush1.bf16.msra.mxu0 0
        %2207 = vmatprep.subr.bf16.mxu0 0
        %2208 = vmatpush1.bf16.msra.mxu0 0
        %2209 = vmatprep.subr.bf16.mxu0 0
        %2210 = vmatpush1.bf16.msra.mxu0 0
        %2211 = vmatprep.subr.bf16.mxu0 0
        %2212 = vmatpush1.bf16.msra.mxu0 0
        %2213 = vmatprep.subr.bf16.mxu0 0
        %2214 = vmatpush1.bf16.msra.mxu0 0
        %2215 = vmatprep.subr.bf16.mxu0 0
        %2216 = vmatpush1.bf16.msra.mxu0 0
        %2217 = vmatprep.subr.bf16.mxu0 0
        %2218 = vmatpush1.bf16.msra.mxu0 0
        %2219 = vmatprep.subr.bf16.mxu0 0
        %2220 = vmatpush1.bf16.msra.mxu0 0
        %2221 = vmatprep.subr.bf16.mxu0 0
        %2222 = vmatpush1.bf16.msra.mxu0 0
        %2223 = vmatprep.subr.bf16.mxu0 0
        %2224 = vmatpush1.bf16.msra.mxu0 0
        %2225 = vmatprep.subr.bf16.mxu0 0
        %2226 = vmatpush1.bf16.msra.mxu0 0
        %2227 = vmatprep.subr.bf16.mxu0 0
        %2228 = vmatpush1.bf16.msra.mxu0 0
        %2229 = vmatprep.subr.bf16.mxu0 0
        %2230 = vmatpush1.bf16.msra.mxu0 0
        %2231 = vmatprep.mubr.bf16.mxu0 0
        %2232 = vmatmul.mubr.bf16.gmra.mrb[0].mxu0 %v2194
        %v2233 = vpop.f32.mrb[0].mxu0
        %v2234 = vadd.f32 0.0, %v2233
        %v2235 = vpop.f32.mrb[0].mxu0
        %v2236 = vpop.f32.mrb[0].mxu0
        %v2237 = vadd.f32 0.0, %v2236
        %v2238 = vpop.f32.mrb[0].mxu0
        %2239 = vdwg.mxu0
        %vm2240 = vcmask 261120
        %v2241 = vsel %vm2240, %v2093, 0.0
        %v2242 = vsel %vm2240, %v2140, 0.0
        %v2243 = vadd.f32 %v2241, %v2242
        %v2244 = vsel %vm2240, %v2187, 0.0
        %v2245 = vadd.f32 %v2243, %v2244
        %v2246 = vsel %vm2240, %v2234, 0.0
        %v2247 = vadd.f32 %v2245, %v2246
        %v2248 = vsel %vm2240, %v2096, 0.0
        %v2249 = vsel %vm2240, %v2143, 0.0
        %v2250 = vadd.f32 %v2248, %v2249
        %v2251 = vsel %vm2240, %v2190, 0.0
        %v2252 = vadd.f32 %v2250, %v2251
        %v2253 = vsel %vm2240, %v2237, 0.0
        %v2254 = vadd.f32 %v2252, %v2253
        %v2255 = vld [vmem:[%s5] sm:$0x1]
        %v2257 = vlaneseq
        %v2258 = vshrl.u32 %v2257, 7
        %v2259 = vsub.s32 0, %v2258
        %v2260 = vrot.slane %v2255, %v2259
        %v2262 = vadd.f32 %v2247, %v2260
        %v2263 = vadd.f32 %v2254, %v2260
        %v2264 = vadd.f32 %v1544, %v2262
        %v2265 = vadd.f32 %v1545, %v2263
        %v2266 = vld [vmem:[%s8] sm:$0x1]
        %v2267 = vld [vmem:[%s9] sm:$0x1]
        %v2268 = vsel %vm2240, %v2264, 0.0
        %2269 = vadd.xlane.f32.xlu0 %v2268
        %v2270 = vpop.xlane.xlu0 %2269
        %v2271 = vsel %vm2240, %v2265, 0.0
        %2272 = vadd.xlane.f32.xlu0 %v2271
        %v2273 = vpop.xlane.xlu0 %2272
        %v2274 = vrcp.pop 32.0
        %v2275 = vmul.f32 %v2270, %v2274
        %v2276 = vmul.f32 %v2273, %v2274
        %v2277 = vsub.f32 %v2264, %v2275
        %v2278 = vsub.f32 %v2265, %v2276
        %v2279 = vmul.f32 %v2277, %v2277
        %v2280 = vmul.f32 %v2278, %v2278
        %v2281 = vsel %vm2240, %v2279, 0.0
        %2282 = vadd.xlane.f32.xlu0 %v2281
        %v2283 = vpop.xlane.xlu0 %2282
        %v2284 = vsel %vm2240, %v2280, 0.0
        %2285 = vadd.xlane.f32.xlu0 %v2284
        %v2286 = vpop.xlane.xlu0 %2285
        %v2287 = vrcp.pop 31.0
        %v2288 = vmul.f32 %v2283, %v2287
        %v2289 = vmul.f32 %v2286, %v2287
        %v2290 = vrsqrt.pop %v2288
        %v2291 = vmul.f32 %v2288, %v2290
        %vm2292 = vcmp.eq.f32.partialorder %v2288, inf
        %v2293 = vsel %vm2292, %v2288, %v2291
        %vm2294 = vcmp.eq.f32.partialorder %v2288, 0.0
        %v2295 = vand.u32 %v2288, 2147483648
        %v2296 = vsel %vm2294, %v2295, %v2293
        %v2297 = vrsqrt.pop %v2289
        %v2298 = vmul.f32 %v2289, %v2297
        %vm2299 = vcmp.eq.f32.partialorder %v2289, inf
        %v2300 = vsel %vm2299, %v2289, %v2298
        %vm2301 = vcmp.eq.f32.partialorder %v2289, 0.0
        %v2302 = vand.u32 %v2289, 2147483648
        %v2303 = vsel %vm2301, %v2302, %v2300
        %v2304 = vadd.f32 %v2296, 1e-06
        %v2305 = vadd.f32 %v2303, 1e-06
        %v2306 = vrcp.pop %v2304
        %v2307 = vmul.f32 1.0, %v2306
        %v2308 = vrcp.pop %v2305
        %v2309 = vmul.f32 1.0, %v2308
        %v2310 = vmul.f32 %v2277, %v2307
        %v2311 = vmul.f32 %v2278, %v2309
        %v2313 = vlaneseq
        %v2314 = vshrl.u32 %v2313, 7
        %v2315 = vsub.s32 0, %v2314
        %v2316 = vrot.slane %v2266, %v2315
        %v2318 = vmul.f32 %v2316, %v2310
        %v2319 = vmul.f32 %v2316, %v2311
        %v2321 = vlaneseq
        %v2322 = vshrl.u32 %v2321, 7
        %v2323 = vsub.s32 0, %v2322
        %v2324 = vrot.slane %v2267, %v2323
        %v2326 = vadd.f32 %v2318, %v2324
        %v2327 = vadd.f32 %v2319, %v2324
        %v2328 = vpack.c.bf16 %v2327, %v2326
        %v2329 = vld [vmem:[%s10] sm:$0xf]
        %v2330 = vld [vmem:[%s10 + $0x4] sm:$0xf]
        %v2331 = vld [vmem:[%s10 + $0x8] sm:$0xf]
        %v2332 = vld [vmem:[%s10 + $0xc] sm:$0xf]
        %v2333 = vld [vmem:[%s11] sm:$0x1]
        %v2335 = vlaneseq
        %v2336 = vshrl.u32 %v2335, 7
        %v2337 = vsub.s32 0, %v2336
        %v2338 = vrot.slane %v2333, %v2337
        %v2344 = vunpack.c.l.b16 %v2329
        %v2345 = vunpack.c.l.b16 %v2330
        %v2346 = vunpack.c.l.b16 %v2331
        %v2347 = vunpack.c.l.b16 %v2332
        %v2348 = vpack.c.b16 %v2345, %v2344
        %v2349 = vpack.c.b16 %v2347, %v2346
        %v2353 = vsel %vm2240, %v2328, 0
        %2355 = vmatprep.subr.bf16.mxu0 0
        %2356 = vmatpush1.bf16.msra.mxu0 %v2348
        %2357 = vmatprep.subr.bf16.mxu0 0
        %2358 = vmatpush1.bf16.msra.mxu0 %v2349
        %2359 = vmatprep.subr.bf16.mxu0 0
        %2360 = vmatpush1.bf16.msra.mxu0 0
        %2361 = vmatprep.subr.bf16.mxu0 0
        %2362 = vmatpush1.bf16.msra.mxu0 0
        %2363 = vmatprep.subr.bf16.mxu0 0
        %2364 = vmatpush1.bf16.msra.mxu0 0
        %2365 = vmatprep.subr.bf16.mxu0 0
        %2366 = vmatpush1.bf16.msra.mxu0 0
        %2367 = vmatprep.subr.bf16.mxu0 0
        %2368 = vmatpush1.bf16.msra.mxu0 0
        %2369 = vmatprep.subr.bf16.mxu0 0
        %2370 = vmatpush1.bf16.msra.mxu0 0
        %2371 = vmatprep.subr.bf16.mxu0 0
        %2372 = vmatpush1.bf16.msra.mxu0 0
        %2373 = vmatprep.subr.bf16.mxu0 0
        %2374 = vmatpush1.bf16.msra.mxu0 0
        %2375 = vmatprep.subr.bf16.mxu0 0
        %2376 = vmatpush1.bf16.msra.mxu0 0
        %2377 = vmatprep.subr.bf16.mxu0 0
        %2378 = vmatpush1.bf16.msra.mxu0 0
        %2379 = vmatprep.subr.bf16.mxu0 0
        %2380 = vmatpush1.bf16.msra.mxu0 0
        %2381 = vmatprep.subr.bf16.mxu0 0
        %2382 = vmatpush1.bf16.msra.mxu0 0
        %2383 = vmatprep.subr.bf16.mxu0 0
        %2384 = vmatpush1.bf16.msra.mxu0 0
        %2385 = vmatprep.subr.bf16.mxu0 0
        %2386 = vmatpush1.bf16.msra.mxu0 0
        %2387 = vmatprep.mubr.bf16.mxu0 0
        %2388 = vmatmul.mubr.bf16.gmra.mrb[0].mxu0 %v2353
        %v2389 = vpop.f32.mrb[0].mxu0
        %v2390 = vadd.f32 %v2338, %v2389
        %v2391 = vpop.f32.mrb[0].mxu0
        %v2392 = vpop.f32.mrb[0].mxu0
        %v2393 = vadd.f32 %v2338, %v2392
        %v2394 = vpop.f32.mrb[0].mxu0
        %2395 = vdwg.mxu0
        %v2396 = vmul.f32 %v2390, 0.5
        %v2397 = vmul.f32 %v2393, 0.5
        %v2398 = vmul.f32 %v2390, 0.044715
        %v2399 = vmul.f32 %v2393, 0.044715
        %v2400 = vmul.f32 %v2398, %v2390
        %v2401 = vmul.f32 %v2399, %v2393
        %v2402 = vmul.f32 %v2400, %v2390
        %v2403 = vmul.f32 %v2401, %v2393
        %v2404 = vadd.f32 %v2390, %v2402
        %v2405 = vadd.f32 %v2393, %v2403
        %v2406 = vmul.f32 %v2404, 0.7978846
        %v2407 = vmul.f32 %v2405, 0.7978846
        %v2408 = vtanh.pop %v2406
        %v2409 = vtanh.pop %v2407
        %v2410 = vadd.f32 %v2408, 1.0
        %v2411 = vadd.f32 %v2409, 1.0
        %v2412 = vmul.f32 %v2396, %v2410
        %v2413 = vmul.f32 %v2397, %v2411
        %v2414 = vpack.c.bf16 %v2413, %v2412
        %v2415 = vld [vmem:[%s12] sm:$0xf]
        %v2416 = vld [vmem:[%s12 + $0x4] sm:$0xf]
        %v2417 = vld [vmem:[%s12 + $0x8] sm:$0xf]
        %v2418 = vld [vmem:[%s12 + $0xc] sm:$0xf]
        %v2419 = vld [vmem:[%s12 + $0x10] sm:$0xf]
        %v2420 = vld [vmem:[%s12 + $0x14] sm:$0xf]
        %v2421 = vld [vmem:[%s12 + $0x18] sm:$0xf]
        %v2422 = vld [vmem:[%s12 + $0x1c] sm:$0xf]
        %v2423 = vld [vmem:[%s12 + $0x20] sm:$0xf]
        %v2424 = vld [vmem:[%s12 + $0x24] sm:$0xf]
        %v2425 = vld [vmem:[%s12 + $0x28] sm:$0xf]
        %v2426 = vld [vmem:[%s12 + $0x2c] sm:$0xf]
        %v2427 = vld [vmem:[%s12 + $0x30] sm:$0xf]
        %v2428 = vld [vmem:[%s12 + $0x34] sm:$0xf]
        %v2429 = vld [vmem:[%s12 + $0x38] sm:$0xf]
        %v2430 = vld [vmem:[%s12 + $0x3c] sm:$0xf]
        %v2447 = vunpack.c.l.b16 %v2415
        %v2448 = vunpack.c.l.b16 %v2416
        %v2449 = vunpack.c.l.b16 %v2417
        %v2450 = vunpack.c.l.b16 %v2418
        %v2451 = vunpack.c.l.b16 %v2419
        %v2452 = vunpack.c.l.b16 %v2420
        %v2453 = vunpack.c.l.b16 %v2421
        %v2454 = vunpack.c.l.b16 %v2422
        %v2455 = vunpack.c.l.b16 %v2423
        %v2456 = vunpack.c.l.b16 %v2424
        %v2457 = vunpack.c.l.b16 %v2425
        %v2458 = vunpack.c.l.b16 %v2426
        %v2459 = vunpack.c.l.b16 %v2427
        %v2460 = vunpack.c.l.b16 %v2428
        %v2461 = vunpack.c.l.b16 %v2429
        %v2462 = vunpack.c.l.b16 %v2430
        %v2463 = vpack.c.b16 %v2448, %v2447
        %v2464 = vpack.c.b16 %v2450, %v2449
        %v2465 = vpack.c.b16 %v2452, %v2451
        %v2466 = vpack.c.b16 %v2454, %v2453
        %v2467 = vpack.c.b16 %v2456, %v2455
        %v2468 = vpack.c.b16 %v2458, %v2457
        %v2469 = vpack.c.b16 %v2460, %v2459
        %v2470 = vpack.c.b16 %v2462, %v2461
        %2479 = vmatprep.subr.bf16.mxu0 0
        %2480 = vmatpush1.bf16.msra.mxu0 %v2463
        %2481 = vmatprep.subr.bf16.mxu0 0
        %2482 = vmatpush1.bf16.msra.mxu0 %v2464
        %2483 = vmatprep.subr.bf16.mxu0 0
        %2484 = vmatpush1.bf16.msra.mxu0 %v2465
        %2485 = vmatprep.subr.bf16.mxu0 0
        %2486 = vmatpush1.bf16.msra.mxu0 %v2466
        %2487 = vmatprep.subr.bf16.mxu0 0
        %2488 = vmatpush1.bf16.msra.mxu0 %v2467
        %2489 = vmatprep.subr.bf16.mxu0 0
        %2490 = vmatpush1.bf16.msra.mxu0 %v2468
        %2491 = vmatprep.subr.bf16.mxu0 0
        %2492 = vmatpush1.bf16.msra.mxu0 %v2469
        %2493 = vmatprep.subr.bf16.mxu0 0
        %2494 = vmatpush1.bf16.msra.mxu0 %v2470
        %2495 = vmatprep.subr.bf16.mxu0 0
        %2496 = vmatpush1.bf16.msra.mxu0 0
        %2497 = vmatprep.subr.bf16.mxu0 0
        %2498 = vmatpush1.bf16.msra.mxu0 0
        %2499 = vmatprep.subr.bf16.mxu0 0
        %2500 = vmatpush1.bf16.msra.mxu0 0
        %2501 = vmatprep.subr.bf16.mxu0 0
        %2502 = vmatpush1.bf16.msra.mxu0 0
        %2503 = vmatprep.subr.bf16.mxu0 0
        %2504 = vmatpush1.bf16.msra.mxu0 0
        %2505 = vmatprep.subr.bf16.mxu0 0
        %2506 = vmatpush1.bf16.msra.mxu0 0
        %2507 = vmatprep.subr.bf16.mxu0 0
        %2508 = vmatpush1.bf16.msra.mxu0 0
        %2509 = vmatprep.subr.bf16.mxu0 0
        %2510 = vmatpush1.bf16.msra.mxu0 0
        %2511 = vmatprep.mubr.bf16.mxu0 0
        %2512 = vmatmul.mubr.bf16.gmra.mrb[0].mxu0 %v2414
        %v2513 = vpop.f32.mrb[0].mxu0
        %v2514 = vadd.f32 0.0, %v2513
        %v2515 = vpop.f32.mrb[0].mxu0
        %v2516 = vpop.f32.mrb[0].mxu0
        %v2517 = vadd.f32 0.0, %v2516
        %v2518 = vpop.f32.mrb[0].mxu0
        %2519 = vdwg.mxu0
        %v2520 = vadd.f32 %v2264, %v2514
        %v2521 = vadd.f32 %v2265, %v2517
        %v2522 = vld [vmem:[%s13] sm:$0x1]
        %v2524 = vlaneseq
        %v2525 = vshrl.u32 %v2524, 7
        %v2526 = vsub.s32 0, %v2525
        %v2527 = vrot.slane %v2522, %v2526
        %v2529 = vadd.f32 %v2520, %v2527
        %v2530 = vadd.f32 %v2521, %v2527
        %2531 = vst.msk [vmem:[%s485] sm:$0xff] %vm2240, %v2529
        %2532 = vst.msk [vmem:[%s485 + $0x8] sm:$0xff] %vm2240, %v2530
        %s2533 = sand.u32 %s354, 1
        %s2534 = scalar_lea.sflag [#allocation6], %s2533
        %s2535 = sand.u32 %s354, 1
        %s2536 = smul.addr %s2535, 16
        %s2537 = scalar_lea.vmem [#allocation5], %s2536
        // Predicated region
        $region81: #{tpu_custom_call.1} parent=75 // pred_check
          %p2538 = pneg %p364
        $region82: #{tpu_custom_call.1} parent=75 // pred_check_branch
          %2540 = sbr.rel (%p2538) target = $region84
        $region83: #{tpu_custom_call.1} parent=75 // pred_region
          %s2541 = smul.u32 2, %s33
          %s2543 = ssub.s32 256, 256
          %2544 = vsyncadd %s2534, %s2543
          %s2545 = smul.addr %s32, 2
          %s2546 = sadd.s32 %s2541, %s2545
          %s2547 = smul.addr %s2546, 128
          %s2548 = scalar_lea.hbm %s14, %s2547
          %s2549 = sshll.u32 %s2537, 4
          %s2550 = int_to_ptr.vmem [resolvable:$true] %s2549
          %2555 = dma.vmem_to_hbm [thread:$0]  %s2550, 256, %s2548, %s2534, 128, 128, 8
        $region84: #{tpu_custom_call.1} parent=75 // pred_fallthru
          _
      $region76: #{tpu_custom_call.1} parent=5 // pred_fallthru
        _
      %p2556 = scmp.le.s32.totalorder 2, %s23
      // Predicated region
      $region85: #{tpu_custom_call.1} parent=5 // pred_check
        %p2557 = pneg %p2556
      $region86: #{tpu_custom_call.1} parent=5 // pred_check_branch
        %2559 = sbr.rel (%p2557) target = $region88
      $region87: #{tpu_custom_call.1} parent=5 // pred_region
        %s2560 = ssub.s32 %s23, 2
        // Predicated region
        $region89: #{tpu_custom_call.1} parent=87 // pred_check
          %p2561 = pneg %p370
        $region90: #{tpu_custom_call.1} parent=87 // pred_check_branch
          %2563 = sbr.rel (%p2561) target = $region92
        $region91: #{tpu_custom_call.1} parent=87 // pred_region
          %s2564 = sand.u32 %s355, 1
          %s2565 = scalar_lea.sflag [#allocation6], %s2564
          %s2566 = sand.u32 %s355, 1
          %s2567 = smul.addr %s2566, 16
          %s2568 = scalar_lea.vmem [#allocation5], %s2567
          %2569 = dma.done %s2565, 256
        $region92: #{tpu_custom_call.1} parent=87 // pred_fallthru
          _
      $region88: #{tpu_custom_call.1} parent=5 // pred_fallthru
        _
    $region6: #{tpu_custom_call.1} parent=1 // loop_footer
      %s27 = sadd.s32 1, %s23
    $region7: #{tpu_custom_call.1} parent=1 // loop_footer_branch
      %22 = sbr.rel target = $region3
    $region8: #{tpu_custom_call.1} parent=1 // loop_exit
      _
    %2570 = vsyncpa [#allocation6], 1
    %s2571 = scalar_lea.sflag [#allocation6], 1
    %2572 = vsyncpa %s2571, 1

// kernel: tpu_custom_call.1
$region0: #{tpu_custom_call.1}
  #allocation0 [shape = 'u32[]', space=smem, size = 0x4, offset = 0x4, fixed_abs, tag = 'smem constant byte address 0x4 - core index']
  #allocation1 [shape = 'u32[144,128]{1,0:T(1,128)}', space=vmem, size = 0x12000, scoped, tag = 'internal scratch']
  #allocation2 [shape = 'bf16[4,16,8]{2,1,0:T(16,128)(2,1)}', space=vmem, size = 0x4000, scoped, tag = 'scratch operand']
  #allocation3 [shape = 'bf16[4,16,8]{2,1,0:T(16,128)(2,1)}', space=vmem, size = 0x4000, scoped, tag = 'scratch operand']
  #allocation4 [shape = 'bf16[4,16,8]{2,1,0:T(16,128)(2,1)}', space=vmem, size = 0x4000, scoped, tag = 'scratch operand']
  %s0 = inlined_call_operand.vmem [shape: f32[2,16,32], index: 0, kind: input, shape index: {}]
  %s1 = inlined_call_operand.vmem [shape: f32[2,1,16], index: 1, kind: input, shape index: {}]
  %s2 = inlined_call_operand.vmem [shape: bf16[32,96], index: 2, kind: input, shape index: {}]
  %s3 = inlined_call_operand.vmem [shape: f32[1,96], index: 3, kind: input, shape index: {}]
  %s4 = inlined_call_operand.vmem [shape: bf16[4,8,32], index: 4, kind: input, shape index: {}]
  %s5 = inlined_call_operand.vmem [shape: f32[1,32], index: 5, kind: input, shape index: {}]
  %s6 = inlined_call_operand.vmem [shape: f32[1,32], index: 6, kind: input, shape index: {}]
  %s7 = inlined_call_operand.vmem [shape: f32[1,32], index: 7, kind: input, shape index: {}]
  %s8 = inlined_call_operand.vmem [shape: f32[1,32], index: 8, kind: input, shape index: {}]
  %s9 = inlined_call_operand.vmem [shape: f32[1,32], index: 9, kind: input, shape index: {}]
  %s10 = inlined_call_operand.vmem [shape: bf16[32,128], index: 10, kind: input, shape index: {}]
  %s11 = inlined_call_operand.vmem [shape: f32[1,128], index: 11, kind: input, shape index: {}]
  %s12 = inlined_call_operand.vmem [shape: bf16[128,32], index: 12, kind: input, shape index: {}]
  %s13 = inlined_call_operand.vmem [shape: f32[1,32], index: 13, kind: input, shape index: {}]
  %s14 = inlined_call_operand.hbm [shape: f32[2,16,32], index: 14, kind: output, shape index: {}]
  %s15 = sld [smem:[#allocation0]]
  $region93: #{tpu_custom_call.1} parent=0
    _
  %s17 = ssub.s32 1, %s15
  %s18 = scalar_select 0, %s17, %s15
  $region1: #{tpu_custom_call.1} parent=0
    #allocation5 [shape = 'u8[16384]{0}', space=vmem, size = 0x4000, scoped, tag = 'output window, operand 0']
    #allocation6 [shape = 's32[2]{0}', space=sflag, size = 0x8, scoped, tag = 'scoped memory for tpu_custom_call.1']
    %19 = vsyncpa [#allocation6], 0
    %s20 = scalar_lea.sflag [#allocation6], 1
    %21 = vsyncpa %s20, 0
    loop: start=0, step=1, limit=4
    $region2: #{tpu_custom_call.1} parent=1 // loop_pre_header
      _
    $region3: #{tpu_custom_call.1} parent=1 // loop_header
      %s23 = sphi 0, %s27
      %p24 = scmp.ge.s32.totalorder %s23, 4
      %s30 = sphi 0, %s42
      %s31 = sphi 0, %s38
      %s32 = sphi 0, %s30
      %s33 = sphi 0, %s31
      %s34 = sphi 0, %s32
      %s35 = sphi 0, %s33
      %s45 = sphi 0, %s47
      %s48 = sphi 0, %s45
      %s49 = sphi 0, %s48
      %s65 = sphi 0, %s49
      %s71 = sphi 0, %s73
      %s74 = sphi 0, %s71
      %s75 = sphi 0, %s74
      %s91 = sphi 0, %s75
      %s95 = sphi 0, %s95
      %s97 = sphi 0, %s95
      %s98 = sphi 0, %s97
      %s112 = sphi 0, %s98
      %s116 = sphi 0, %s116
      %s118 = sphi 0, %s116
      %s119 = sphi 0, %s118
      %s133 = sphi 0, %s119
      %s137 = sphi 0, %s137
      %s139 = sphi 0, %s137
      %s140 = sphi 0, %s139
      %s154 = sphi 0, %s140
      %s158 = sphi 0, %s158
      %s160 = sphi 0, %s158
      %s161 = sphi 0, %s160
      %s175 = sphi 0, %s161
      %s179 = sphi 0, %s179
      %s181 = sphi 0, %s179
      %s182 = sphi 0, %s181
      %s196 = sphi 0, %s182
      %s200 = sphi 0, %s200
      %s202 = sphi 0, %s200
      %s203 = sphi 0, %s202
      %s217 = sphi 0, %s203
      %s221 = sphi 0, %s221
      %s223 = sphi 0, %s221
      %s224 = sphi 0, %s223
      %s238 = sphi 0, %s224
      %s242 = sphi 0, %s242
      %s244 = sphi 0, %s242
      %s245 = sphi 0, %s244
      %s259 = sphi 0, %s245
      %s263 = sphi 0, %s263
      %s265 = sphi 0, %s263
      %s266 = sphi 0, %s265
      %s280 = sphi 0, %s266
      %s284 = sphi 0, %s284
      %s286 = sphi 0, %s284
      %s287 = sphi 0, %s286
      %s301 = sphi 0, %s287
      %s305 = sphi 0, %s305
      %s307 = sphi 0, %s305
      %s308 = sphi 0, %s307
      %s322 = sphi 0, %s308
      %s326 = sphi 0, %s326
      %s328 = sphi 0, %s326
      %s329 = sphi 0, %s328
      %s343 = sphi 0, %s329
      %s351 = sphi 0, %s353
      %s354 = sphi 0, %s351
      %s355 = sphi 0, %s354
      %s371 = sphi 0, %s355
    $region4: #{tpu_custom_call.1} parent=1 // loop_header_branch
      %26 = sbr.rel (%p24) target = $region8
    $region5: #{tpu_custom_call.1} parent=1 // loop_body
      %s28 = ssub.s32 %s23, 1
      %s29 = ssub.s32 %s23, 2
      %s36 = sadd.s32 1, %s31
      %p37 = scmp.ge.s32.totalorder %s36, 1
      %s38 = scalar_select %p37, 0, %s36
      %s39 = sadd.s32 1, %s30
      %s40 = scalar_select %p37, %s39, %s30
      %p41 = scmp.ge.s32.totalorder %s40, 2
      %s42 = scalar_select %p41, 0, %s40
      %s43 = ssub.s32 %s30, %s42
      %p44 = scmp.eq.s32.totalorder %s43, 0
      %s46 = sadd.s32 %s45, 1
      %s47 = scalar_select %p44, %s45, %s46
      %p50 = pneg %p44
      %p51 = scmp.eq.s32.totalorder %s23, 1
      %p52 = por %p50, %p51
      %p53 = scmp.ne.s32.totalorder %s45, %s48
      %p54 = scmp.eq.s32.totalorder %s23, 0
      %p55 = por %p53, %p54
      %p56 = scmp.ne.s32.totalorder %s45, %s48
      %p57 = scmp.eq.s32.totalorder %s28, 1
      %p58 = por %p56, %p57
      %p59 = scmp.ne.s32.totalorder %s48, %s49
      %p60 = scmp.eq.s32.totalorder %s28, 0
      %p61 = por %p59, %p60
      %p62 = scmp.ne.s32.totalorder %s48, %s49
      %p63 = scmp.eq.s32.totalorder %s29, 1
      %p64 = por %p62, %p63
      %p66 = scmp.ne.s32.totalorder %s49, %s65
      %p67 = scmp.eq.s32.totalorder %s29, 0
      %p68 = por %p66, %p67
      %s69 = ssub.s32 %s30, %s42
      %p70 = scmp.eq.s32.totalorder %s69, 0
      %s72 = sadd.s32 %s71, 1
      %s73 = scalar_select %p70, %s71, %s72
      %p76 = pneg %p70
      %p77 = scmp.eq.s32.totalorder %s23, 1
      %p78 = por %p76, %p77
      %p79 = scmp.ne.s32.totalorder %s71, %s74
      %p80 = scmp.eq.s32.totalorder %s23, 0
      %p81 = por %p79, %p80
      %p82 = scmp.ne.s32.totalorder %s71, %s74
      %p83 = scmp.eq.s32.totalorder %s28, 1
      %p84 = por %p82, %p83
      %p85 = scmp.ne.s32.totalorder %s74, %s75
      %p86 = scmp.eq.s32.totalorder %s28, 0
      %p87 = por %p85, %p86
      %p88 = scmp.ne.s32.totalorder %s74, %s75
      %p89 = scmp.eq.s32.totalorder %s29, 1
      %p90 = por %p88, %p89
      %p92 = scmp.ne.s32.totalorder %s75, %s91
      %p93 = scmp.eq.s32.totalorder %s29, 0
      %p94 = por %p92, %p93
      %s96 = sadd.s32 %s95, 1
      %p99 = scmp.eq.s32.totalorder %s23, 1
      %p100 = scmp.ne.s32.totalorder %s95, %s97
      %p101 = scmp.eq.s32.totalorder %s23, 0
      %p102 = por %p100, %p101
      %p103 = scmp.ne.s32.totalorder %s95, %s97
      %p104 = scmp.eq.s32.totalorder %s28, 1
      %p105 = por %p103, %p104
      %p106 = scmp.ne.s32.totalorder %s97, %s98
      %p107 = scmp.eq.s32.totalorder %s28, 0
      %p108 = por %p106, %p107
      %p109 = scmp.ne.s32.totalorder %s97, %s98
      %p110 = scmp.eq.s32.totalorder %s29, 1
      %p111 = por %p109, %p110
      %p113 = scmp.ne.s32.totalorder %s98, %s112
      %p114 = scmp.eq.s32.totalorder %s29, 0
      %p115 = por %p113, %p114
      %s117 = sadd.s32 %s116, 1
      %p120 = scmp.eq.s32.totalorder %s23, 1
      %p121 = scmp.ne.s32.totalorder %s116, %s118
      %p122 = scmp.eq.s32.totalorder %s23, 0
      %p123 = por %p121, %p122
      %p124 = scmp.ne.s32.totalorder %s116, %s118
      %p125 = scmp.eq.s32.totalorder %s28, 1
      %p126 = por %p124, %p125
      %p127 = scmp.ne.s32.totalorder %s118, %s119
      %p128 = scmp.eq.s32.totalorder %s28, 0
      %p129 = por %p127, %p128
      %p130 = scmp.ne.s32.totalorder %s118, %s119
      %p131 = scmp.eq.s32.totalorder %s29, 1
      %p132 = por %p130, %p131
      %p134 = scmp.ne.s32.totalorder %s119, %s133
      %p135 = scmp.eq.s32.totalorder %s29, 0
      %p136 = por %p134, %p135
      %s138 = sadd.s32 %s137, 1
      %p141 = scmp.eq.s32.totalorder %s23, 1
      %p142 = scmp.ne.s32.totalorder %s137, %s139
      %p143 = scmp.eq.s32.totalorder %s23, 0
      %p144 = por %p142, %p143
      %p145 = scmp.ne.s32.totalorder %s137, %s139
      %p146 = scmp.eq.s32.totalorder %s28, 1
      %p147 = por %p145, %p146
      %p148 = scmp.ne.s32.totalorder %s139, %s140
      %p149 = scmp.eq.s32.totalorder %s28, 0
      %p150 = por %p148, %p149
      %p151 = scmp.ne.s32.totalorder %s139, %s140
      %p152 = scmp.eq.s32.totalorder %s29, 1
      %p153 = por %p151, %p152
      %p155 = scmp.ne.s32.totalorder %s140, %s154
      %p156 = scmp.eq.s32.totalorder %s29, 0
      %p157 = por %p155, %p156
      %s159 = sadd.s32 %s158, 1
      %p162 = scmp.eq.s32.totalorder %s23, 1
      %p163 = scmp.ne.s32.totalorder %s158, %s160
      %p164 = scmp.eq.s32.totalorder %s23, 0
      %p165 = por %p163, %p164
      %p166 = scmp.ne.s32.totalorder %s158, %s160
      %p167 = scmp.eq.s32.totalorder %s28, 1
      %p168 = por %p166, %p167
      %p169 = scmp.ne.s32.totalorder %s160, %s161
      %p170 = scmp.eq.s32.totalorder %s28, 0
      %p171 = por %p169, %p170
      %p172 = scmp.ne.s32.totalorder %s160, %s161
      %p173 = scmp.eq.s32.totalorder %s29, 1
      %p174 = por %p172, %p173
      %p176 = scmp.ne.s32.totalorder %s161, %s175
      %p177 = scmp.eq.s32.totalorder %s29, 0
      %p178 = por %p176, %p177
      %s180 = sadd.s32 %s179, 1
      %p183 = scmp.eq.s32.totalorder %s23, 1
      %p184 = scmp.ne.s32.totalorder %s179, %s181
      %p185 = scmp.eq.s32.totalorder %s23, 0
      %p186 = por %p184, %p185
      %p187 = scmp.ne.s32.totalorder %s179, %s181
      %p188 = scmp.eq.s32.totalorder %s28, 1
      %p189 = por %p187, %p188
      %p190 = scmp.ne.s32.totalorder %s181, %s182
      %p191 = scmp.eq.s32.totalorder %s28, 0
      %p192 = por %p190, %p191
      %p193 = scmp.ne.s32.totalorder %s181, %s182
      %p194 = scmp.eq.s32.totalorder %s29, 1
      %p195 = por %p193, %p194
      %p197 = scmp.ne.s32.totalorder %s182, %s196
      %p198 = scmp.eq.s32.totalorder %s29, 0
      %p199 = por %p197, %p198
      %s201 = sadd.s32 %s200, 1
      %p204 = scmp.eq.s32.totalorder %s23, 1
      %p205 = scmp.ne.s32.totalorder %s200, %s202
      %p206 = scmp.eq.s32.totalorder %s23, 0
      %p207 = por %p205, %p206
      %p208 = scmp.ne.s32.totalorder %s200, %s202
      %p209 = scmp.eq.s32.totalorder %s28, 1
      %p210 = por %p208, %p209
      %p211 = scmp.ne.s32.totalorder %s202, %s203
      %p212 = scmp.eq.s32.totalorder %s28, 0
      %p213 = por %p211, %p212
      %p214 = scmp.ne.s32.totalorder %s202, %s203
      %p215 = scmp.eq.s32.totalorder %s29, 1
      %p216 = por %p214, %p215
      %p218 = scmp.ne.s32.totalorder %s203, %s217
      %p219 = scmp.eq.s32.totalorder %s29, 0
      %p220 = por %p218, %p219
      %s222 = sadd.s32 %s221, 1
      %p225 = scmp.eq.s32.totalorder %s23, 1
      %p226 = scmp.ne.s32.totalorder %s221, %s223
      %p227 = scmp.eq.s32.totalorder %s23, 0
      %p228 = por %p226, %p227
      %p229 = scmp.ne.s32.totalorder %s221, %s223
      %p230 = scmp.eq.s32.totalorder %s28, 1
      %p231 = por %p229, %p230
      %p232 = scmp.ne.s32.totalorder %s223, %s224
      %p233 = scmp.eq.s32.totalorder %s28, 0
      %p234 = por %p232, %p233
      %p235 = scmp.ne.s32.totalorder %s223, %s224
      %p236 = scmp.eq.s32.totalorder %s29, 1
      %p237 = por %p235, %p236
      %p239 = scmp.ne.s32.totalorder %s224, %s238
      %p240 = scmp.eq.s32.totalorder %s29, 0
      %p241 = por %p239, %p240
      %s243 = sadd.s32 %s242, 1
      %p246 = scmp.eq.s32.totalorder %s23, 1
      %p247 = scmp.ne.s32.totalorder %s242, %s244
      %p248 = scmp.eq.s32.totalorder %s23, 0
      %p249 = por %p247, %p248
      %p250 = scmp.ne.s32.totalorder %s242, %s244
      %p251 = scmp.eq.s32.totalorder %s28, 1
      %p252 = por %p250, %p251
      %p253 = scmp.ne.s32.totalorder %s244, %s245
      %p254 = scmp.eq.s32.totalorder %s28, 0
      %p255 = por %p253, %p254
      %p256 = scmp.ne.s32.totalorder %s244, %s245
      %p257 = scmp.eq.s32.totalorder %s29, 1
      %p258 = por %p256, %p257
      %p260 = scmp.ne.s32.totalorder %s245, %s259
      %p261 = scmp.eq.s32.totalorder %s29, 0
      %p262 = por %p260, %p261
      %s264 = sadd.s32 %s263, 1
      %p267 = scmp.eq.s32.totalorder %s23, 1
      %p268 = scmp.ne.s32.totalorder %s263, %s265
      %p269 = scmp.eq.s32.totalorder %s23, 0
      %p270 = por %p268, %p269
      %p271 = scmp.ne.s32.totalorder %s263, %s265
      %p272 = scmp.eq.s32.totalorder %s28, 1
      %p273 = por %p271, %p272
      %p274 = scmp.ne.s32.totalorder %s265, %s266
      %p275 = scmp.eq.s32.totalorder %s28, 0
      %p276 = por %p274, %p275
      %p277 = scmp.ne.s32.totalorder %s265, %s266
      %p278 = scmp.eq.s32.totalorder %s29, 1
      %p279 = por %p277, %p278
      %p281 = scmp.ne.s32.totalorder %s266, %s280
      %p282 = scmp.eq.s32.totalorder %s29, 0
      %p283 = por %p281, %p282
      %s285 = sadd.s32 %s284, 1
      %p288 = scmp.eq.s32.totalorder %s23, 1
      %p289 = scmp.ne.s32.totalorder %s284, %s286
      %p290 = scmp.eq.s32.totalorder %s23, 0
      %p291 = por %p289, %p290
      %p292 = scmp.ne.s32.totalorder %s284, %s286
      %p293 = scmp.eq.s32.totalorder %s28, 1
      %p294 = por %p292, %p293
      %p295 = scmp.ne.s32.totalorder %s286, %s287
      %p296 = scmp.eq.s32.totalorder %s28, 0
      %p297 = por %p295, %p296
      %p298 = scmp.ne.s32.totalorder %s286, %s287
      %p299 = scmp.eq.s32.totalorder %s29, 1
      %p300 = por %p298, %p299
      %p302 = scmp.ne.s32.totalorder %s287, %s301
      %p303 = scmp.eq.s32.totalorder %s29, 0
      %p304 = por %p302, %p303
      %s306 = sadd.s32 %s305, 1
      %p309 = scmp.eq.s32.totalorder %s23, 1
      %p310 = scmp.ne.s32.totalorder %s305, %s307
      %p311 = scmp.eq.s32.totalorder %s23, 0
      %p312 = por %p310, %p311
      %p313 = scmp.ne.s32.totalorder %s305, %s307
      %p314 = scmp.eq.s32.totalorder %s28, 1
      %p315 = por %p313, %p314
      %p316 = scmp.ne.s32.totalorder %s307, %s308
      %p317 = scmp.eq.s32.totalorder %s28, 0
      %p318 = por %p316, %p317
      %p319 = scmp.ne.s32.totalorder %s307, %s308
      %p320 = scmp.eq.s32.totalorder %s29, 1
      %p321 = por %p319, %p320
      %p323 = scmp.ne.s32.totalorder %s308, %s322
      %p324 = scmp.eq.s32.totalorder %s29, 0
      %p325 = por %p323, %p324
      %s327 = sadd.s32 %s326, 1
      %p330 = scmp.eq.s32.totalorder %s23, 1
      %p331 = scmp.ne.s32.totalorder %s326, %s328
      %p332 = scmp.eq.s32.totalorder %s23, 0
      %p333 = por %p331, %p332
      %p334 = scmp.ne.s32.totalorder %s326, %s328
      %p335 = scmp.eq.s32.totalorder %s28, 1
      %p336 = por %p334, %p335
      %p337 = scmp.ne.s32.totalorder %s328, %s329
      %p338 = scmp.eq.s32.totalorder %s28, 0
      %p339 = por %p337, %p338
      %p340 = scmp.ne.s32.totalorder %s328, %s329
      %p341 = scmp.eq.s32.totalorder %s29, 1
      %p342 = por %p340, %p341
      %p344 = scmp.ne.s32.totalorder %s329, %s343
      %p345 = scmp.eq.s32.totalorder %s29, 0
      %p346 = por %p344, %p345
      %s347 = ssub.s32 %s30, %s42
      %s348 = ssub.s32 %s31, %s38
      %s349 = sor.u32 %s347, %s348
      %p350 = scmp.eq.s32.totalorder %s349, 0
      %s352 = sadd.s32 %s351, 1
      %s353 = scalar_select %p350, %s351, %s352
      %p356 = pneg %p350
      %p357 = scmp.eq.s32.totalorder %s23, 1
      %p358 = por %p356, %p357
      %p359 = scmp.ne.s32.totalorder %s351, %s354
      %p360 = scmp.eq.s32.totalorder %s23, 0
      %p361 = por %p359, %p360
      %p362 = scmp.ne.s32.totalorder %s351, %s354
      %p363 = scmp.eq.s32.totalorder %s28, 1
      %p364 = por %p362, %p363
      %p365 = scmp.ne.s32.totalorder %s354, %s355
      %p366 = scmp.eq.s32.totalorder %s28, 0
      %p367 = por %p365, %p366
      %p368 = scmp.ne.s32.totalorder %s354, %s355
      %p369 = scmp.eq.s32.totalorder %s29, 1
      %p370 = por %p368, %p369
      %p372 = scmp.ne.s32.totalorder %s355, %s371
      %p373 = scmp.eq.s32.totalorder %s29, 0
      %p374 = por %p372, %p373
      %p375 = scmp.le.s32.totalorder 1, %s23
      %p376 = scmp.lt.s32.totalorder %s23, 3
      %p377 = pnand %p375, %p376
      %p378 = pneg %p377
      // Predicated region
      $region9: #{tpu_custom_call.1} parent=5 // pred_check
        _
      $region10: #{tpu_custom_call.1} parent=5 // pred_check_branch
        %380 = sbr.rel (%p377) target = $region12
      $region11: #{tpu_custom_call.1} parent=5 // pred_region
        %s381 = ssub.s32 %s23, 1
        // Predicated region
        $region13: #{tpu_custom_call.1} parent=11 // pred_check
          %p382 = pneg %p108
        $region14: #{tpu_custom_call.1} parent=11 // pred_check_branch
          %384 = sbr.rel (%p382) target = $region16
        $region15: #{tpu_custom_call.1} parent=11 // pred_region
          _
        $region16: #{tpu_custom_call.1} parent=11 // pred_fallthru
          _
        // Predicated region
        $region17: #{tpu_custom_call.1} parent=11 // pred_check
          %p385 = pneg %p129
        $region18: #{tpu_custom_call.1} parent=11 // pred_check_branch
          %387 = sbr.rel (%p385) target = $region20
        $region19: #{tpu_custom_call.1} parent=11 // pred_region
          _
        $region20: #{tpu_custom_call.1} parent=11 // pred_fallthru
          _
        // Predicated region
        $region21: #{tpu_custom_call.1} parent=11 // pred_check
          %p388 = pneg %p150
        $region22: #{tpu_custom_call.1} parent=11 // pred_check_branch
          %390 = sbr.rel (%p388) target = $region24
        $region23: #{tpu_custom_call.1} parent=11 // pred_region
          _
        $region24: #{tpu_custom_call.1} parent=11 // pred_fallthru
          _
        // Predicated region
        $region25: #{tpu_custom_call.1} parent=11 // pred_check
          %p391 = pneg %p171
        $region26: #{tpu_custom_call.1} parent=11 // pred_check_branch
          %393 = sbr.rel (%p391) target = $region28
        $region27: #{tpu_custom_call.1} parent=11 // pred_region
          _
        $region28: #{tpu_custom_call.1} parent=11 // pred_fallthru
          _
        // Predicated region
        $region29: #{tpu_custom_call.1} parent=11 // pred_check
          %p394 = pneg %p192
        $region30: #{tpu_custom_call.1} parent=11 // pred_check_branch
          %396 = sbr.rel (%p394) target = $region32
        $region31: #{tpu_custom_call.1} parent=11 // pred_region
          _
        $region32: #{tpu_custom_call.1} parent=11 // pred_fallthru
          _
        // Predicated region
        $region33: #{tpu_custom_call.1} parent=11 // pred_check
          %p397 = pneg %p213
        $region34: #{tpu_custom_call.1} parent=11 // pred_check_branch
          %399 = sbr.rel (%p397) target = $region36
        $region35: #{tpu_custom_call.1} parent=11 // pred_region
          _
        $region36: #{tpu_custom_call.1} parent=11 // pred_fallthru
          _
        // Predicated region
        $region37: #{tpu_custom_call.1} parent=11 // pred_check
          %p400 = pneg %p234
        $region38: #{tpu_custom_call.1} parent=11 // pred_check_branch
          %402 = sbr.rel (%p400) target = $region40
        $region39: #{tpu_custom_call.1} parent=11 // pred_region
          _
        $region40: #{tpu_custom_call.1} parent=11 // pred_fallthru
          _
        // Predicated region
        $region41: #{tpu_custom_call.1} parent=11 // pred_check
          %p403 = pneg %p255
        $region42: #{tpu_custom_call.1} parent=11 // pred_check_branch
          %405 = sbr.rel (%p403) target = $region44
        $region43: #{tpu_custom_call.1} parent=11 // pred_region
          _
        $region44: #{tpu_custom_call.1} parent=11 // pred_fallthru
          _
        // Predicated region
        $region45: #{tpu_custom_call.1} parent=11 // pred_check
          %p406 = pneg %p276
        $region46: #{tpu_custom_call.1} parent=11 // pred_check_branch
          %408 = sbr.rel (%p406) target = $region48
        $region47: #{tpu_custom_call.1} parent=11 // pred_region
          _
        $region48: #{tpu_custom_call.1} parent=11 // pred_fallthru
          _
        // Predicated region
        $region49: #{tpu_custom_call.1} parent=11 // pred_check
          %p409 = pneg %p297
        $region50: #{tpu_custom_call.1} parent=11 // pred_check_branch
          %411 = sbr.rel (%p409) target = $region52
        $region51: #{tpu_custom_call.1} parent=11 // pred_region
          _
        $region52: #{tpu_custom_call.1} parent=11 // pred_fallthru
          _
        // Predicated region
        $region53: #{tpu_custom_call.1} parent=11 // pred_check
          %p412 = pneg %p318
        $region54: #{tpu_custom_call.1} parent=11 // pred_check_branch
          %414 = sbr.rel (%p412) target = $region56
        $region55: #{tpu_custom_call.1} parent=11 // pred_region
          _
        $region56: #{tpu_custom_call.1} parent=11 // pred_fallthru
          _
        // Predicated region
        $region57: #{tpu_custom_call.1} parent=11 // pred_check
          %p415 = pneg %p339
        $region58: #{tpu_custom_call.1} parent=11 // pred_check_branch
          %417 = sbr.rel (%p415) target = $region60
        $region59: #{tpu_custom_call.1} parent=11 // pred_region
          _
        $region60: #{tpu_custom_call.1} parent=11 // pred_fallthru
          _
      $region12: #{tpu_custom_call.1} parent=5 // pred_fallthru
        _
      %p418 = scmp.lt.s32.totalorder %s23, 2
      // Predicated region
      $region61: #{tpu_custom_call.1} parent=5 // pred_check
        %p419 = pneg %p418
      $region62: #{tpu_custom_call.1} parent=5 // pred_check_branch
        %421 = sbr.rel (%p419) target = $region64
      $region63: #{tpu_custom_call.1} parent=5 // pred_region
        // Predicated region
        $region65: #{tpu_custom_call.1} parent=63 // pred_check
          %p422 = pneg %p55
        $region66: #{tpu_custom_call.1} parent=63 // pred_check_branch
          %424 = sbr.rel (%p422) target = $region68
        $region67: #{tpu_custom_call.1} parent=63 // pred_region
          %p425 = scmp.lt.s32.totalorder %s30, 1
          %s426 = scalar_select %p425, %s30, 1
          %s427 = smul.addr %s426, 2
          %s428 = smul.addr %s427, 8
          %s429 = scalar_lea.vmem %s0, %s428
        $region68: #{tpu_custom_call.1} parent=63 // pred_fallthru
          _
        // Predicated region
        $region69: #{tpu_custom_call.1} parent=63 // pred_check
          %p430 = pneg %p81
        $region70: #{tpu_custom_call.1} parent=63 // pred_check_branch
          %432 = sbr.rel (%p430) target = $region72
        $region71: #{tpu_custom_call.1} parent=63 // pred_region
          %p433 = scmp.lt.s32.totalorder %s30, 1
          %s434 = scalar_select %p433, %s30, 1
          %s435 = scalar_lea.vmem %s1, %s434
        $region72: #{tpu_custom_call.1} parent=63 // pred_fallthru
          _
      $region64: #{tpu_custom_call.1} parent=5 // pred_fallthru
        _
      %p436 = scmp.le.s32.totalorder 1, %s23
      %p437 = scmp.lt.s32.totalorder %s23, 3
      %p438 = pnand %p436, %p437
      %p439 = pneg %p438
      // Predicated region
      $region73: #{tpu_custom_call.1} parent=5 // pred_check
        _
      $region74: #{tpu_custom_call.1} parent=5 // pred_check_branch
        %441 = sbr.rel (%p438) target = $region76
      $region75: #{tpu_custom_call.1} parent=5 // pred_region
        %s442 = ssub.s32 %s23, 1
        %p443 = scmp.lt.s32.totalorder %s32, 1
        %s444 = scalar_select %p443, %s32, 1
        %s445 = smul.addr %s444, 2
        %s446 = smul.addr %s445, 8
        %s447 = scalar_lea.vmem %s0, %s446
        %p448 = pneg %p61
        %p449 = pneg %p58
        %p450 = scmp.lt.s32.totalorder %s32, 1
        %s451 = scalar_select %p450, %s32, 1
        %s452 = scalar_lea.vmem %s1, %s451
        %p453 = pneg %p87
        %p454 = pneg %p84
        %p455 = pneg %p108
        %p456 = pneg %p105
        %p457 = pneg %p129
        %p458 = pneg %p126
        %p459 = pneg %p150
        %p460 = pneg %p147
        %p461 = pneg %p171
        %p462 = pneg %p168
        %p463 = pneg %p192
        %p464 = pneg %p189
        %p465 = pneg %p213
        %p466 = pneg %p210
        %p467 = pneg %p234
        %p468 = pneg %p231
        %p469 = pneg %p255
        %p470 = pneg %p252
        %p471 = pneg %p276
        %p472 = pneg %p273
        %p473 = pneg %p297
        %p474 = pneg %p294
        %p475 = pneg %p318
        %p476 = pneg %p315
        %p477 = pneg %p339
        %p478 = pneg %p336
        %p479 = pneg %p367
        %p480 = pneg %p364
        %s481 = sand.u32 %s354, 1
        %s482 = scalar_lea.sflag [#allocation6], %s481
        %s483 = sand.u32 %s354, 1
        %s484 = smul.addr %s483, 16
        %s485 = scalar_lea.vmem [#allocation5], %s484
        %p486 = scmp.lt.s32.totalorder %s32, 1
        %s487 = scalar_select %p486, %s32, 1
        %s488 = smul.addr %s487, 2
        %s489 = smul.addr %s488, 8
        %s490 = scalar_lea.vmem %s0, %s489
        %p491 = scmp.lt.s32.totalorder %s32, 1
        %s492 = scalar_select %p491, %s32, 1
        %s493 = scalar_lea.vmem %s1, %s492
        %s494 = smul.u32 2, %s33
        %p496 = scmp.eq.s32.totalorder %s33, 0
        // Predicated region
        $region77: #{tpu_custom_call.1} parent=75 // pred_check
          %p497 = pneg %p496
        $region78: #{tpu_custom_call.1} parent=75 // pred_check_branch
          %499 = sbr.rel (%p497) target = $region80
        $region79: #{tpu_custom_call.1} parent=75 // pred_region
          %v500 = vld [vmem:[%s490] sm:$0xff]
          %v501 = vld [vmem:[%s490 + $0x8] sm:$0xff]
          %v502 = vld [vmem:[%s6] sm:$0x1]
          %v503 = vld [vmem:[%s7] sm:$0x1]
          %vm504 = vcmask 261120
          %v505 = vsel %vm504, %v500, 0.0
          %506 = vadd.xlane.f32.xlu0 %v505
          %v507 = vpop.xlane.xlu0 %506
          %v508 = vsel %vm504, %v501, 0.0
          %509 = vadd.xlane.f32.xlu0 %v508
          %v510 = vpop.xlane.xlu0 %509
          %v511 = vrcp.pop 32.0
          %v512 = vmul.f32 %v507, %v511
          %v513 = vmul.f32 %v510, %v511
          %v514 = vsub.f32 %v500, %v512
          %v515 = vsub.f32 %v501, %v513
          %v516 = vmul.f32 %v514, %v514
          %v517 = vmul.f32 %v515, %v515
          %v518 = vsel %vm504, %v516, 0.0
          %519 = vadd.xlane.f32.xlu0 %v518
          %v520 = vpop.xlane.xlu0 %519
          %v521 = vsel %vm504, %v517, 0.0
          %522 = vadd.xlane.f32.xlu0 %v521
          %v523 = vpop.xlane.xlu0 %522
          %v524 = vrcp.pop 31.0
          %v525 = vmul.f32 %v520, %v524
          %v526 = vmul.f32 %v523, %v524
          %v527 = vrsqrt.pop %v525
          %v528 = vmul.f32 %v525, %v527
          %vm529 = vcmp.eq.f32.partialorder %v525, inf
          %v530 = vsel %vm529, %v525, %v528
          %vm531 = vcmp.eq.f32.partialorder %v525, 0.0
          %v532 = vand.u32 %v525, 2147483648
          %v533 = vsel %vm531, %v532, %v530
          %v534 = vrsqrt.pop %v526
          %v535 = vmul.f32 %v526, %v534
          %vm536 = vcmp.eq.f32.partialorder %v526, inf
          %v537 = vsel %vm536, %v526, %v535
          %vm538 = vcmp.eq.f32.partialorder %v526, 0.0
          %v539 = vand.u32 %v526, 2147483648
          %v540 = vsel %vm538, %v539, %v537
          %v541 = vadd.f32 %v533, 1e-06
          %v542 = vadd.f32 %v540, 1e-06
          %v543 = vrcp.pop %v541
          %v544 = vmul.f32 1.0, %v543
          %v545 = vrcp.pop %v542
          %v546 = vmul.f32 1.0, %v545
          %v547 = vmul.f32 %v514, %v544
          %v548 = vmul.f32 %v515, %v546
          %v550 = vlaneseq
          %v551 = vshrl.u32 %v550, 7
          %v552 = vsub.s32 0, %v551
          %v553 = vrot.slane %v502, %v552
          %v555 = vmul.f32 %v553, %v547
          %v556 = vmul.f32 %v553, %v548
          %v558 = vlaneseq
          %v559 = vshrl.u32 %v558, 7
          %v560 = vsub.s32 0, %v559
          %v561 = vrot.slane %v503, %v560
          %v563 = vadd.f32 %v555, %v561
          %v564 = vadd.f32 %v556, %v561
          %v565 = vpack.c.bf16 %v564, %v563
          %v566 = vld [vmem:[%s2] sm:$0xf]
          %v567 = vld [vmem:[%s2 + $0x4] sm:$0xf]
          %v568 = vld [vmem:[%s2 + $0x8] sm:$0xf]
          %v569 = vld [vmem:[%s2 + $0xc] sm:$0xf]
          %v570 = vld [vmem:[%s3] sm:$0x1]
          %v572 = vlaneseq
          %v573 = vshrl.u32 %v572, 7
          %v574 = vsub.s32 0, %v573
          %v575 = vrot.slane %v570, %v574
          %v581 = vunpack.c.l.b16 %v566
          %v582 = vunpack.c.l.b16 %v567
          %v583 = vunpack.c.l.b16 %v568
          %v584 = vunpack.c.l.b16 %v569
          %v585 = vpack.c.b16 %v582, %v581
          %v586 = vpack.c.b16 %v584, %v583
          %v590 = vsel %vm504, %v565, 0
          %592 = vmatprep.subr.bf16.mxu0 0
          %593 = vmatpush1.bf16.msra.mxu0 %v585
          %594 = vmatprep.subr.bf16.mxu0 0
          %595 = vmatpush1.bf16.msra.mxu0 %v586
          %596 = vmatprep.subr.bf16.mxu0 0
          %597 = vmatpush1.bf16.msra.mxu0 0
          %598 = vmatprep.subr.bf16.mxu0 0
          %599 = vmatpush1.bf16.msra.mxu0 0
          %600 = vmatprep.subr.bf16.mxu0 0
          %601 = vmatpush1.bf16.msra.mxu0 0
          %602 = vmatprep.subr.bf16.mxu0 0
          %603 = vmatpush1.bf16.msra.mxu0 0
          %604 = vmatprep.subr.bf16.mxu0 0
          %605 = vmatpush1.bf16.msra.mxu0 0
          %606 = vmatprep.subr.bf16.mxu0 0
          %607 = vmatpush1.bf16.msra.mxu0 0
          %608 = vmatprep.subr.bf16.mxu0 0
          %609 = vmatpush1.bf16.msra.mxu0 0
          %610 = vmatprep.subr.bf16.mxu0 0
          %611 = vmatpush1.bf16.msra.mxu0 0
          %612 = vmatprep.subr.bf16.mxu0 0
          %613 = vmatpush1.bf16.msra.mxu0 0
          %614 = vmatprep.subr.bf16.mxu0 0
          %615 = vmatpush1.bf16.msra.mxu0 0
          %616 = vmatprep.subr.bf16.mxu0 0
          %617 = vmatpush1.bf16.msra.mxu0 0
          %618 = vmatprep.subr.bf16.mxu0 0
          %619 = vmatpush1.bf16.msra.mxu0 0
          %620 = vmatprep.subr.bf16.mxu0 0
          %621 = vmatpush1.bf16.msra.mxu0 0
          %622 = vmatprep.subr.bf16.mxu0 0
          %623 = vmatpush1.bf16.msra.mxu0 0
          %624 = vmatprep.mubr.bf16.mxu0 0
          %625 = vmatmul.mubr.bf16.gmra.mrb[0].mxu0 %v590
          %v626 = vpop.f32.mrb[0].mxu0
          %v627 = vadd.f32 %v575, %v626
          %v628 = vpop.f32.mrb[0].mxu0
          %v629 = vpop.f32.mrb[0].mxu0
          %v630 = vadd.f32 %v575, %v629
          %v631 = vpop.f32.mrb[0].mxu0
          %632 = vdwg.mxu0
          %635 = vrot.lane.b32.xlu0 %v627, 120
          %v636 = vpop.permute.xlu0 %635
          %637 = vrot.lane.b32.xlu0 %v630, 120
          %v638 = vpop.permute.xlu0 %637
          %641 = vrot.lane.b32.xlu0 %v627, 112
          %v642 = vpop.permute.xlu0 %641
          %643 = vrot.lane.b32.xlu0 %v630, 112
          %v644 = vpop.permute.xlu0 %643
          %647 = vrot.lane.b32.xlu0 %v627, 104
          %v648 = vpop.permute.xlu0 %647
          %649 = vrot.lane.b32.xlu0 %v630, 104
          %v650 = vpop.permute.xlu0 %649
          %v653 = vcombine.low %v627, %v642
          %v654 = vcombine.high %v627, %v642
          %v656 = vunpack.c.l.s4 1983009808
          %v657 = vunpack.c.0.s8 %v656
          %v658 = vlaneseq
          %v659 = vshrl.u32 %v658, 7
          %v660 = vsub.s32 %v657, %v659
          %v661 = vrot.slane %v653, %v660
          %v663 = vunpack.c.l.s4 1983009808
          %v664 = vunpack.c.0.s8 %v663
          %v665 = vlaneseq
          %v666 = vshrl.u32 %v665, 7
          %v667 = vsub.s32 %v664, %v666
          %v668 = vrot.slane %v654, %v667
          %v669 = vcombine.low %v636, %v648
          %v670 = vcombine.high %v636, %v648
          %v672 = vunpack.c.l.s4 1983009808
          %v673 = vunpack.c.0.s8 %v672
          %v674 = vlaneseq
          %v675 = vshrl.u32 %v674, 7
          %v676 = vsub.s32 %v673, %v675
          %v677 = vrot.slane %v669, %v676
          %v679 = vunpack.c.l.s4 1983009808
          %v680 = vunpack.c.0.s8 %v679
          %v681 = vlaneseq
          %v682 = vshrl.u32 %v681, 7
          %v683 = vsub.s32 %v680, %v682
          %v684 = vrot.slane %v670, %v683
          %v685 = vcombine.low %v661, %v677
          %v686 = vcombine.high %v661, %v677
          %v688 = vunpack.c.l.s4 1934713408
          %v689 = vunpack.c.0.s8 %v688
          %v690 = vlaneseq
          %v691 = vshrl.u32 %v690, 7
          %v692 = vsub.s32 %v689, %v691
          %v693 = vrot.slane %v685, %v692
          %v695 = vunpack.c.l.s4 1934713408
          %v696 = vunpack.c.0.s8 %v695
          %v697 = vlaneseq
          %v698 = vshrl.u32 %v697, 7
          %v699 = vsub.s32 %v696, %v698
          %v700 = vrot.slane %v686, %v699
          %v701 = vcombine.low %v668, %v684
          %v702 = vcombine.high %v668, %v684
          %v704 = vunpack.c.l.s4 1934713408
          %v705 = vunpack.c.0.s8 %v704
          %v706 = vlaneseq
          %v707 = vshrl.u32 %v706, 7
          %v708 = vsub.s32 %v705, %v707
          %v709 = vrot.slane %v701, %v708
          %v711 = vunpack.c.l.s4 1934713408
          %v712 = vunpack.c.0.s8 %v711
          %v713 = vlaneseq
          %v714 = vshrl.u32 %v713, 7
          %v715 = vsub.s32 %v712, %v714
          %v716 = vrot.slane %v702, %v715
          %v717 = vcombine.high %v693, 0.0
          %v718 = vcombine.high %v700, 0.0
          %v719 = vcombine.high %v709, 0.0
          %v720 = vcombine.high %v716, 0.0
          %v721 = vcombine.low %v630, %v644
          %v722 = vcombine.high %v630, %v644
          %v724 = vunpack.c.l.s4 1983009808
          %v725 = vunpack.c.0.s8 %v724
          %v726 = vlaneseq
          %v727 = vshrl.u32 %v726, 7
          %v728 = vsub.s32 %v725, %v727
          %v729 = vrot.slane %v721, %v728
          %v731 = vunpack.c.l.s4 1983009808
          %v732 = vunpack.c.0.s8 %v731
          %v733 = vlaneseq
          %v734 = vshrl.u32 %v733, 7
          %v735 = vsub.s32 %v732, %v734
          %v736 = vrot.slane %v722, %v735
          %v737 = vcombine.low %v638, %v650
          %v738 = vcombine.high %v638, %v650
          %v740 = vunpack.c.l.s4 1983009808
          %v741 = vunpack.c.0.s8 %v740
          %v742 = vlaneseq
          %v743 = vshrl.u32 %v742, 7
          %v744 = vsub.s32 %v741, %v743
          %v745 = vrot.slane %v737, %v744
          %v747 = vunpack.c.l.s4 1983009808
          %v748 = vunpack.c.0.s8 %v747
          %v749 = vlaneseq
          %v750 = vshrl.u32 %v749, 7
          %v751 = vsub.s32 %v748, %v750
          %v752 = vrot.slane %v738, %v751
          %v753 = vcombine.low %v729, %v745
          %v754 = vcombine.high %v729, %v745
          %v756 = vunpack.c.l.s4 1934713408
          %v757 = vunpack.c.0.s8 %v756
          %v758 = vlaneseq
          %v759 = vshrl.u32 %v758, 7
          %v760 = vsub.s32 %v757, %v759
          %v761 = vrot.slane %v753, %v760
          %v763 = vunpack.c.l.s4 1934713408
          %v764 = vunpack.c.0.s8 %v763
          %v765 = vlaneseq
          %v766 = vshrl.u32 %v765, 7
          %v767 = vsub.s32 %v764, %v766
          %v768 = vrot.slane %v754, %v767
          %v769 = vcombine.low %v736, %v752
          %v770 = vcombine.high %v736, %v752
          %v772 = vunpack.c.l.s4 1934713408
          %v773 = vunpack.c.0.s8 %v772
          %v774 = vlaneseq
          %v775 = vshrl.u32 %v774, 7
          %v776 = vsub.s32 %v773, %v775
          %v777 = vrot.slane %v769, %v776
          %v779 = vunpack.c.l.s4 1934713408
          %v780 = vunpack.c.0.s8 %v779
          %v781 = vlaneseq
          %v782 = vshrl.u32 %v781, 7
          %v783 = vsub.s32 %v780, %v782
          %v784 = vrot.slane %v770, %v783
          %v785 = vcombine.high %v761, 0.0
          %v786 = vcombine.high %v768, 0.0
          %v787 = vcombine.high %v777, 0.0
          %v788 = vcombine.high %v784, 0.0
          %v789 = vcombine.low %v693, %v700
          %v791 = vunpack.c.l.s4 1983009808
          %v792 = vunpack.c.0.s8 %v791
          %v793 = vlaneseq
          %v794 = vshrl.u32 %v793, 7
          %v795 = vsub.s32 %v792, %v794
          %v796 = vrot.slane %v789, %v795
          %v797 = vcombine.low %v717, %v718
          %v799 = vunpack.c.l.s4 1983009808
          %v800 = vunpack.c.0.s8 %v799
          %v801 = vlaneseq
          %v802 = vshrl.u32 %v801, 7
          %v803 = vsub.s32 %v800, %v802
          %v804 = vrot.slane %v797, %v803
          %v805 = vcombine.low %v709, %v716
          %v807 = vunpack.c.l.s4 1983009808
          %v808 = vunpack.c.0.s8 %v807
          %v809 = vlaneseq
          %v810 = vshrl.u32 %v809, 7
          %v811 = vsub.s32 %v808, %v810
          %v812 = vrot.slane %v805, %v811
          %v813 = vcombine.low %v719, %v720
          %v815 = vunpack.c.l.s4 1983009808
          %v816 = vunpack.c.0.s8 %v815
          %v817 = vlaneseq
          %v818 = vshrl.u32 %v817, 7
          %v819 = vsub.s32 %v816, %v818
          %v820 = vrot.slane %v813, %v819
          %v821 = vcombine.low %v796, %v804
          %v822 = vcombine.high %v796, %v804
          %v824 = vunpack.c.l.s4 1934713408
          %v825 = vunpack.c.0.s8 %v824
          %v826 = vlaneseq
          %v827 = vshrl.u32 %v826, 7
          %v828 = vsub.s32 %v825, %v827
          %v829 = vrot.slane %v821, %v828
          %v831 = vunpack.c.l.s4 1934713408
          %v832 = vunpack.c.0.s8 %v831
          %v833 = vlaneseq
          %v834 = vshrl.u32 %v833, 7
          %v835 = vsub.s32 %v832, %v834
          %v836 = vrot.slane %v822, %v835
          %v837 = vcombine.low %v812, %v820
          %v838 = vcombine.high %v812, %v820
          %v840 = vunpack.c.l.s4 1934713408
          %v841 = vunpack.c.0.s8 %v840
          %v842 = vlaneseq
          %v843 = vshrl.u32 %v842, 7
          %v844 = vsub.s32 %v841, %v843
          %v845 = vrot.slane %v837, %v844
          %v847 = vunpack.c.l.s4 1934713408
          %v848 = vunpack.c.0.s8 %v847
          %v849 = vlaneseq
          %v850 = vshrl.u32 %v849, 7
          %v851 = vsub.s32 %v848, %v850
          %v852 = vrot.slane %v838, %v851
          %v853 = vcombine.low %v829, %v845
          %v854 = vcombine.high %v829, %v845
          %v855 = vcombine.low %v836, %v852
          %v856 = vcombine.high %v836, %v852
          %v857 = vcombine.low %v761, %v768
          %v859 = vunpack.c.l.s4 1983009808
          %v860 = vunpack.c.0.s8 %v859
          %v861 = vlaneseq
          %v862 = vshrl.u32 %v861, 7
          %v863 = vsub.s32 %v860, %v862
          %v864 = vrot.slane %v857, %v863
          %v865 = vcombine.low %v785, %v786
          %v867 = vunpack.c.l.s4 1983009808
          %v868 = vunpack.c.0.s8 %v867
          %v869 = vlaneseq
          %v870 = vshrl.u32 %v869, 7
          %v871 = vsub.s32 %v868, %v870
          %v872 = vrot.slane %v865, %v871
          %v873 = vcombine.low %v777, %v784
          %v875 = vunpack.c.l.s4 1983009808
          %v876 = vunpack.c.0.s8 %v875
          %v877 = vlaneseq
          %v878 = vshrl.u32 %v877, 7
          %v879 = vsub.s32 %v876, %v878
          %v880 = vrot.slane %v873, %v879
          %v881 = vcombine.low %v787, %v788
          %v883 = vunpack.c.l.s4 1983009808
          %v884 = vunpack.c.0.s8 %v883
          %v885 = vlaneseq
          %v886 = vshrl.u32 %v885, 7
          %v887 = vsub.s32 %v884, %v886
          %v888 = vrot.slane %v881, %v887
          %v889 = vcombine.low %v864, %v872
          %v890 = vcombine.high %v864, %v872
          %v892 = vunpack.c.l.s4 1934713408
          %v893 = vunpack.c.0.s8 %v892
          %v894 = vlaneseq
          %v895 = vshrl.u32 %v894, 7
          %v896 = vsub.s32 %v893, %v895
          %v897 = vrot.slane %v889, %v896
          %v899 = vunpack.c.l.s4 1934713408
          %v900 = vunpack.c.0.s8 %v899
          %v901 = vlaneseq
          %v902 = vshrl.u32 %v901, 7
          %v903 = vsub.s32 %v900, %v902
          %v904 = vrot.slane %v890, %v903
          %v905 = vcombine.low %v880, %v888
          %v906 = vcombine.high %v880, %v888
          %v908 = vunpack.c.l.s4 1934713408
          %v909 = vunpack.c.0.s8 %v908
          %v910 = vlaneseq
          %v911 = vshrl.u32 %v910, 7
          %v912 = vsub.s32 %v909, %v911
          %v913 = vrot.slane %v905, %v912
          %v915 = vunpack.c.l.s4 1934713408
          %v916 = vunpack.c.0.s8 %v915
          %v917 = vlaneseq
          %v918 = vshrl.u32 %v917, 7
          %v919 = vsub.s32 %v916, %v918
          %v920 = vrot.slane %v906, %v919
          %v921 = vcombine.low %v897, %v913
          %v922 = vcombine.high %v897, %v913
          %v923 = vcombine.low %v904, %v920
          %v924 = vcombine.high %v904, %v920
          %v925 = vpack.c.bf16 %v921, %v853
          %v926 = vpack.c.bf16 %v922, %v854
          %v927 = vpack.c.bf16 %v923, %v855
          %v928 = vpack.c.bf16 %v924, %v856
          %vm929 = vcmask 64512
          %930 = vst.msk [vmem:[#allocation2] sm:$0xff] %vm929, %v925
          %931 = vst.msk [vmem:[#allocation2 + $0x8] sm:$0xff] %vm929, %v926
          %932 = vst.msk [vmem:[#allocation2 + $0x10] sm:$0xff] %vm929, %v927
          %933 = vst.msk [vmem:[#allocation2 + $0x18] sm:$0xff] %vm929, %v928
          %934 = vrot.lane.b32.xlu0 %v627, 96
          %v935 = vpop.permute.xlu0 %934
          %936 = vrot.lane.b32.xlu0 %v630, 96
          %v937 = vpop.permute.xlu0 %936
          %938 = vrot.lane.b32.xlu0 %v636, 96
          %v939 = vpop.permute.xlu0 %938
          %940 = vrot.lane.b32.xlu0 %v638, 96
          %v941 = vpop.permute.xlu0 %940
          %942 = vrot.lane.b32.xlu0 %v642, 96
          %v943 = vpop.permute.xlu0 %942
          %944 = vrot.lane.b32.xlu0 %v644, 96
          %v945 = vpop.permute.xlu0 %944
          %946 = vrot.lane.b32.xlu0 %v648, 96
          %v947 = vpop.permute.xlu0 %946
          %948 = vrot.lane.b32.xlu0 %v650, 96
          %v949 = vpop.permute.xlu0 %948
          %v958 = vcombine.low %v935, %v943
          %v959 = vcombine.high %v935, %v943
          %v961 = vunpack.c.l.s4 1983009808
          %v962 = vunpack.c.0.s8 %v961
          %v963 = vlaneseq
          %v964 = vshrl.u32 %v963, 7
          %v965 = vsub.s32 %v962, %v964
          %v966 = vrot.slane %v958, %v965
          %v968 = vunpack.c.l.s4 1983009808
          %v969 = vunpack.c.0.s8 %v968
          %v970 = vlaneseq
          %v971 = vshrl.u32 %v970, 7
          %v972 = vsub.s32 %v969, %v971
          %v973 = vrot.slane %v959, %v972
          %v974 = vcombine.low %v939, %v947
          %v975 = vcombine.high %v939, %v947
          %v977 = vunpack.c.l.s4 1983009808
          %v978 = vunpack.c.0.s8 %v977
          %v979 = vlaneseq
          %v980 = vshrl.u32 %v979, 7
          %v981 = vsub.s32 %v978, %v980
          %v982 = vrot.slane %v974, %v981
          %v984 = vunpack.c.l.s4 1983009808
          %v985 = vunpack.c.0.s8 %v984
          %v986 = vlaneseq
          %v987 = vshrl.u32 %v986, 7
          %v988 = vsub.s32 %v985, %v987
          %v989 = vrot.slane %v975, %v988
          %v990 = vcombine.low %v966, %v982
          %v991 = vcombine.high %v966, %v982
          %v993 = vunpack.c.l.s4 1934713408
          %v994 = vunpack.c.0.s8 %v993
          %v995 = vlaneseq
          %v996 = vshrl.u32 %v995, 7
          %v997 = vsub.s32 %v994, %v996
          %v998 = vrot.slane %v990, %v997
          %v1000 = vunpack.c.l.s4 1934713408
          %v1001 = vunpack.c.0.s8 %v1000
          %v1002 = vlaneseq
          %v1003 = vshrl.u32 %v1002, 7
          %v1004 = vsub.s32 %v1001, %v1003
          %v1005 = vrot.slane %v991, %v1004
          %v1006 = vcombine.low %v973, %v989
          %v1007 = vcombine.high %v973, %v989
          %v1009 = vunpack.c.l.s4 1934713408
          %v1010 = vunpack.c.0.s8 %v1009
          %v1011 = vlaneseq
          %v1012 = vshrl.u32 %v1011, 7
          %v1013 = vsub.s32 %v1010, %v1012
          %v1014 = vrot.slane %v1006, %v1013
          %v1016 = vunpack.c.l.s4 1934713408
          %v1017 = vunpack.c.0.s8 %v1016
          %v1018 = vlaneseq
          %v1019 = vshrl.u32 %v1018, 7
          %v1020 = vsub.s32 %v1017, %v1019
          %v1021 = vrot.slane %v1007, %v1020
          %v1022 = vcombine.high %v998, 0.0
          %v1023 = vcombine.high %v1005, 0.0
          %v1024 = vcombine.high %v1014, 0.0
          %v1025 = vcombine.high %v1021, 0.0
          %v1026 = vcombine.low %v937, %v945
          %v1027 = vcombine.high %v937, %v945
          %v1029 = vunpack.c.l.s4 1983009808
          %v1030 = vunpack.c.0.s8 %v1029
          %v1031 = vlaneseq
          %v1032 = vshrl.u32 %v1031, 7
          %v1033 = vsub.s32 %v1030, %v1032
          %v1034 = vrot.slane %v1026, %v1033
          %v1036 = vunpack.c.l.s4 1983009808
          %v1037 = vunpack.c.0.s8 %v1036
          %v1038 = vlaneseq
          %v1039 = vshrl.u32 %v1038, 7
          %v1040 = vsub.s32 %v1037, %v1039
          %v1041 = vrot.slane %v1027, %v1040
          %v1042 = vcombine.low %v941, %v949
          %v1043 = vcombine.high %v941, %v949
          %v1045 = vunpack.c.l.s4 1983009808
          %v1046 = vunpack.c.0.s8 %v1045
          %v1047 = vlaneseq
          %v1048 = vshrl.u32 %v1047, 7
          %v1049 = vsub.s32 %v1046, %v1048
          %v1050 = vrot.slane %v1042, %v1049
          %v1052 = vunpack.c.l.s4 1983009808
          %v1053 = vunpack.c.0.s8 %v1052
          %v1054 = vlaneseq
          %v1055 = vshrl.u32 %v1054, 7
          %v1056 = vsub.s32 %v1053, %v1055
          %v1057 = vrot.slane %v1043, %v1056
          %v1058 = vcombine.low %v1034, %v1050
          %v1059 = vcombine.high %v1034, %v1050
          %v1061 = vunpack.c.l.s4 1934713408
          %v1062 = vunpack.c.0.s8 %v1061
          %v1063 = vlaneseq
          %v1064 = vshrl.u32 %v1063, 7
          %v1065 = vsub.s32 %v1062, %v1064
          %v1066 = vrot.slane %v1058, %v1065
          %v1068 = vunpack.c.l.s4 1934713408
          %v1069 = vunpack.c.0.s8 %v1068
          %v1070 = vlaneseq
          %v1071 = vshrl.u32 %v1070, 7
          %v1072 = vsub.s32 %v1069, %v1071
          %v1073 = vrot.slane %v1059, %v1072
          %v1074 = vcombine.low %v1041, %v1057
          %v1075 = vcombine.high %v1041, %v1057
          %v1077 = vunpack.c.l.s4 1934713408
          %v1078 = vunpack.c.0.s8 %v1077
          %v1079 = vlaneseq
          %v1080 = vshrl.u32 %v1079, 7
          %v1081 = vsub.s32 %v1078, %v1080
          %v1082 = vrot.slane %v1074, %v1081
          %v1084 = vunpack.c.l.s4 1934713408
          %v1085 = vunpack.c.0.s8 %v1084
          %v1086 = vlaneseq
          %v1087 = vshrl.u32 %v1086, 7
          %v1088 = vsub.s32 %v1085, %v1087
          %v1089 = vrot.slane %v1075, %v1088
          %v1090 = vcombine.high %v1066, 0.0
          %v1091 = vcombine.high %v1073, 0.0
          %v1092 = vcombine.high %v1082, 0.0
          %v1093 = vcombine.high %v1089, 0.0
          %v1094 = vcombine.low %v998, %v1005
          %v1096 = vunpack.c.l.s4 1983009808
          %v1097 = vunpack.c.0.s8 %v1096
          %v1098 = vlaneseq
          %v1099 = vshrl.u32 %v1098, 7
          %v1100 = vsub.s32 %v1097, %v1099
          %v1101 = vrot.slane %v1094, %v1100
          %v1102 = vcombine.low %v1022, %v1023
          %v1104 = vunpack.c.l.s4 1983009808
          %v1105 = vunpack.c.0.s8 %v1104
          %v1106 = vlaneseq
          %v1107 = vshrl.u32 %v1106, 7
          %v1108 = vsub.s32 %v1105, %v1107
          %v1109 = vrot.slane %v1102, %v1108
          %v1110 = vcombine.low %v1014, %v1021
          %v1112 = vunpack.c.l.s4 1983009808
          %v1113 = vunpack.c.0.s8 %v1112
          %v1114 = vlaneseq
          %v1115 = vshrl.u32 %v1114, 7
          %v1116 = vsub.s32 %v1113, %v1115
          %v1117 = vrot.slane %v1110, %v1116
          %v1118 = vcombine.low %v1024, %v1025
          %v1120 = vunpack.c.l.s4 1983009808
          %v1121 = vunpack.c.0.s8 %v1120
          %v1122 = vlaneseq
          %v1123 = vshrl.u32 %v1122, 7
          %v1124 = vsub.s32 %v1121, %v1123
          %v1125 = vrot.slane %v1118, %v1124
          %v1126 = vcombine.low %v1101, %v1109
          %v1127 = vcombine.high %v1101, %v1109
          %v1129 = vunpack.c.l.s4 1934713408
          %v1130 = vunpack.c.0.s8 %v1129
          %v1131 = vlaneseq
          %v1132 = vshrl.u32 %v1131, 7
          %v1133 = vsub.s32 %v1130, %v1132
          %v1134 = vrot.slane %v1126, %v1133
          %v1136 = vunpack.c.l.s4 1934713408
          %v1137 = vunpack.c.0.s8 %v1136
          %v1138 = vlaneseq
          %v1139 = vshrl.u32 %v1138, 7
          %v1140 = vsub.s32 %v1137, %v1139
          %v1141 = vrot.slane %v1127, %v1140
          %v1142 = vcombine.low %v1117, %v1125
          %v1143 = vcombine.high %v1117, %v1125
          %v1145 = vunpack.c.l.s4 1934713408
          %v1146 = vunpack.c.0.s8 %v1145
          %v1147 = vlaneseq
          %v1148 = vshrl.u32 %v1147, 7
          %v1149 = vsub.s32 %v1146, %v1148
          %v1150 = vrot.slane %v1142, %v1149
          %v1152 = vunpack.c.l.s4 1934713408
          %v1153 = vunpack.c.0.s8 %v1152
          %v1154 = vlaneseq
          %v1155 = vshrl.u32 %v1154, 7
          %v1156 = vsub.s32 %v1153, %v1155
          %v1157 = vrot.slane %v1143, %v1156
          %v1158 = vcombine.low %v1134, %v1150
          %v1159 = vcombine.high %v1134, %v1150
          %v1160 = vcombine.low %v1141, %v1157
          %v1161 = vcombine.high %v1141, %v1157
          %v1162 = vcombine.low %v1066, %v1073
          %v1164 = vunpack.c.l.s4 1983009808
          %v1165 = vunpack.c.0.s8 %v1164
          %v1166 = vlaneseq
          %v1167 = vshrl.u32 %v1166, 7
          %v1168 = vsub.s32 %v1165, %v1167
          %v1169 = vrot.slane %v1162, %v1168
          %v1170 = vcombine.low %v1090, %v1091
          %v1172 = vunpack.c.l.s4 1983009808
          %v1173 = vunpack.c.0.s8 %v1172
          %v1174 = vlaneseq
          %v1175 = vshrl.u32 %v1174, 7
          %v1176 = vsub.s32 %v1173, %v1175
          %v1177 = vrot.slane %v1170, %v1176
          %v1178 = vcombine.low %v1082, %v1089
          %v1180 = vunpack.c.l.s4 1983009808
          %v1181 = vunpack.c.0.s8 %v1180
          %v1182 = vlaneseq
          %v1183 = vshrl.u32 %v1182, 7
          %v1184 = vsub.s32 %v1181, %v1183
          %v1185 = vrot.slane %v1178, %v1184
          %v1186 = vcombine.low %v1092, %v1093
          %v1188 = vunpack.c.l.s4 1983009808
          %v1189 = vunpack.c.0.s8 %v1188
          %v1190 = vlaneseq
          %v1191 = vshrl.u32 %v1190, 7
          %v1192 = vsub.s32 %v1189, %v1191
          %v1193 = vrot.slane %v1186, %v1192
          %v1194 = vcombine.low %v1169, %v1177
          %v1195 = vcombine.high %v1169, %v1177
          %v1197 = vunpack.c.l.s4 1934713408
          %v1198 = vunpack.c.0.s8 %v1197
          %v1199 = vlaneseq
          %v1200 = vshrl.u32 %v1199, 7
          %v1201 = vsub.s32 %v1198, %v1200
          %v1202 = vrot.slane %v1194, %v1201
          %v1204 = vunpack.c.l.s4 1934713408
          %v1205 = vunpack.c.0.s8 %v1204
          %v1206 = vlaneseq
          %v1207 = vshrl.u32 %v1206, 7
          %v1208 = vsub.s32 %v1205, %v1207
          %v1209 = vrot.slane %v1195, %v1208
          %v1210 = vcombine.low %v1185, %v1193
          %v1211 = vcombine.high %v1185, %v1193
          %v1213 = vunpack.c.l.s4 1934713408
          %v1214 = vunpack.c.0.s8 %v1213
          %v1215 = vlaneseq
          %v1216 = vshrl.u32 %v1215, 7
          %v1217 = vsub.s32 %v1214, %v1216
          %v1218 = vrot.slane %v1210, %v1217
          %v1220 = vunpack.c.l.s4 1934713408
          %v1221 = vunpack.c.0.s8 %v1220
          %v1222 = vlaneseq
          %v1223 = vshrl.u32 %v1222, 7
          %v1224 = vsub.s32 %v1221, %v1223
          %v1225 = vrot.slane %v1211, %v1224
          %v1226 = vcombine.low %v1202, %v1218
          %v1227 = vcombine.high %v1202, %v1218
          %v1228 = vcombine.low %v1209, %v1225
          %v1229 = vcombine.high %v1209, %v1225
          %v1230 = vpack.c.bf16 %v1226, %v1158
          %v1231 = vpack.c.bf16 %v1227, %v1159
          %v1232 = vpack.c.bf16 %v1228, %v1160
          %v1233 = vpack.c.bf16 %v1229, %v1161
          %1234 = vst.msk [vmem:[#allocation3] sm:$0xff] %vm929, %v1230
          %1235 = vst.msk [vmem:[#allocation3 + $0x8] sm:$0xff] %vm929, %v1231
          %1236 = vst.msk [vmem:[#allocation3 + $0x10] sm:$0xff] %vm929, %v1232
          %1237 = vst.msk [vmem:[#allocation3 + $0x18] sm:$0xff] %vm929, %v1233
          %1238 = vrot.lane.b32.xlu0 %v627, 64
          %v1239 = vpop.permute.xlu0 %1238
          %1240 = vrot.lane.b32.xlu0 %v630, 64
          %v1241 = vpop.permute.xlu0 %1240
          %1242 = vrot.lane.b32.xlu0 %v636, 64
          %v1243 = vpop.permute.xlu0 %1242
          %1244 = vrot.lane.b32.xlu0 %v638, 64
          %v1245 = vpop.permute.xlu0 %1244
          %1246 = vrot.lane.b32.xlu0 %v642, 64
          %v1247 = vpop.permute.xlu0 %1246
          %1248 = vrot.lane.b32.xlu0 %v644, 64
          %v1249 = vpop.permute.xlu0 %1248
          %1250 = vrot.lane.b32.xlu0 %v648, 64
          %v1251 = vpop.permute.xlu0 %1250
          %1252 = vrot.lane.b32.xlu0 %v650, 64
          %v1253 = vpop.permute.xlu0 %1252
          %v1262 = vcombine.low %v1239, %v1247
          %v1263 = vcombine.high %v1239, %v1247
          %v1265 = vunpack.c.l.s4 1983009808
          %v1266 = vunpack.c.0.s8 %v1265
          %v1267 = vlaneseq
          %v1268 = vshrl.u32 %v1267, 7
          %v1269 = vsub.s32 %v1266, %v1268
          %v1270 = vrot.slane %v1262, %v1269
          %v1272 = vunpack.c.l.s4 1983009808
          %v1273 = vunpack.c.0.s8 %v1272
          %v1274 = vlaneseq
          %v1275 = vshrl.u32 %v1274, 7
          %v1276 = vsub.s32 %v1273, %v1275
          %v1277 = vrot.slane %v1263, %v1276
          %v1278 = vcombine.low %v1243, %v1251
          %v1279 = vcombine.high %v1243, %v1251
          %v1281 = vunpack.c.l.s4 1983009808
          %v1282 = vunpack.c.0.s8 %v1281
          %v1283 = vlaneseq
          %v1284 = vshrl.u32 %v1283, 7
          %v1285 = vsub.s32 %v1282, %v1284
          %v1286 = vrot.slane %v1278, %v1285
          %v1288 = vunpack.c.l.s4 1983009808
          %v1289 = vunpack.c.0.s8 %v1288
          %v1290 = vlaneseq
          %v1291 = vshrl.u32 %v1290, 7
          %v1292 = vsub.s32 %v1289, %v1291
          %v1293 = vrot.slane %v1279, %v1292
          %v1294 = vcombine.low %v1270, %v1286
          %v1295 = vcombine.high %v1270, %v1286
          %v1297 = vunpack.c.l.s4 1934713408
          %v1298 = vunpack.c.0.s8 %v1297
          %v1299 = vlaneseq
          %v1300 = vshrl.u32 %v1299, 7
          %v1301 = vsub.s32 %v1298, %v1300
          %v1302 = vrot.slane %v1294, %v1301
          %v1304 = vunpack.c.l.s4 1934713408
          %v1305 = vunpack.c.0.s8 %v1304
          %v1306 = vlaneseq
          %v1307 = vshrl.u32 %v1306, 7
          %v1308 = vsub.s32 %v1305, %v1307
          %v1309 = vrot.slane %v1295, %v1308
          %v1310 = vcombine.low %v1277, %v1293
          %v1311 = vcombine.high %v1277, %v1293
          %v1313 = vunpack.c.l.s4 1934713408
          %v1314 = vunpack.c.0.s8 %v1313
          %v1315 = vlaneseq
          %v1316 = vshrl.u32 %v1315, 7
          %v1317 = vsub.s32 %v1314, %v1316
          %v1318 = vrot.slane %v1310, %v1317
          %v1320 = vunpack.c.l.s4 1934713408
          %v1321 = vunpack.c.0.s8 %v1320
          %v1322 = vlaneseq
          %v1323 = vshrl.u32 %v1322, 7
          %v1324 = vsub.s32 %v1321, %v1323
          %v1325 = vrot.slane %v1311, %v1324
          %v1326 = vcombine.high %v1302, 0.0
          %v1327 = vcombine.high %v1309, 0.0
          %v1328 = vcombine.high %v1318, 0.0
          %v1329 = vcombine.high %v1325, 0.0
          %v1330 = vcombine.low %v1241, %v1249
          %v1331 = vcombine.high %v1241, %v1249
          %v1333 = vunpack.c.l.s4 1983009808
          %v1334 = vunpack.c.0.s8 %v1333
          %v1335 = vlaneseq
          %v1336 = vshrl.u32 %v1335, 7
          %v1337 = vsub.s32 %v1334, %v1336
          %v1338 = vrot.slane %v1330, %v1337
          %v1340 = vunpack.c.l.s4 1983009808
          %v1341 = vunpack.c.0.s8 %v1340
          %v1342 = vlaneseq
          %v1343 = vshrl.u32 %v1342, 7
          %v1344 = vsub.s32 %v1341, %v1343
          %v1345 = vrot.slane %v1331, %v1344
          %v1346 = vcombine.low %v1245, %v1253
          %v1347 = vcombine.high %v1245, %v1253
          %v1349 = vunpack.c.l.s4 1983009808
          %v1350 = vunpack.c.0.s8 %v1349
          %v1351 = vlaneseq
          %v1352 = vshrl.u32 %v1351, 7
          %v1353 = vsub.s32 %v1350, %v1352
          %v1354 = vrot.slane %v1346, %v1353
          %v1356 = vunpack.c.l.s4 1983009808
          %v1357 = vunpack.c.0.s8 %v1356
          %v1358 = vlaneseq
          %v1359 = vshrl.u32 %v1358, 7
          %v1360 = vsub.s32 %v1357, %v1359
          %v1361 = vrot.slane %v1347, %v1360
          %v1362 = vcombine.low %v1338, %v1354
          %v1363 = vcombine.high %v1338, %v1354
          %v1365 = vunpack.c.l.s4 1934713408
          %v1366 = vunpack.c.0.s8 %v1365
          %v1367 = vlaneseq
          %v1368 = vshrl.u32 %v1367, 7
          %v1369 = vsub.s32 %v1366, %v1368
          %v1370 = vrot.slane %v1362, %v1369
          %v1372 = vunpack.c.l.s4 1934713408
          %v1373 = vunpack.c.0.s8 %v1372
          %v1374 = vlaneseq
          %v1375 = vshrl.u32 %v1374, 7
          %v1376 = vsub.s32 %v1373, %v1375
          %v1377 = vrot.slane %v1363, %v1376
          %v1378 = vcombine.low %v1345, %v1361
          %v1379 = vcombine.high %v1345, %v1361
          %v1381 = vunpack.c.l.s4 1934713408
          %v1382 = vunpack.c.0.s8 %v1381
          %v1383 = vlaneseq
          %v1384 = vshrl.u32 %v1383, 7
          %v1385 = vsub.s32 %v1382, %v1384
          %v1386 = vrot.slane %v1378, %v1385
          %v1388 = vunpack.c.l.s4 1934713408
          %v1389 = vunpack.c.0.s8 %v1388
          %v1390 = vlaneseq
          %v1391 = vshrl.u32 %v1390, 7
          %v1392 = vsub.s32 %v1389, %v1391
          %v1393 = vrot.slane %v1379, %v1392
          %v1394 = vcombine.high %v1370, 0.0
          %v1395 = vcombine.high %v1377, 0.0
          %v1396 = vcombine.high %v1386, 0.0
          %v1397 = vcombine.high %v1393, 0.0
          %v1398 = vcombine.low %v1302, %v1309
          %v1400 = vunpack.c.l.s4 1983009808
          %v1401 = vunpack.c.0.s8 %v1400
          %v1402 = vlaneseq
          %v1403 = vshrl.u32 %v1402, 7
          %v1404 = vsub.s32 %v1401, %v1403
          %v1405 = vrot.slane %v1398, %v1404
          %v1406 = vcombine.low %v1326, %v1327
          %v1408 = vunpack.c.l.s4 1983009808
          %v1409 = vunpack.c.0.s8 %v1408
          %v1410 = vlaneseq
          %v1411 = vshrl.u32 %v1410, 7
          %v1412 = vsub.s32 %v1409, %v1411
          %v1413 = vrot.slane %v1406, %v1412
          %v1414 = vcombine.low %v1318, %v1325
          %v1416 = vunpack.c.l.s4 1983009808
          %v1417 = vunpack.c.0.s8 %v1416
          %v1418 = vlaneseq
          %v1419 = vshrl.u32 %v1418, 7
          %v1420 = vsub.s32 %v1417, %v1419
          %v1421 = vrot.slane %v1414, %v1420
          %v1422 = vcombine.low %v1328, %v1329
          %v1424 = vunpack.c.l.s4 1983009808
          %v1425 = vunpack.c.0.s8 %v1424
          %v1426 = vlaneseq
          %v1427 = vshrl.u32 %v1426, 7
          %v1428 = vsub.s32 %v1425, %v1427
          %v1429 = vrot.slane %v1422, %v1428
          %v1430 = vcombine.low %v1405, %v1413
          %v1431 = vcombine.high %v1405, %v1413
          %v1433 = vunpack.c.l.s4 1934713408
          %v1434 = vunpack.c.0.s8 %v1433
          %v1435 = vlaneseq
          %v1436 = vshrl.u32 %v1435, 7
          %v1437 = vsub.s32 %v1434, %v1436
          %v1438 = vrot.slane %v1430, %v1437
          %v1440 = vunpack.c.l.s4 1934713408
          %v1441 = vunpack.c.0.s8 %v1440
          %v1442 = vlaneseq
          %v1443 = vshrl.u32 %v1442, 7
          %v1444 = vsub.s32 %v1441, %v1443
          %v1445 = vrot.slane %v1431, %v1444
          %v1446 = vcombine.low %v1421, %v1429
          %v1447 = vcombine.high %v1421, %v1429
          %v1449 = vunpack.c.l.s4 1934713408
          %v1450 = vunpack.c.0.s8 %v1449
          %v1451 = vlaneseq
          %v1452 = vshrl.u32 %v1451, 7
          %v1453 = vsub.s32 %v1450, %v1452
          %v1454 = vrot.slane %v1446, %v1453
          %v1456 = vunpack.c.l.s4 1934713408
          %v1457 = vunpack.c.0.s8 %v1456
          %v1458 = vlaneseq
          %v1459 = vshrl.u32 %v1458, 7
          %v1460 = vsub.s32 %v1457, %v1459
          %v1461 = vrot.slane %v1447, %v1460
          %v1462 = vcombine.low %v1438, %v1454
          %v1463 = vcombine.high %v1438, %v1454
          %v1464 = vcombine.low %v1445, %v1461
          %v1465 = vcombine.high %v1445, %v1461
          %v1466 = vcombine.low %v1370, %v1377
          %v1468 = vunpack.c.l.s4 1983009808
          %v1469 = vunpack.c.0.s8 %v1468
          %v1470 = vlaneseq
          %v1471 = vshrl.u32 %v1470, 7
          %v1472 = vsub.s32 %v1469, %v1471
          %v1473 = vrot.slane %v1466, %v1472
          %v1474 = vcombine.low %v1394, %v1395
          %v1476 = vunpack.c.l.s4 1983009808
          %v1477 = vunpack.c.0.s8 %v1476
          %v1478 = vlaneseq
          %v1479 = vshrl.u32 %v1478, 7
          %v1480 = vsub.s32 %v1477, %v1479
          %v1481 = vrot.slane %v1474, %v1480
          %v1482 = vcombine.low %v1386, %v1393
          %v1484 = vunpack.c.l.s4 1983009808
          %v1485 = vunpack.c.0.s8 %v1484
          %v1486 = vlaneseq
          %v1487 = vshrl.u32 %v1486, 7
          %v1488 = vsub.s32 %v1485, %v1487
          %v1489 = vrot.slane %v1482, %v1488
          %v1490 = vcombine.low %v1396, %v1397
          %v1492 = vunpack.c.l.s4 1983009808
          %v1493 = vunpack.c.0.s8 %v1492
          %v1494 = vlaneseq
          %v1495 = vshrl.u32 %v1494, 7
          %v1496 = vsub.s32 %v1493, %v1495
          %v1497 = vrot.slane %v1490, %v1496
          %v1498 = vcombine.low %v1473, %v1481
          %v1499 = vcombine.high %v1473, %v1481
          %v1501 = vunpack.c.l.s4 1934713408
          %v1502 = vunpack.c.0.s8 %v1501
          %v1503 = vlaneseq
          %v1504 = vshrl.u32 %v1503, 7
          %v1505 = vsub.s32 %v1502, %v1504
          %v1506 = vrot.slane %v1498, %v1505
          %v1508 = vunpack.c.l.s4 1934713408
          %v1509 = vunpack.c.0.s8 %v1508
          %v1510 = vlaneseq
          %v1511 = vshrl.u32 %v1510, 7
          %v1512 = vsub.s32 %v1509, %v1511
          %v1513 = vrot.slane %v1499, %v1512
          %v1514 = vcombine.low %v1489, %v1497
          %v1515 = vcombine.high %v1489, %v1497
          %v1517 = vunpack.c.l.s4 1934713408
          %v1518 = vunpack.c.0.s8 %v1517
          %v1519 = vlaneseq
          %v1520 = vshrl.u32 %v1519, 7
          %v1521 = vsub.s32 %v1518, %v1520
          %v1522 = vrot.slane %v1514, %v1521
          %v1524 = vunpack.c.l.s4 1934713408
          %v1525 = vunpack.c.0.s8 %v1524
          %v1526 = vlaneseq
          %v1527 = vshrl.u32 %v1526, 7
          %v1528 = vsub.s32 %v1525, %v1527
          %v1529 = vrot.slane %v1515, %v1528
          %v1530 = vcombine.low %v1506, %v1522
          %v1531 = vcombine.high %v1506, %v1522
          %v1532 = vcombine.low %v1513, %v1529
          %v1533 = vcombine.high %v1513, %v1529
          %v1534 = vpack.c.bf16 %v1530, %v1462
          %v1535 = vpack.c.bf16 %v1531, %v1463
          %v1536 = vpack.c.bf16 %v1532, %v1464
          %v1537 = vpack.c.bf16 %v1533, %v1465
          %1538 = vst.msk [vmem:[#allocation4] sm:$0xff] %vm929, %v1534
          %1539 = vst.msk [vmem:[#allocation4 + $0x8] sm:$0xff] %vm929, %v1535
          %1540 = vst.msk [vmem:[#allocation4 + $0x10] sm:$0xff] %vm929, %v1536
          %1541 = vst.msk [vmem:[#allocation4 + $0x18] sm:$0xff] %vm929, %v1537
        $region80: #{tpu_custom_call.1} parent=75 // pred_fallthru
          _
        %s1542 = smul.u32 %s33, 16
        %s1543 = scalar_lea.vmem %s490, %s1542
        %v1544 = vld [vmem:[%s1543] sm:$0xff]
        %v1545 = vld [vmem:[%s1543 + $0x8] sm:$0xff]
        %s1546 = sshra.s32 %s1542, 4
        %s1547 = sand.u32 %s1542, 15
        %s1548 = smul.addr %s1546, 8
        %s1549 = scalar_lea.vmem [#allocation2], %s1548
        %v1550 = vld [vmem:[%s1549] sm:$0xff]
        %v1551 = vld [vmem:[%s1549 + $0x8] sm:$0xff]
        %v1552 = vld [vmem:[%s1549 + $0x10] sm:$0xff]
        %v1553 = vld [vmem:[%s1549 + $0x18] sm:$0xff]
        %v1554 = vld [vmem:[#allocation3] sm:$0xff]
        %v1555 = vld [vmem:[#allocation3 + $0x8] sm:$0xff]
        %v1556 = vld [vmem:[#allocation3 + $0x10] sm:$0xff]
        %v1557 = vld [vmem:[#allocation3 + $0x18] sm:$0xff]
        %vm1558 = vcmask 64512
        %v1560 = vsel %vm1558, %v1550, 0
        %v1563 = vsel %vm1558, %v1554, 0
        %1565 = vmatprep.subr.bf16.mxu0 0
        %1566 = vmatpush1.bf16.xpose.msra.mxu0 %v1563
        %1567 = vmatprep.subr.bf16.mxu0 0
        %1568 = vmatpush1.bf16.xpose.msra.mxu0 0
        %1569 = vmatprep.subr.bf16.mxu0 0
        %1570 = vmatpush1.bf16.xpose.msra.mxu0 0
        %1571 = vmatprep.subr.bf16.mxu0 0
        %1572 = vmatpush1.bf16.xpose.msra.mxu0 0
        %1573 = vmatprep.subr.bf16.mxu0 0
        %1574 = vmatpush1.bf16.xpose.msra.mxu0 0
        %1575 = vmatprep.subr.bf16.mxu0 0
        %1576 = vmatpush1.bf16.xpose.msra.mxu0 0
        %1577 = vmatprep.subr.bf16.mxu0 0
        %1578 = vmatpush1.bf16.xpose.msra.mxu0 0
        %1579 = vmatprep.subr.bf16.mxu0 0
        %1580 = vmatpush1.bf16.xpose.msra.mxu0 0
        %1581 = vmatprep.subr.bf16.mxu0 0
        %1582 = vmatpush1.bf16.xpose.msra.mxu0 0
        %1583 = vmatprep.subr.bf16.mxu0 0
        %1584 = vmatpush1.bf16.xpose.msra.mxu0 0
        %1585 = vmatprep.subr.bf16.mxu0 0
        %1586 = vmatpush1.bf16.xpose.msra.mxu0 0
        %1587 = vmatprep.subr.bf16.mxu0 0
        %1588 = vmatpush1.bf16.xpose.msra.mxu0 0
        %1589 = vmatprep.subr.bf16.mxu0 0
        %1590 = vmatpush1.bf16.xpose.msra.mxu0 0
        %1591 = vmatprep.subr.bf16.mxu0 0
        %1592 = vmatpush1.bf16.xpose.msra.mxu0 0
        %1593 = vmatprep.subr.bf16.mxu0 0
        %1594 = vmatpush1.bf16.xpose.msra.mxu0 0
        %1595 = vmatprep.subr.bf16.mxu0 0
        %1596 = vmatpush1.bf16.xpose.msra.mxu0 0
        %1597 = vmatprep.mubr.bf16.mxu0 0
        %1598 = vmatmul.mubr.bf16.gmra.mrb[0].mxu0 %v1560
        %v1599 = vpop.f32.mrb[0].mxu0
        %v1600 = vadd.f32 0.0, %v1599
        %v1601 = vpop.f32.mrb[0].mxu0
        %v1602 = vpop.f32.mrb[0].mxu0
        %v1603 = vadd.f32 0.0, %v1602
        %v1604 = vpop.f32.mrb[0].mxu0
        %1605 = vdwg.mxu0
        %v1607 = vsel %vm1558, %v1551, 0
        %v1610 = vsel %vm1558, %v1555, 0
        %1612 = vmatprep.subr.bf16.mxu0 0
        %1613 = vmatpush1.bf16.xpose.msra.mxu0 %v1610
        %1614 = vmatprep.subr.bf16.mxu0 0
        %1615 = vmatpush1.bf16.xpose.msra.mxu0 0
        %1616 = vmatprep.subr.bf16.mxu0 0
        %1617 = vmatpush1.bf16.xpose.msra.mxu0 0
        %1618 = vmatprep.subr.bf16.mxu0 0
        %1619 = vmatpush1.bf16.xpose.msra.mxu0 0
        %1620 = vmatprep.subr.bf16.mxu0 0
        %1621 = vmatpush1.bf16.xpose.msra.mxu0 0
        %1622 = vmatprep.subr.bf16.mxu0 0
        %1623 = vmatpush1.bf16.xpose.msra.mxu0 0
        %1624 = vmatprep.subr.bf16.mxu0 0
        %1625 = vmatpush1.bf16.xpose.msra.mxu0 0
        %1626 = vmatprep.subr.bf16.mxu0 0
        %1627 = vmatpush1.bf16.xpose.msra.mxu0 0
        %1628 = vmatprep.subr.bf16.mxu0 0
        %1629 = vmatpush1.bf16.xpose.msra.mxu0 0
        %1630 = vmatprep.subr.bf16.mxu0 0
        %1631 = vmatpush1.bf16.xpose.msra.mxu0 0
        %1632 = vmatprep.subr.bf16.mxu0 0
        %1633 = vmatpush1.bf16.xpose.msra.mxu0 0
        %1634 = vmatprep.subr.bf16.mxu0 0
        %1635 = vmatpush1.bf16.xpose.msra.mxu0 0
        %1636 = vmatprep.subr.bf16.mxu0 0
        %1637 = vmatpush1.bf16.xpose.msra.mxu0 0
        %1638 = vmatprep.subr.bf16.mxu0 0
        %1639 = vmatpush1.bf16.xpose.msra.mxu0 0
        %1640 = vmatprep.subr.bf16.mxu0 0
        %1641 = vmatpush1.bf16.xpose.msra.mxu0 0
        %1642 = vmatprep.subr.bf16.mxu0 0
        %1643 = vmatpush1.bf16.xpose.msra.mxu0 0
        %1644 = vmatprep.mubr.bf16.mxu0 0
        %1645 = vmatmul.mubr.bf16.gmra.mrb[0].mxu0 %v1607
        %v1646 = vpop.f32.mrb[0].mxu0
        %v1647 = vadd.f32 0.0, %v1646
        %v1648 = vpop.f32.mrb[0].mxu0
        %v1649 = vpop.f32.mrb[0].mxu0
        %v1650 = vadd.f32 0.0, %v1649
        %v1651 = vpop.f32.mrb[0].mxu0
        %1652 = vdwg.mxu0
        %v1654 = vsel %vm1558, %v1552, 0
        %v1657 = vsel %vm1558, %v1556, 0
        %1659 = vmatprep.subr.bf16.mxu0 0
        %1660 = vmatpush1.bf16.xpose.msra.mxu0 %v1657
        %1661 = vmatprep.subr.bf16.mxu0 0
        %1662 = vmatpush1.bf16.xpose.msra.mxu0 0
        %1663 = vmatprep.subr.bf16.mxu0 0
        %1664 = vmatpush1.bf16.xpose.msra.mxu0 0
        %1665 = vmatprep.subr.bf16.mxu0 0
        %1666 = vmatpush1.bf16.xpose.msra.mxu0 0
        %1667 = vmatprep.subr.bf16.mxu0 0
        %1668 = vmatpush1.bf16.xpose.msra.mxu0 0
        %1669 = vmatprep.subr.bf16.mxu0 0
        %1670 = vmatpush1.bf16.xpose.msra.mxu0 0
        %1671 = vmatprep.subr.bf16.mxu0 0
        %1672 = vmatpush1.bf16.xpose.msra.mxu0 0
        %1673 = vmatprep.subr.bf16.mxu0 0
        %1674 = vmatpush1.bf16.xpose.msra.mxu0 0
        %1675 = vmatprep.subr.bf16.mxu0 0
        %1676 = vmatpush1.bf16.xpose.msra.mxu0 0
        %1677 = vmatprep.subr.bf16.mxu0 0
        %1678 = vmatpush1.bf16.xpose.msra.mxu0 0
        %1679 = vmatprep.subr.bf16.mxu0 0
        %1680 = vmatpush1.bf16.xpose.msra.mxu0 0
        %1681 = vmatprep.subr.bf16.mxu0 0
        %1682 = vmatpush1.bf16.xpose.msra.mxu0 0
        %1683 = vmatprep.subr.bf16.mxu0 0
        %1684 = vmatpush1.bf16.xpose.msra.mxu0 0
        %1685 = vmatprep.subr.bf16.mxu0 0
        %1686 = vmatpush1.bf16.xpose.msra.mxu0 0
        %1687 = vmatprep.subr.bf16.mxu0 0
        %1688 = vmatpush1.bf16.xpose.msra.mxu0 0
        %1689 = vmatprep.subr.bf16.mxu0 0
        %1690 = vmatpush1.bf16.xpose.msra.mxu0 0
        %1691 = vmatprep.mubr.bf16.mxu0 0
        %1692 = vmatmul.mubr.bf16.gmra.mrb[0].mxu0 %v1654
        %v1693 = vpop.f32.mrb[0].mxu0
        %v1694 = vadd.f32 0.0, %v1693
        %v1695 = vpop.f32.mrb[0].mxu0
        %v1696 = vpop.f32.mrb[0].mxu0
        %v1697 = vadd.f32 0.0, %v1696
        %v1698 = vpop.f32.mrb[0].mxu0
        %1699 = vdwg.mxu0
        %v1701 = vsel %vm1558, %v1553, 0
        %v1704 = vsel %vm1558, %v1557, 0
        %1706 = vmatprep.subr.bf16.mxu0 0
        %1707 = vmatpush1.bf16.xpose.msra.mxu0 %v1704
        %1708 = vmatprep.subr.bf16.mxu0 0
        %1709 = vmatpush1.bf16.xpose.msra.mxu0 0
        %1710 = vmatprep.subr.bf16.mxu0 0
        %1711 = vmatpush1.bf16.xpose.msra.mxu0 0
        %1712 = vmatprep.subr.bf16.mxu0 0
        %1713 = vmatpush1.bf16.xpose.msra.mxu0 0
        %1714 = vmatprep.subr.bf16.mxu0 0
        %1715 = vmatpush1.bf16.xpose.msra.mxu0 0
        %1716 = vmatprep.subr.bf16.mxu0 0
        %1717 = vmatpush1.bf16.xpose.msra.mxu0 0
        %1718 = vmatprep.subr.bf16.mxu0 0
        %1719 = vmatpush1.bf16.xpose.msra.mxu0 0
        %1720 = vmatprep.subr.bf16.mxu0 0
        %1721 = vmatpush1.bf16.xpose.msra.mxu0 0
        %1722 = vmatprep.subr.bf16.mxu0 0
        %1723 = vmatpush1.bf16.xpose.msra.mxu0 0
        %1724 = vmatprep.subr.bf16.mxu0 0
        %1725 = vmatpush1.bf16.xpose.msra.mxu0 0
        %1726 = vmatprep.subr.bf16.mxu0 0
        %1727 = vmatpush1.bf16.xpose.msra.mxu0 0
        %1728 = vmatprep.subr.bf16.mxu0 0
        %1729 = vmatpush1.bf16.xpose.msra.mxu0 0
        %1730 = vmatprep.subr.bf16.mxu0 0
        %1731 = vmatpush1.bf16.xpose.msra.mxu0 0
        %1732 = vmatprep.subr.bf16.mxu0 0
        %1733 = vmatpush1.bf16.xpose.msra.mxu0 0
        %1734 = vmatprep.subr.bf16.mxu0 0
        %1735 = vmatpush1.bf16.xpose.msra.mxu0 0
        %1736 = vmatprep.subr.bf16.mxu0 0
        %1737 = vmatpush1.bf16.xpose.msra.mxu0 0
        %1738 = vmatprep.mubr.bf16.mxu0 0
        %1739 = vmatmul.mubr.bf16.gmra.mrb[0].mxu0 %v1701
        %v1740 = vpop.f32.mrb[0].mxu0
        %v1741 = vadd.f32 0.0, %v1740
        %v1742 = vpop.f32.mrb[0].mxu0
        %v1743 = vpop.f32.mrb[0].mxu0
        %v1744 = vadd.f32 0.0, %v1743
        %v1745 = vpop.f32.mrb[0].mxu0
        %1746 = vdwg.mxu0
        %v1747 = vmul.f32 %v1600, 0.35355338
        %v1748 = vmul.f32 %v1603, 0.35355338
        %v1749 = vmul.f32 %v1647, 0.35355338
        %v1750 = vmul.f32 %v1650, 0.35355338
        %v1751 = vmul.f32 %v1694, 0.35355338
        %v1752 = vmul.f32 %v1697, 0.35355338
        %v1753 = vmul.f32 %v1741, 0.35355338
        %v1754 = vmul.f32 %v1744, 0.35355338
        %v1755 = vld [vmem:[%s493] sm:$0x1]
        %v1757 = vlaneseq
        %v1758 = vshrl.u32 %v1757, 7
        %v1759 = vsub.s32 0, %v1758
        %v1760 = vrot.slane %v1755, %v1759
        %v1762 = vadd.f32 %v1747, %v1760
        %v1763 = vadd.f32 %v1748, %v1760
        %v1764 = vadd.f32 %v1749, %v1760
        %v1765 = vadd.f32 %v1750, %v1760
        %v1766 = vadd.f32 %v1751, %v1760
        %v1767 = vadd.f32 %v1752, %v1760
        %v1768 = vadd.f32 %v1753, %v1760
        %v1769 = vadd.f32 %v1754, %v1760
        %vm1770 = vcmask 130048
        %v1771 = vsel %vm1770, %v1762, -inf
        %1772 = vmax.xlane.f32.xlu0 %v1771
        %v1773 = vpop.xlane.xlu0 %1772
        %v1774 = vsel %vm1770, %v1763, -inf
        %1775 = vmax.xlane.f32.xlu0 %v1774
        %v1776 = vpop.xlane.xlu0 %1775
        %v1777 = vsel %vm1770, %v1764, -inf
        %1778 = vmax.xlane.f32.xlu0 %v1777
        %v1779 = vpop.xlane.xlu0 %1778
        %v1780 = vsel %vm1770, %v1765, -inf
        %1781 = vmax.xlane.f32.xlu0 %v1780
        %v1782 = vpop.xlane.xlu0 %1781
        %v1783 = vsel %vm1770, %v1766, -inf
        %1784 = vmax.xlane.f32.xlu0 %v1783
        %v1785 = vpop.xlane.xlu0 %1784
        %v1786 = vsel %vm1770, %v1767, -inf
        %1787 = vmax.xlane.f32.xlu0 %v1786
        %v1788 = vpop.xlane.xlu0 %1787
        %v1789 = vsel %vm1770, %v1768, -inf
        %1790 = vmax.xlane.f32.xlu0 %v1789
        %v1791 = vpop.xlane.xlu0 %1790
        %v1792 = vsel %vm1770, %v1769, -inf
        %1793 = vmax.xlane.f32.xlu0 %v1792
        %v1794 = vpop.xlane.xlu0 %1793
        %v1795 = vsub.f32 %v1762, %v1773
        %v1796 = vsub.f32 %v1763, %v1776
        %v1797 = vsub.f32 %v1764, %v1779
        %v1798 = vsub.f32 %v1765, %v1782
        %v1799 = vsub.f32 %v1766, %v1785
        %v1800 = vsub.f32 %v1767, %v1788
        %v1801 = vsub.f32 %v1768, %v1791
        %v1802 = vsub.f32 %v1769, %v1794
        %v1803 = vmul.f32 %v1795, 1.442695
        %v1804 = vpow.pop %v1803
        %v1805 = vmul.f32 %v1796, 1.442695
        %v1806 = vpow.pop %v1805
        %v1807 = vmul.f32 %v1797, 1.442695
        %v1808 = vpow.pop %v1807
        %v1809 = vmul.f32 %v1798, 1.442695
        %v1810 = vpow.pop %v1809
        %v1811 = vmul.f32 %v1799, 1.442695
        %v1812 = vpow.pop %v1811
        %v1813 = vmul.f32 %v1800, 1.442695
        %v1814 = vpow.pop %v1813
        %v1815 = vmul.f32 %v1801, 1.442695
        %v1816 = vpow.pop %v1815
        %v1817 = vmul.f32 %v1802, 1.442695
        %v1818 = vpow.pop %v1817
        %v1819 = vsel %vm1770, %v1804, 0.0
        %1820 = vadd.xlane.f32.xlu0 %v1819
        %v1821 = vpop.xlane.xlu0 %1820
        %v1822 = vsel %vm1770, %v1806, 0.0
        %1823 = vadd.xlane.f32.xlu0 %v1822
        %v1824 = vpop.xlane.xlu0 %1823
        %v1825 = vsel %vm1770, %v1808, 0.0
        %1826 = vadd.xlane.f32.xlu0 %v1825
        %v1827 = vpop.xlane.xlu0 %1826
        %v1828 = vsel %vm1770, %v1810, 0.0
        %1829 = vadd.xlane.f32.xlu0 %v1828
        %v1830 = vpop.xlane.xlu0 %1829
        %v1831 = vsel %vm1770, %v1812, 0.0
        %1832 = vadd.xlane.f32.xlu0 %v1831
        %v1833 = vpop.xlane.xlu0 %1832
        %v1834 = vsel %vm1770, %v1814, 0.0
        %1835 = vadd.xlane.f32.xlu0 %v1834
        %v1836 = vpop.xlane.xlu0 %1835
        %v1837 = vsel %vm1770, %v1816, 0.0
        %1838 = vadd.xlane.f32.xlu0 %v1837
        %v1839 = vpop.xlane.xlu0 %1838
        %v1840 = vsel %vm1770, %v1818, 0.0
        %1841 = vadd.xlane.f32.xlu0 %v1840
        %v1842 = vpop.xlane.xlu0 %1841
        %v1843 = vrcp.pop %v1821
        %v1844 = vrcp.pop %v1824
        %v1845 = vrcp.pop %v1827
        %v1846 = vrcp.pop %v1830
        %v1847 = vrcp.pop %v1833
        %v1848 = vrcp.pop %v1836
        %v1849 = vrcp.pop %v1839
        %v1850 = vrcp.pop %v1842
        %v1851 = vmul.f32 %v1804, %v1843
        %v1852 = vmul.f32 %v1806, %v1844
        %v1853 = vmul.f32 %v1808, %v1845
        %v1854 = vmul.f32 %v1810, %v1846
        %v1855 = vmul.f32 %v1812, %v1847
        %v1856 = vmul.f32 %v1814, %v1848
        %v1857 = vmul.f32 %v1816, %v1849
        %v1858 = vmul.f32 %v1818, %v1850
        %v1859 = vpack.c.bf16 %v1852, %v1851
        %v1860 = vpack.c.bf16 %v1854, %v1853
        %v1861 = vpack.c.bf16 %v1856, %v1855
        %v1862 = vpack.c.bf16 %v1858, %v1857
        %v1863 = vld [vmem:[#allocation4] sm:$0xff]
        %v1864 = vld [vmem:[#allocation4 + $0x8] sm:$0xff]
        %v1865 = vld [vmem:[#allocation4 + $0x10] sm:$0xff]
        %v1866 = vld [vmem:[#allocation4 + $0x18] sm:$0xff]
        %v1868 = vsel %vm1770, %v1859, 0
        %1870 = vmatprep.subr.bf16.mxu0 0
        %1871 = vmatpush1.bf16.msra.mxu0 %v1863
        %1872 = vmatprep.subr.bf16.mxu0 0
        %1873 = vmatpush1.bf16.msra.mxu0 0
        %1874 = vmatprep.subr.bf16.mxu0 0
        %1875 = vmatpush1.bf16.msra.mxu0 0
        %1876 = vmatprep.subr.bf16.mxu0 0
        %1877 = vmatpush1.bf16.msra.mxu0 0
        %1878 = vmatprep.subr.bf16.mxu0 0
        %1879 = vmatpush1.bf16.msra.mxu0 0
        %1880 = vmatprep.subr.bf16.mxu0 0
        %1881 = vmatpush1.bf16.msra.mxu0 0
        %1882 = vmatprep.subr.bf16.mxu0 0
        %1883 = vmatpush1.bf16.msra.mxu0 0
        %1884 = vmatprep.subr.bf16.mxu0 0
        %1885 = vmatpush1.bf16.msra.mxu0 0
        %1886 = vmatprep.subr.bf16.mxu0 0
        %1887 = vmatpush1.bf16.msra.mxu0 0
        %1888 = vmatprep.subr.bf16.mxu0 0
        %1889 = vmatpush1.bf16.msra.mxu0 0
        %1890 = vmatprep.subr.bf16.mxu0 0
        %1891 = vmatpush1.bf16.msra.mxu0 0
        %1892 = vmatprep.subr.bf16.mxu0 0
        %1893 = vmatpush1.bf16.msra.mxu0 0
        %1894 = vmatprep.subr.bf16.mxu0 0
        %1895 = vmatpush1.bf16.msra.mxu0 0
        %1896 = vmatprep.subr.bf16.mxu0 0
        %1897 = vmatpush1.bf16.msra.mxu0 0
        %1898 = vmatprep.subr.bf16.mxu0 0
        %1899 = vmatpush1.bf16.msra.mxu0 0
        %1900 = vmatprep.subr.bf16.mxu0 0
        %1901 = vmatpush1.bf16.msra.mxu0 0
        %1902 = vmatprep.mubr.bf16.mxu0 0
        %1903 = vmatmul.mubr.bf16.gmra.mrb[0].mxu0 %v1868
        %v1904 = vpop.f32.mrb[0].mxu0
        %v1905 = vadd.f32 0.0, %v1904
        %v1906 = vpop.f32.mrb[0].mxu0
        %v1907 = vpop.f32.mrb[0].mxu0
        %v1908 = vadd.f32 0.0, %v1907
        %v1909 = vpop.f32.mrb[0].mxu0
        %1910 = vdwg.mxu0
        %v1912 = vsel %vm1770, %v1860, 0
        %1914 = vmatprep.subr.bf16.mxu0 0
        %1915 = vmatpush1.bf16.msra.mxu0 %v1864
        %1916 = vmatprep.subr.bf16.mxu0 0
        %1917 = vmatpush1.bf16.msra.mxu0 0
        %1918 = vmatprep.subr.bf16.mxu0 0
        %1919 = vmatpush1.bf16.msra.mxu0 0
        %1920 = vmatprep.subr.bf16.mxu0 0
        %1921 = vmatpush1.bf16.msra.mxu0 0
        %1922 = vmatprep.subr.bf16.mxu0 0
        %1923 = vmatpush1.bf16.msra.mxu0 0
        %1924 = vmatprep.subr.bf16.mxu0 0
        %1925 = vmatpush1.bf16.msra.mxu0 0
        %1926 = vmatprep.subr.bf16.mxu0 0
        %1927 = vmatpush1.bf16.msra.mxu0 0
        %1928 = vmatprep.subr.bf16.mxu0 0
        %1929 = vmatpush1.bf16.msra.mxu0 0
        %1930 = vmatprep.subr.bf16.mxu0 0
        %1931 = vmatpush1.bf16.msra.mxu0 0
        %1932 = vmatprep.subr.bf16.mxu0 0
        %1933 = vmatpush1.bf16.msra.mxu0 0
        %1934 = vmatprep.subr.bf16.mxu0 0
        %1935 = vmatpush1.bf16.msra.mxu0 0
        %1936 = vmatprep.subr.bf16.mxu0 0
        %1937 = vmatpush1.bf16.msra.mxu0 0
        %1938 = vmatprep.subr.bf16.mxu0 0
        %1939 = vmatpush1.bf16.msra.mxu0 0
        %1940 = vmatprep.subr.bf16.mxu0 0
        %1941 = vmatpush1.bf16.msra.mxu0 0
        %1942 = vmatprep.subr.bf16.mxu0 0
        %1943 = vmatpush1.bf16.msra.mxu0 0
        %1944 = vmatprep.subr.bf16.mxu0 0
        %1945 = vmatpush1.bf16.msra.mxu0 0
        %1946 = vmatprep.mubr.bf16.mxu0 0
        %1947 = vmatmul.mubr.bf16.gmra.mrb[0].mxu0 %v1912
        %v1948 = vpop.f32.mrb[0].mxu0
        %v1949 = vadd.f32 0.0, %v1948
        %v1950 = vpop.f32.mrb[0].mxu0
        %v1951 = vpop.f32.mrb[0].mxu0
        %v1952 = vadd.f32 0.0, %v1951
        %v1953 = vpop.f32.mrb[0].mxu0
        %1954 = vdwg.mxu0
        %v1956 = vsel %vm1770, %v1861, 0
        %1958 = vmatprep.subr.bf16.mxu0 0
        %1959 = vmatpush1.bf16.msra.mxu0 %v1865
        %1960 = vmatprep.subr.bf16.mxu0 0
        %1961 = vmatpush1.bf16.msra.mxu0 0
        %1962 = vmatprep.subr.bf16.mxu0 0
        %1963 = vmatpush1.bf16.msra.mxu0 0
        %1964 = vmatprep.subr.bf16.mxu0 0
        %1965 = vmatpush1.bf16.msra.mxu0 0
        %1966 = vmatprep.subr.bf16.mxu0 0
        %1967 = vmatpush1.bf16.msra.mxu0 0
        %1968 = vmatprep.subr.bf16.mxu0 0
        %1969 = vmatpush1.bf16.msra.mxu0 0
        %1970 = vmatprep.subr.bf16.mxu0 0
        %1971 = vmatpush1.bf16.msra.mxu0 0
        %1972 = vmatprep.subr.bf16.mxu0 0
        %1973 = vmatpush1.bf16.msra.mxu0 0
        %1974 = vmatprep.subr.bf16.mxu0 0
        %1975 = vmatpush1.bf16.msra.mxu0 0
        %1976 = vmatprep.subr.bf16.mxu0 0
        %1977 = vmatpush1.bf16.msra.mxu0 0
        %1978 = vmatprep.subr.bf16.mxu0 0
        %1979 = vmatpush1.bf16.msra.mxu0 0
        %1980 = vmatprep.subr.bf16.mxu0 0
        %1981 = vmatpush1.bf16.msra.mxu0 0
        %1982 = vmatprep.subr.bf16.mxu0 0
        %1983 = vmatpush1.bf16.msra.mxu0 0
        %1984 = vmatprep.subr.bf16.mxu0 0
        %1985 = vmatpush1.bf16.msra.mxu0 0
        %1986 = vmatprep.subr.bf16.mxu0 0
        %1987 = vmatpush1.bf16.msra.mxu0 0
        %1988 = vmatprep.subr.bf16.mxu0 0
        %1989 = vmatpush1.bf16.msra.mxu0 0
        %1990 = vmatprep.mubr.bf16.mxu0 0
        %1991 = vmatmul.mubr.bf16.gmra.mrb[0].mxu0 %v1956
        %v1992 = vpop.f32.mrb[0].mxu0
        %v1993 = vadd.f32 0.0, %v1992
        %v1994 = vpop.f32.mrb[0].mxu0
        %v1995 = vpop.f32.mrb[0].mxu0
        %v1996 = vadd.f32 0.0, %v1995
        %v1997 = vpop.f32.mrb[0].mxu0
        %1998 = vdwg.mxu0
        %v2000 = vsel %vm1770, %v1862, 0
        %2002 = vmatprep.subr.bf16.mxu0 0
        %2003 = vmatpush1.bf16.msra.mxu0 %v1866
        %2004 = vmatprep.subr.bf16.mxu0 0
        %2005 = vmatpush1.bf16.msra.mxu0 0
        %2006 = vmatprep.subr.bf16.mxu0 0
        %2007 = vmatpush1.bf16.msra.mxu0 0
        %2008 = vmatprep.subr.bf16.mxu0 0
        %2009 = vmatpush1.bf16.msra.mxu0 0
        %2010 = vmatprep.subr.bf16.mxu0 0
        %2011 = vmatpush1.bf16.msra.mxu0 0
        %2012 = vmatprep.subr.bf16.mxu0 0
        %2013 = vmatpush1.bf16.msra.mxu0 0
        %2014 = vmatprep.subr.bf16.mxu0 0
        %2015 = vmatpush1.bf16.msra.mxu0 0
        %2016 = vmatprep.subr.bf16.mxu0 0
        %2017 = vmatpush1.bf16.msra.mxu0 0
        %2018 = vmatprep.subr.bf16.mxu0 0
        %2019 = vmatpush1.bf16.msra.mxu0 0
        %2020 = vmatprep.subr.bf16.mxu0 0
        %2021 = vmatpush1.bf16.msra.mxu0 0
        %2022 = vmatprep.subr.bf16.mxu0 0
        %2023 = vmatpush1.bf16.msra.mxu0 0
        %2024 = vmatprep.subr.bf16.mxu0 0
        %2025 = vmatpush1.bf16.msra.mxu0 0
        %2026 = vmatprep.subr.bf16.mxu0 0
        %2027 = vmatpush1.bf16.msra.mxu0 0
        %2028 = vmatprep.subr.bf16.mxu0 0
        %2029 = vmatpush1.bf16.msra.mxu0 0
        %2030 = vmatprep.subr.bf16.mxu0 0
        %2031 = vmatpush1.bf16.msra.mxu0 0
        %2032 = vmatprep.subr.bf16.mxu0 0
        %2033 = vmatpush1.bf16.msra.mxu0 0
        %2034 = vmatprep.mubr.bf16.mxu0 0
        %2035 = vmatmul.mubr.bf16.gmra.mrb[0].mxu0 %v2000
        %v2036 = vpop.f32.mrb[0].mxu0
        %v2037 = vadd.f32 0.0, %v2036
        %v2038 = vpop.f32.mrb[0].mxu0
        %v2039 = vpop.f32.mrb[0].mxu0
        %v2040 = vadd.f32 0.0, %v2039
        %v2041 = vpop.f32.mrb[0].mxu0
        %2042 = vdwg.mxu0
        %v2043 = vpack.c.bf16 %v1908, %v1905
        %v2044 = vpack.c.bf16 %v1952, %v1949
        %v2045 = vpack.c.bf16 %v1996, %v1993
        %v2046 = vpack.c.bf16 %v2040, %v2037
        %v2047 = vld [vmem:[%s4] sm:$0xf]
        %v2048 = vld [vmem:[%s4 + $0x4] sm:$0xf]
        %v2049 = vld [vmem:[%s4 + $0x8] sm:$0xf]
        %v2050 = vld [vmem:[%s4 + $0xc] sm:$0xf]
        %v2052 = vsel %vm1558, %v2043, 0
        %vm2054 = vcmask 1043456
        %v2056 = vsel %vm2054, %v2047, 0
        %2058 = vmatprep.subr.bf16.mxu0 0
        %2059 = vmatpush1.bf16.msra.mxu0 %v2056
        %2060 = vmatprep.subr.bf16.mxu0 0
        %2061 = vmatpush1.bf16.msra.mxu0 0
        %2062 = vmatprep.subr.bf16.mxu0 0
        %2063 = vmatpush1.bf16.msra.mxu0 0
        %2064 = vmatprep.subr.bf16.mxu0 0
        %2065 = vmatpush1.bf16.msra.mxu0 0
        %2066 = vmatprep.subr.bf16.mxu0 0
        %2067 = vmatpush1.bf16.msra.mxu0 0
        %2068 = vmatprep.subr.bf16.mxu0 0
        %2069 = vmatpush1.bf16.msra.mxu0 0
        %2070 = vmatprep.subr.bf16.mxu0 0
        %2071 = vmatpush1.bf16.msra.mxu0 0
        %2072 = vmatprep.subr.bf16.mxu0 0
        %2073 = vmatpush1.bf16.msra.mxu0 0
        %2074 = vmatprep.subr.bf16.mxu0 0
        %2075 = vmatpush1.bf16.msra.mxu0 0
        %2076 = vmatprep.subr.bf16.mxu0 0
        %2077 = vmatpush1.bf16.msra.mxu0 0
        %2078 = vmatprep.subr.bf16.mxu0 0
        %2079 = vmatpush1.bf16.msra.mxu0 0
        %2080 = vmatprep.subr.bf16.mxu0 0
        %2081 = vmatpush1.bf16.msra.mxu0 0
        %2082 = vmatprep.subr.bf16.mxu0 0
        %2083 = vmatpush1.bf16.msra.mxu0 0
        %2084 = vmatprep.subr.bf16.mxu0 0
        %2085 = vmatpush1.bf16.msra.mxu0 0
        %2086 = vmatprep.subr.bf16.mxu0 0
        %2087 = vmatpush1.bf16.msra.mxu0 0
        %2088 = vmatprep.subr.bf16.mxu0 0
        %2089 = vmatpush1.bf16.msra.mxu0 0
        %2090 = vmatprep.mubr.bf16.mxu0 0
        %2091 = vmatmul.mubr.bf16.gmra.mrb[0].mxu0 %v2052
        %v2092 = vpop.f32.mrb[0].mxu0
        %v2093 = vadd.f32 0.0, %v2092
        %v2094 = vpop.f32.mrb[0].mxu0
        %v2095 = vpop.f32.mrb[0].mxu0
        %v2096 = vadd.f32 0.0, %v2095
        %v2097 = vpop.f32.mrb[0].mxu0
        %2098 = vdwg.mxu0
        %v2100 = vsel %vm1558, %v2044, 0
        %v2103 = vsel %vm2054, %v2048, 0
        %2105 = vmatprep.subr.bf16.mxu0 0
        %2106 = vmatpush1.bf16.msra.mxu0 %v2103
        %2107 = vmatprep.subr.bf16.mxu0 0
        %2108 = vmatpush1.bf16.msra.mxu0 0
        %2109 = vmatprep.subr.bf16.mxu0 0
        %2110 = vmatpush1.bf16.msra.mxu0 0
        %2111 = vmatprep.subr.bf16.mxu0 0
        %2112 = vmatpush1.bf16.msra.mxu0 0
        %2113 = vmatprep.subr.bf16.mxu0 0
        %2114 = vmatpush1.bf16.msra.mxu0 0
        %2115 = vmatprep.subr.bf16.mxu0 0
        %2116 = vmatpush1.bf16.msra.mxu0 0
        %2117 = vmatprep.subr.bf16.mxu0 0
        %2118 = vmatpush1.bf16.msra.mxu0 0
        %2119 = vmatprep.subr.bf16.mxu0 0
        %2120 = vmatpush1.bf16.msra.mxu0 0
        %2121 = vmatprep.subr.bf16.mxu0 0
        %2122 = vmatpush1.bf16.msra.mxu0 0
        %2123 = vmatprep.subr.bf16.mxu0 0
        %2124 = vmatpush1.bf16.msra.mxu0 0
        %2125 = vmatprep.subr.bf16.mxu0 0
        %2126 = vmatpush1.bf16.msra.mxu0 0
        %2127 = vmatprep.subr.bf16.mxu0 0
        %2128 = vmatpush1.bf16.msra.mxu0 0
        %2129 = vmatprep.subr.bf16.mxu0 0
        %2130 = vmatpush1.bf16.msra.mxu0 0
        %2131 = vmatprep.subr.bf16.mxu0 0
        %2132 = vmatpush1.bf16.msra.mxu0 0
        %2133 = vmatprep.subr.bf16.mxu0 0
        %2134 = vmatpush1.bf16.msra.mxu0 0
        %2135 = vmatprep.subr.bf16.mxu0 0
        %2136 = vmatpush1.bf16.msra.mxu0 0
        %2137 = vmatprep.mubr.bf16.mxu0 0
        %2138 = vmatmul.mubr.bf16.gmra.mrb[0].mxu0 %v2100
        %v2139 = vpop.f32.mrb[0].mxu0
        %v2140 = vadd.f32 0.0, %v2139
        %v2141 = vpop.f32.mrb[0].mxu0
        %v2142 = vpop.f32.mrb[0].mxu0
        %v2143 = vadd.f32 0.0, %v2142
        %v2144 = vpop.f32.mrb[0].mxu0
        %2145 = vdwg.mxu0
        %v2147 = vsel %vm1558, %v2045, 0
        %v2150 = vsel %vm2054, %v2049, 0
        %2152 = vmatprep.subr.bf16.mxu0 0
        %2153 = vmatpush1.bf16.msra.mxu0 %v2150
        %2154 = vmatprep.subr.bf16.mxu0 0
        %2155 = vmatpush1.bf16.msra.mxu0 0
        %2156 = vmatprep.subr.bf16.mxu0 0
        %2157 = vmatpush1.bf16.msra.mxu0 0
        %2158 = vmatprep.subr.bf16.mxu0 0
        %2159 = vmatpush1.bf16.msra.mxu0 0
        %2160 = vmatprep.subr.bf16.mxu0 0
        %2161 = vmatpush1.bf16.msra.mxu0 0
        %2162 = vmatprep.subr.bf16.mxu0 0
        %2163 = vmatpush1.bf16.msra.mxu0 0
        %2164 = vmatprep.subr.bf16.mxu0 0
        %2165 = vmatpush1.bf16.msra.mxu0 0
        %2166 = vmatprep.subr.bf16.mxu0 0
        %2167 = vmatpush1.bf16.msra.mxu0 0
        %2168 = vmatprep.subr.bf16.mxu0 0
        %2169 = vmatpush1.bf16.msra.mxu0 0
        %2170 = vmatprep.subr.bf16.mxu0 0
        %2171 = vmatpush1.bf16.msra.mxu0 0
        %2172 = vmatprep.subr.bf16.mxu0 0
        %2173 = vmatpush1.bf16.msra.mxu0 0
        %2174 = vmatprep.subr.bf16.mxu0 0
        %2175 = vmatpush1.bf16.msra.mxu0 0
        %2176 = vmatprep.subr.bf16.mxu0 0
        %2177 = vmatpush1.bf16.msra.mxu0 0
        %2178 = vmatprep.subr.bf16.mxu0 0
        %2179 = vmatpush1.bf16.msra.mxu0 0
        %2180 = vmatprep.subr.bf16.mxu0 0
        %2181 = vmatpush1.bf16.msra.mxu0 0
        %2182 = vmatprep.subr.bf16.mxu0 0
        %2183 = vmatpush1.bf16.msra.mxu0 0
        %2184 = vmatprep.mubr.bf16.mxu0 0
        %2185 = vmatmul.mubr.bf16.gmra.mrb[0].mxu0 %v2147
        %v2186 = vpop.f32.mrb[0].mxu0
        %v2187 = vadd.f32 0.0, %v2186
        %v2188 = vpop.f32.mrb[0].mxu0
        %v2189 = vpop.f32.mrb[0].mxu0
        %v2190 = vadd.f32 0.0, %v2189
        %v2191 = vpop.f32.mrb[0].mxu0
        %2192 = vdwg.mxu0
        %v2194 = vsel %vm1558, %v2046, 0
        %v2197 = vsel %vm2054, %v2050, 0
        %2199 = vmatprep.subr.bf16.mxu0 0
        %2200 = vmatpush1.bf16.msra.mxu0 %v2197
        %2201 = vmatprep.subr.bf16.mxu0 0
        %2202 = vmatpush1.bf16.msra.mxu0 0
        %2203 = vmatprep.subr.bf16.mxu0 0
        %2204 = vmatpush1.bf16.msra.mxu0 0
        %2205 = vmatprep.subr.bf16.mxu0 0
        %2206 = vmatpush1.bf16.msra.mxu0 0
        %2207 = vmatprep.subr.bf16.mxu0 0
        %2208 = vmatpush1.bf16.msra.mxu0 0
        %2209 = vmatprep.subr.bf16.mxu0 0
        %2210 = vmatpush1.bf16.msra.mxu0 0
        %2211 = vmatprep.subr.bf16.mxu0 0
        %2212 = vmatpush1.bf16.msra.mxu0 0
        %2213 = vmatprep.subr.bf16.mxu0 0
        %2214 = vmatpush1.bf16.msra.mxu0 0
        %2215 = vmatprep.subr.bf16.mxu0 0
        %2216 = vmatpush1.bf16.msra.mxu0 0
        %2217 = vmatprep.subr.bf16.mxu0 0
        %2218 = vmatpush1.bf16.msra.mxu0 0
        %2219 = vmatprep.subr.bf16.mxu0 0
        %2220 = vmatpush1.bf16.msra.mxu0 0
        %2221 = vmatprep.subr.bf16.mxu0 0
        %2222 = vmatpush1.bf16.msra.mxu0 0
        %2223 = vmatprep.subr.bf16.mxu0 0
        %2224 = vmatpush1.bf16.msra.mxu0 0
        %2225 = vmatprep.subr.bf16.mxu0 0
        %2226 = vmatpush1.bf16.msra.mxu0 0
        %2227 = vmatprep.subr.bf16.mxu0 0
        %2228 = vmatpush1.bf16.msra.mxu0 0
        %2229 = vmatprep.subr.bf16.mxu0 0
        %2230 = vmatpush1.bf16.msra.mxu0 0
        %2231 = vmatprep.mubr.bf16.mxu0 0
        %2232 = vmatmul.mubr.bf16.gmra.mrb[0].mxu0 %v2194
        %v2233 = vpop.f32.mrb[0].mxu0
        %v2234 = vadd.f32 0.0, %v2233
        %v2235 = vpop.f32.mrb[0].mxu0
        %v2236 = vpop.f32.mrb[0].mxu0
        %v2237 = vadd.f32 0.0, %v2236
        %v2238 = vpop.f32.mrb[0].mxu0
        %2239 = vdwg.mxu0
        %vm2240 = vcmask 261120
        %v2241 = vsel %vm2240, %v2093, 0.0
        %v2242 = vsel %vm2240, %v2140, 0.0
        %v2243 = vadd.f32 %v2241, %v2242
        %v2244 = vsel %vm2240, %v2187, 0.0
        %v2245 = vadd.f32 %v2243, %v2244
        %v2246 = vsel %vm2240, %v2234, 0.0
        %v2247 = vadd.f32 %v2245, %v2246
        %v2248 = vsel %vm2240, %v2096, 0.0
        %v2249 = vsel %vm2240, %v2143, 0.0
        %v2250 = vadd.f32 %v2248, %v2249
        %v2251 = vsel %vm2240, %v2190, 0.0
        %v2252 = vadd.f32 %v2250, %v2251
        %v2253 = vsel %vm2240, %v2237, 0.0
        %v2254 = vadd.f32 %v2252, %v2253
        %v2255 = vld [vmem:[%s5] sm:$0x1]
        %v2257 = vlaneseq
        %v2258 = vshrl.u32 %v2257, 7
        %v2259 = vsub.s32 0, %v2258
        %v2260 = vrot.slane %v2255, %v2259
        %v2262 = vadd.f32 %v2247, %v2260
        %v2263 = vadd.f32 %v2254, %v2260
        %v2264 = vadd.f32 %v1544, %v2262
        %v2265 = vadd.f32 %v1545, %v2263
        %v2266 = vld [vmem:[%s8] sm:$0x1]
        %v2267 = vld [vmem:[%s9] sm:$0x1]
        %v2268 = vsel %vm2240, %v2264, 0.0
        %2269 = vadd.xlane.f32.xlu0 %v2268
        %v2270 = vpop.xlane.xlu0 %2269
        %v2271 = vsel %vm2240, %v2265, 0.0
        %2272 = vadd.xlane.f32.xlu0 %v2271
        %v2273 = vpop.xlane.xlu0 %2272
        %v2274 = vrcp.pop 32.0
        %v2275 = vmul.f32 %v2270, %v2274
        %v2276 = vmul.f32 %v2273, %v2274
        %v2277 = vsub.f32 %v2264, %v2275
        %v2278 = vsub.f32 %v2265, %v2276
        %v2279 = vmul.f32 %v2277, %v2277
        %v2280 = vmul.f32 %v2278, %v2278
        %v2281 = vsel %vm2240, %v2279, 0.0
        %2282 = vadd.xlane.f32.xlu0 %v2281
        %v2283 = vpop.xlane.xlu0 %2282
        %v2284 = vsel %vm2240, %v2280, 0.0
        %2285 = vadd.xlane.f32.xlu0 %v2284
        %v2286 = vpop.xlane.xlu0 %2285
        %v2287 = vrcp.pop 31.0
        %v2288 = vmul.f32 %v2283, %v2287
        %v2289 = vmul.f32 %v2286, %v2287
        %v2290 = vrsqrt.pop %v2288
        %v2291 = vmul.f32 %v2288, %v2290
        %vm2292 = vcmp.eq.f32.partialorder %v2288, inf
        %v2293 = vsel %vm2292, %v2288, %v2291
        %vm2294 = vcmp.eq.f32.partialorder %v2288, 0.0
        %v2295 = vand.u32 %v2288, 2147483648
        %v2296 = vsel %vm2294, %v2295, %v2293
        %v2297 = vrsqrt.pop %v2289
        %v2298 = vmul.f32 %v2289, %v2297
        %vm2299 = vcmp.eq.f32.partialorder %v2289, inf
        %v2300 = vsel %vm2299, %v2289, %v2298
        %vm2301 = vcmp.eq.f32.partialorder %v2289, 0.0
        %v2302 = vand.u32 %v2289, 2147483648
        %v2303 = vsel %vm2301, %v2302, %v2300
        %v2304 = vadd.f32 %v2296, 1e-06
        %v2305 = vadd.f32 %v2303, 1e-06
        %v2306 = vrcp.pop %v2304
        %v2307 = vmul.f32 1.0, %v2306
        %v2308 = vrcp.pop %v2305
        %v2309 = vmul.f32 1.0, %v2308
        %v2310 = vmul.f32 %v2277, %v2307
        %v2311 = vmul.f32 %v2278, %v2309
        %v2313 = vlaneseq
        %v2314 = vshrl.u32 %v2313, 7
        %v2315 = vsub.s32 0, %v2314
        %v2316 = vrot.slane %v2266, %v2315
        %v2318 = vmul.f32 %v2316, %v2310
        %v2319 = vmul.f32 %v2316, %v2311
        %v2321 = vlaneseq
        %v2322 = vshrl.u32 %v2321, 7
        %v2323 = vsub.s32 0, %v2322
        %v2324 = vrot.slane %v2267, %v2323
        %v2326 = vadd.f32 %v2318, %v2324
        %v2327 = vadd.f32 %v2319, %v2324
        %v2328 = vpack.c.bf16 %v2327, %v2326
        %v2329 = vld [vmem:[%s10] sm:$0xf]
        %v2330 = vld [vmem:[%s10 + $0x4] sm:$0xf]
        %v2331 = vld [vmem:[%s10 + $0x8] sm:$0xf]
        %v2332 = vld [vmem:[%s10 + $0xc] sm:$0xf]
        %v2333 = vld [vmem:[%s11] sm:$0x1]
        %v2335 = vlaneseq
        %v2336 = vshrl.u32 %v2335, 7
        %v2337 = vsub.s32 0, %v2336
        %v2338 = vrot.slane %v2333, %v2337
        %v2344 = vunpack.c.l.b16 %v2329
        %v2345 = vunpack.c.l.b16 %v2330
        %v2346 = vunpack.c.l.b16 %v2331
        %v2347 = vunpack.c.l.b16 %v2332
        %v2348 = vpack.c.b16 %v2345, %v2344
        %v2349 = vpack.c.b16 %v2347, %v2346
        %v2353 = vsel %vm2240, %v2328, 0
        %2355 = vmatprep.subr.bf16.mxu0 0
        %2356 = vmatpush1.bf16.msra.mxu0 %v2348
        %2357 = vmatprep.subr.bf16.mxu0 0
        %2358 = vmatpush1.bf16.msra.mxu0 %v2349
        %2359 = vmatprep.subr.bf16.mxu0 0
        %2360 = vmatpush1.bf16.msra.mxu0 0
        %2361 = vmatprep.subr.bf16.mxu0 0
        %2362 = vmatpush1.bf16.msra.mxu0 0
        %2363 = vmatprep.subr.bf16.mxu0 0
        %2364 = vmatpush1.bf16.msra.mxu0 0
        %2365 = vmatprep.subr.bf16.mxu0 0
        %2366 = vmatpush1.bf16.msra.mxu0 0
        %2367 = vmatprep.subr.bf16.mxu0 0
        %2368 = vmatpush1.bf16.msra.mxu0 0
        %2369 = vmatprep.subr.bf16.mxu0 0
        %2370 = vmatpush1.bf16.msra.mxu0 0
        %2371 = vmatprep.subr.bf16.mxu0 0
        %2372 = vmatpush1.bf16.msra.mxu0 0
        %2373 = vmatprep.subr.bf16.mxu0 0
        %2374 = vmatpush1.bf16.msra.mxu0 0
        %2375 = vmatprep.subr.bf16.mxu0 0
        %2376 = vmatpush1.bf16.msra.mxu0 0
        %2377 = vmatprep.subr.bf16.mxu0 0
        %2378 = vmatpush1.bf16.msra.mxu0 0
        %2379 = vmatprep.subr.bf16.mxu0 0
        %2380 = vmatpush1.bf16.msra.mxu0 0
        %2381 = vmatprep.subr.bf16.mxu0 0
        %2382 = vmatpush1.bf16.msra.mxu0 0
        %2383 = vmatprep.subr.bf16.mxu0 0
        %2384 = vmatpush1.bf16.msra.mxu0 0
        %2385 = vmatprep.subr.bf16.mxu0 0
        %2386 = vmatpush1.bf16.msra.mxu0 0
        %2387 = vmatprep.mubr.bf16.mxu0 0
        %2388 = vmatmul.mubr.bf16.gmra.mrb[0].mxu0 %v2353
        %v2389 = vpop.f32.mrb[0].mxu0
        %v2390 = vadd.f32 %v2338, %v2389
        %v2391 = vpop.f32.mrb[0].mxu0
        %v2392 = vpop.f32.mrb[0].mxu0
        %v2393 = vadd.f32 %v2338, %v2392
        %v2394 = vpop.f32.mrb[0].mxu0
        %2395 = vdwg.mxu0
        %v2396 = vmul.f32 %v2390, 0.5
        %v2397 = vmul.f32 %v2393, 0.5
        %v2398 = vmul.f32 %v2390, 0.044715
        %v2399 = vmul.f32 %v2393, 0.044715
        %v2400 = vmul.f32 %v2398, %v2390
        %v2401 = vmul.f32 %v2399, %v2393
        %v2402 = vmul.f32 %v2400, %v2390
        %v2403 = vmul.f32 %v2401, %v2393
        %v2404 = vadd.f32 %v2390, %v2402
        %v2405 = vadd.f32 %v2393, %v2403
        %v2406 = vmul.f32 %v2404, 0.7978846
        %v2407 = vmul.f32 %v2405, 0.7978846
        %v2408 = vtanh.pop %v2406
        %v2409 = vtanh.pop %v2407
        %v2410 = vadd.f32 %v2408, 1.0
        %v2411 = vadd.f32 %v2409, 1.0
        %v2412 = vmul.f32 %v2396, %v2410
        %v2413 = vmul.f32 %v2397, %v2411
        %v2414 = vpack.c.bf16 %v2413, %v2412
        %v2415 = vld [vmem:[%s12] sm:$0xf]
        %v2416 = vld [vmem:[%s12 + $0x4] sm:$0xf]
        %v2417 = vld [vmem:[%s12 + $0x8] sm:$0xf]
        %v2418 = vld [vmem:[%s12 + $0xc] sm:$0xf]
        %v2419 = vld [vmem:[%s12 + $0x10] sm:$0xf]
        %v2420 = vld [vmem:[%s12 + $0x14] sm:$0xf]
        %v2421 = vld [vmem:[%s12 + $0x18] sm:$0xf]
        %v2422 = vld [vmem:[%s12 + $0x1c] sm:$0xf]
        %v2423 = vld [vmem:[%s12 + $0x20] sm:$0xf]
        %v2424 = vld [vmem:[%s12 + $0x24] sm:$0xf]
        %v2425 = vld [vmem:[%s12 + $0x28] sm:$0xf]
        %v2426 = vld [vmem:[%s12 + $0x2c] sm:$0xf]
        %v2427 = vld [vmem:[%s12 + $0x30] sm:$0xf]
        %v2428 = vld [vmem:[%s12 + $0x34] sm:$0xf]
        %v2429 = vld [vmem:[%s12 + $0x38] sm:$0xf]
        %v2430 = vld [vmem:[%s12 + $0x3c] sm:$0xf]
        %v2447 = vunpack.c.l.b16 %v2415
        %v2448 = vunpack.c.l.b16 %v2416
        %v2449 = vunpack.c.l.b16 %v2417
        %v2450 = vunpack.c.l.b16 %v2418
        %v2451 = vunpack.c.l.b16 %v2419
        %v2452 = vunpack.c.l.b16 %v2420
        %v2453 = vunpack.c.l.b16 %v2421
        %v2454 = vunpack.c.l.b16 %v2422
        %v2455 = vunpack.c.l.b16 %v2423
        %v2456 = vunpack.c.l.b16 %v2424
        %v2457 = vunpack.c.l.b16 %v2425
        %v2458 = vunpack.c.l.b16 %v2426
        %v2459 = vunpack.c.l.b16 %v2427
        %v2460 = vunpack.c.l.b16 %v2428
        %v2461 = vunpack.c.l.b16 %v2429
        %v2462 = vunpack.c.l.b16 %v2430
        %v2463 = vpack.c.b16 %v2448, %v2447
        %v2464 = vpack.c.b16 %v2450, %v2449
        %v2465 = vpack.c.b16 %v2452, %v2451
        %v2466 = vpack.c.b16 %v2454, %v2453
        %v2467 = vpack.c.b16 %v2456, %v2455
        %v2468 = vpack.c.b16 %v2458, %v2457
        %v2469 = vpack.c.b16 %v2460, %v2459
        %v2470 = vpack.c.b16 %v2462, %v2461
        %2479 = vmatprep.subr.bf16.mxu0 0
        %2480 = vmatpush1.bf16.msra.mxu0 %v2463
        %2481 = vmatprep.subr.bf16.mxu0 0
        %2482 = vmatpush1.bf16.msra.mxu0 %v2464
        %2483 = vmatprep.subr.bf16.mxu0 0
        %2484 = vmatpush1.bf16.msra.mxu0 %v2465
        %2485 = vmatprep.subr.bf16.mxu0 0
        %2486 = vmatpush1.bf16.msra.mxu0 %v2466
        %2487 = vmatprep.subr.bf16.mxu0 0
        %2488 = vmatpush1.bf16.msra.mxu0 %v2467
        %2489 = vmatprep.subr.bf16.mxu0 0
        %2490 = vmatpush1.bf16.msra.mxu0 %v2468
        %2491 = vmatprep.subr.bf16.mxu0 0
        %2492 = vmatpush1.bf16.msra.mxu0 %v2469
        %2493 = vmatprep.subr.bf16.mxu0 0
        %2494 = vmatpush1.bf16.msra.mxu0 %v2470
        %2495 = vmatprep.subr.bf16.mxu0 0
        %2496 = vmatpush1.bf16.msra.mxu0 0
        %2497 = vmatprep.subr.bf16.mxu0 0
        %2498 = vmatpush1.bf16.msra.mxu0 0
        %2499 = vmatprep.subr.bf16.mxu0 0
        %2500 = vmatpush1.bf16.msra.mxu0 0
        %2501 = vmatprep.subr.bf16.mxu0 0
        %2502 = vmatpush1.bf16.msra.mxu0 0
        %2503 = vmatprep.subr.bf16.mxu0 0
        %2504 = vmatpush1.bf16.msra.mxu0 0
        %2505 = vmatprep.subr.bf16.mxu0 0
        %2506 = vmatpush1.bf16.msra.mxu0 0
        %2507 = vmatprep.subr.bf16.mxu0 0
        %2508 = vmatpush1.bf16.msra.mxu0 0
        %2509 = vmatprep.subr.bf16.mxu0 0
        %2510 = vmatpush1.bf16.msra.mxu0 0
        %2511 = vmatprep.mubr.bf16.mxu0 0
        %2512 = vmatmul.mubr.bf16.gmra.mrb[0].mxu0 %v2414
        %v2513 = vpop.f32.mrb[0].mxu0
        %v2514 = vadd.f32 0.0, %v2513
        %v2515 = vpop.f32.mrb[0].mxu0
        %v2516 = vpop.f32.mrb[0].mxu0
        %v2517 = vadd.f32 0.0, %v2516
        %v2518 = vpop.f32.mrb[0].mxu0
        %2519 = vdwg.mxu0
        %v2520 = vadd.f32 %v2264, %v2514
        %v2521 = vadd.f32 %v2265, %v2517
        %v2522 = vld [vmem:[%s13] sm:$0x1]
        %v2524 = vlaneseq
        %v2525 = vshrl.u32 %v2524, 7
        %v2526 = vsub.s32 0, %v2525
        %v2527 = vrot.slane %v2522, %v2526
        %v2529 = vadd.f32 %v2520, %v2527
        %v2530 = vadd.f32 %v2521, %v2527
        %2531 = vst.msk [vmem:[%s485] sm:$0xff] %vm2240, %v2529
        %2532 = vst.msk [vmem:[%s485 + $0x8] sm:$0xff] %vm2240, %v2530
        %s2533 = sand.u32 %s354, 1
        %s2534 = scalar_lea.sflag [#allocation6], %s2533
        %s2535 = sand.u32 %s354, 1
        %s2536 = smul.addr %s2535, 16
        %s2537 = scalar_lea.vmem [#allocation5], %s2536
        // Predicated region
        $region81: #{tpu_custom_call.1} parent=75 // pred_check
          %p2538 = pneg %p364
        $region82: #{tpu_custom_call.1} parent=75 // pred_check_branch
          %2540 = sbr.rel (%p2538) target = $region84
        $region83: #{tpu_custom_call.1} parent=75 // pred_region
          %s2541 = smul.u32 2, %s33
          %s2543 = ssub.s32 256, 256
          %2544 = vsyncadd %s2534, %s2543
          %s2545 = smul.addr %s32, 2
          %s2546 = sadd.s32 %s2541, %s2545
          %s2547 = smul.addr %s2546, 128
          %s2548 = scalar_lea.hbm %s14, %s2547
          %s2549 = sshll.u32 %s2537, 4
          %s2550 = int_to_ptr.vmem [resolvable:$true] %s2549
          %2555 = dma.vmem_to_hbm [thread:$0]  %s2550, 256, %s2548, %s2534, 128, 128, 8
        $region84: #{tpu_custom_call.1} parent=75 // pred_fallthru
          _
      $region76: #{tpu_custom_call.1} parent=5 // pred_fallthru
        _
      %p2556 = scmp.le.s32.totalorder 2, %s23
      // Predicated region
      $region85: #{tpu_custom_call.1} parent=5 // pred_check
        %p2557 = pneg %p2556
      $region86: #{tpu_custom_call.1} parent=5 // pred_check_branch
        %2559 = sbr.rel (%p2557) target = $region88
      $region87: #{tpu_custom_call.1} parent=5 // pred_region
        %s2560 = ssub.s32 %s23, 2
        // Predicated region
        $region89: #{tpu_custom_call.1} parent=87 // pred_check
          %p2561 = pneg %p370
        $region90: #{tpu_custom_call.1} parent=87 // pred_check_branch
          %2563 = sbr.rel (%p2561) target = $region92
        $region91: #{tpu_custom_call.1} parent=87 // pred_region
          %s2564 = sand.u32 %s355, 1
          %s2565 = scalar_lea.sflag [#allocation6], %s2564
          %s2566 = sand.u32 %s355, 1
          %s2567 = smul.addr %s2566, 16
          %s2568 = scalar_lea.vmem [#allocation5], %s2567
          %2569 = dma.done %s2565, 256
        $region92: #{tpu_custom_call.1} parent=87 // pred_fallthru
          _
      $region88: #{tpu_custom_call.1} parent=5 // pred_fallthru
        _
    $region6: #{tpu_custom_call.1} parent=1 // loop_footer
      %s27 = sadd.s32 1, %s23
    $region7: #{tpu_custom_call.1} parent=1 // loop_footer_branch
      %22 = sbr.rel target = $region3
    $region8: #{tpu_custom_call.1} parent=1 // loop_exit
      _
    %2570 = vsyncpa [#allocation6], 1
    %s2571 = scalar_lea.sflag [#allocation6], 1
    %2572 = vsyncpa %s2571, 1

</llo_original>
